<compile_context>
chip_gen: v7x
topology: tpu7x:2x2x1
jax: 0.10.0
libtpu: 0.0.40
codegen_flags: <defaults>
</compile_context>

<pallas_src>
import functools

import jax
import jax.numpy as jnp
from jax import lax
from jax.experimental import pallas as pl
from jax.experimental.pallas import tpu as pltpu


# ------------------------------ fused kernel ---------------------------------
def fused_kernel(i0_ref, i1_ref,
                 tbl_enc_ref, w01_enc_ref, whh1_enc_ref, b1_enc_ref,
                 tbl_dec_ref, w01_dec_ref, whh1_dec_ref, b1_dec_ref,
                 gamma_ref, beta_ref, lin_w_ref, lin_b_ref,
                 out_ref, *, T, B, H):
    """Whole model in one invocation (grid=()), depth == 2.

    i0_ref / i1_ref : (T*B, 1) f32 token ids in {0., 1.}, row index = t*B + b
                      (B is the sublane-padded batch).
    tbl_*_ref       : (2, 4H)  f32   embed @ W_ih0^T + b0, gate order [i,f,o,g]
    w01_*_ref       : (H, 8H)  bf16  [W_hh0^T | W_ih1^T]   (fused wavefront RHS)
    whh1_*_ref      : (H, 4H)  bf16  W_hh1^T
    b1_*_ref        : (1, 4H)  f32   b_ih1 + b_hh1
    out_ref         : (1, T*B) f32   projection output, column = t*B + b
    """
    f32 = jnp.float32
    bf16 = jnp.bfloat16
    # Lane mask picking the tanh gate block (last H lanes of [i, f, o, g]).
    is_g = lax.broadcasted_iota(jnp.int32, (B, 4 * H), 1) >= 3 * H

    def lstm_cell(gates, c):
        sig = jax.nn.sigmoid(gates)        # one EUP pass on the full (B,4H) vreg
        tnh = jnp.tanh(gates)              # one EUP pass
        acts = jnp.where(is_g, tnh, sig)   # [sig_i, sig_f, sig_o, tanh_g]
        i_g = acts[:, 0:H]
        f_g = acts[:, H:2 * H]
        o_g = acts[:, 2 * H:3 * H]
        g_g = acts[:, 3 * H:4 * H]
        c_new = f_g * c + i_g * g_g
        h_new = o_g * jnp.tanh(c_new)
        return h_new, c_new

    def gather_x0(idx_ref, tbl_ref):
        # Embedding gather folded into layer-0's input projection: select row
        # 0/1 of the (2, 4H) table (bias already folded) per (t, b) row.
        sel = idx_ref[...] > 0.5                                   # (T*B, 1)
        return jnp.where(sel, tbl_ref[1:2, :], tbl_ref[0:1, :])    # (T*B, 4H)

    def run_stack(x0_all, w01, whh1, b1, h0, c0, h1, c1, collect):
        # 2-layer wavefront: super-step s runs layer-0 time-step s and layer-1
        # time-step s-1; both reuse one fused bf16 matmul h0 @ [W_hh0 | W_ih1].
        b1 = jnp.broadcast_to(b1, (B, 4 * H))    # hoist (broadcasts aren't CSE'd)
        ys = []
        for s in range(T + 1):                   # statically unrolled (T+1 steps)
            m = jnp.dot(h0.astype(bf16), w01,
                        preferred_element_type=f32)                # (B, 8H)
            if s >= 1:
                g1 = (m[:, 4 * H:] + b1
                      + jnp.dot(h1.astype(bf16), whh1,
                                preferred_element_type=f32))
                h1, c1 = lstm_cell(g1, c1)
                if collect:
                    ys.append(h1)
            if s < T:
                g0 = x0_all[s * B:(s + 1) * B, :] + m[:, :4 * H]
                h0, c0 = lstm_cell(g0, c0)
        return h0, c0, h1, c1, ys

    zeros = jnp.zeros((B, H), f32)

    # -------------------------------- encoder --------------------------------
    x0 = gather_x0(i0_ref, tbl_enc_ref)
    eh0, ec0, eh1, ec1, _ = run_stack(
        x0, w01_enc_ref[...], whh1_enc_ref[...], b1_enc_ref[...],
        zeros, zeros, zeros, zeros, collect=False)

    # ------------------------ decoder (seeded by encoder) --------------------
    x1 = gather_x0(i1_ref, tbl_dec_ref)
    _, _, _, _, ys = run_stack(
        x1, w01_dec_ref[...], whh1_dec_ref[...], b1_dec_ref[...],
        eh0, ec0, eh1, ec1, collect=True)

    # --------------------- fused LayerNorm + Linear(H, 1) --------------------
    y = jnp.concatenate(ys, axis=0)                  # (T*B, H), stays on-chip
    mean = jnp.mean(y, axis=-1, keepdims=True)
    var = jnp.mean((y - mean) ** 2, axis=-1, keepdims=True)
    yn = (y - mean) * lax.rsqrt(var + 1e-5)
    yn = yn * gamma_ref[...] + beta_ref[...]
    # (1, H) . (T*B, H)^T -> (1, T*B): single lane-dense output row (exact f32).
    proj = lax.dot_general(lin_w_ref[...], yn,
                           dimension_numbers=(((1,), (1,)), ((), ())),
                           preferred_element_type=f32)
    out_ref[...] = proj + lin_b_ref[...]


# ------------------------------- parameters ----------------------------------
def init_params(key, size, depth):
    """Parameters in PyTorch nn.LSTM / nn.Linear layout & init distribution."""
    k = 1.0 / float(size) ** 0.5
    keys = iter(jax.random.split(key, 4 + 8 * depth))

    def unif(shape):
        return jax.random.uniform(next(keys), shape, jnp.float32, -k, k)

    params = {
        "embed0": jax.random.normal(next(keys), (2, size), jnp.float32),
        "embed1": jax.random.normal(next(keys), (2, size), jnp.float32),
        "enc": [], "dec": [],
    }
    for name in ("enc", "dec"):
        for _ in range(depth):
            params[name].append({
                "w_ih": unif((4 * size, size)),   # PyTorch gate order i, f, g, o
                "w_hh": unif((4 * size, size)),
                "b_ih": unif((4 * size,)),
                "b_hh": unif((4 * size,)),
            })
    params["ln_gamma"] = jnp.ones((size,), jnp.float32)
    params["ln_beta"] = jnp.zeros((size,), jnp.float32)
    params["lin_w"] = unif((1, size))
    params["lin_b"] = unif((1,))
    return params


def _reorder_gates(w):
    # (..., 4H) in PyTorch gate order [i, f, g, o] -> [i, f, o, g].
    h = w.shape[-1] // 4
    return jnp.concatenate(
        [w[..., :2 * h], w[..., 3 * h:], w[..., 2 * h:3 * h]], axis=-1)


def pack_params(params):
    """One-time repack: transpose, gate reorder, bias fusion, embedding folded
    into layer-0's W_ih (a 2-row table), wavefront-fused [W_hh0|W_ih1] RHS in
    bf16 for the MXU."""
    depth = len(params["enc"])
    assert depth == 2, "kernel is specialized for depth == 2"
    packed = {}
    for name, embed in (("enc", params["embed0"]), ("dec", params["embed1"])):
        l0, l1 = params[name]
        wih0 = _reorder_gates(l0["w_ih"].T)                       # (H, 4H)
        whh0 = _reorder_gates(l0["w_hh"].T)
        b0 = _reorder_gates((l0["b_ih"] + l0["b_hh"])[None, :])   # (1, 4H)
        wih1 = _reorder_gates(l1["w_ih"].T)
        whh1 = _reorder_gates(l1["w_hh"].T)
        b1 = _reorder_gates((l1["b_ih"] + l1["b_hh"])[None, :])
        packed[f"tbl_{name}"] = jnp.dot(embed, wih0) + b0                  # (2, 4H) f32
        packed[f"w01_{name}"] = jnp.concatenate([whh0, wih1],
                                                axis=1).astype(jnp.bfloat16)  # (H, 8H)
        packed[f"whh1_{name}"] = whh1.astype(jnp.bfloat16)                 # (H, 4H)
        packed[f"b1_{name}"] = b1                                          # (1, 4H) f32
    packed["gamma"] = params["ln_gamma"][None, :]                          # (1, H)
    packed["beta"] = params["ln_beta"][None, :]
    packed["lin_w"] = params["lin_w"]                                      # (1, H)
    packed["lin_b"] = params["lin_b"][None, :]                             # (1, 1)
    return packed


# --------------------------------- forward -----------------------------------
@jax.jit
def forward(inp, packed):
    # inp: (B, 2*T) int32 of {0, 1}
    B, two_t = inp.shape
    T = two_t // 2
    H = packed["gamma"].shape[-1]
    B_pad = max(8, -(-B // 8) * 8)            # sublane-align the batch

    i0, i1 = jnp.split(inp, 2, axis=1)        # (B, T) each

    def prep(x):                              # time-major, padded to B_pad rows
        xt = x.T.astype(jnp.float32)          # (T, B)
        xp = jnp.zeros((T, B_pad), jnp.float32).at[:, :B].set(xt)
        return xp.reshape(T * B_pad, 1)

    i0f = prep(i0)
    i1f = prep(i1)

    kernel = functools.partial(fused_kernel, T=T, B=B_pad, H=H)
    vmem = pl.BlockSpec(memory_space=pltpu.MemorySpace.VMEM)
    out = pl.pallas_call(
        kernel,
        out_shape=jax.ShapeDtypeStruct((1, T * B_pad), jnp.float32),
        in_specs=[vmem] * 14,
        out_specs=vmem,
    )(i0f, i1f,
      packed["tbl_enc"], packed["w01_enc"], packed["whh1_enc"], packed["b1_enc"],
      packed["tbl_dec"], packed["w01_dec"], packed["whh1_dec"], packed["b1_dec"],
      packed["gamma"], packed["beta"], packed["lin_w"], packed["lin_b"])

    # (1, T*B_pad) with column index t*B_pad + b  ->  (B, T, 1)
    return out.reshape(T, B_pad)[:, :B].T[:, :, None]


# ------------------------- pure-JAX reference (check) -------------------------
def reference_forward(inp, params):
    """Direct port of the PyTorch module's forward (stacked LSTMs + LN + Linear)."""
    i0, i1 = jnp.split(inp, 2, axis=1)
    i0 = i0.T
    i1 = i1.T
    e0 = params["embed0"][i0]                  # (T, B, H)
    e1 = params["embed1"][i1]
    H = e0.shape[-1]
    B = e0.shape[1]

    def lstm_stack(x, layers, state=None):
        T = x.shape[0]
        hs, cs = [], []
        for l, lyr in enumerate(layers):
            h = jnp.zeros((B, H), jnp.float32) if state is None else state[0][l]
            c = jnp.zeros((B, H), jnp.float32) if state is None else state[1][l]
            b = lyr["b_ih"] + lyr["b_hh"]
            ys = []
            for t in range(T):
                g = x[t] @ lyr["w_ih"].T + h @ lyr["w_hh"].T + b
                i_g = jax.nn.sigmoid(g[:, :H])
                f_g = jax.nn.sigmoid(g[:, H:2 * H])
                g_g = jnp.tanh(g[:, 2 * H:3 * H])
                o_g = jax.nn.sigmoid(g[:, 3 * H:])
                c = f_g * c + i_g * g_g
                h = o_g * jnp.tanh(c)
                ys.append(h)
            x = jnp.stack(ys)
            hs.append(h)
            cs.append(c)
        return x, (jnp.stack(hs), jnp.stack(cs))

    _, state = lstm_stack(e0, params["enc"])
    out, _ = lstm_stack(e1, params["dec"], state)
    out = out.transpose(1, 0, 2)               # (B, T, H)
    mean = out.mean(-1, keepdims=True)
    var = ((out - mean) ** 2).mean(-1, keepdims=True)
    xn = (out - mean) / jnp.sqrt(var + 1e-5)
    xn = xn * params["ln_gamma"] + params["ln_beta"]
    return xn @ params["lin_w"].T + params["lin_b"]


if __name__ == "__main__":
    size, depth = 32, 2
    batch, seq = 2, 8

    key = jax.random.PRNGKey(0)
    k_param, k_inp = jax.random.split(key)
    params = init_params(k_param, size, depth)
    packed = pack_params(params)          # one-time repack, outside the hot path
    inp = jax.random.randint(k_inp, (batch, 2 * seq), 0, 2, dtype=jnp.int32)

    out = forward(inp, packed)
    jax.block_until_ready(out)
    assert out.shape == (batch, seq, 1), out.shape

    ref = jax.jit(reference_forward)(inp, params)
    max_err = float(jnp.max(jnp.abs(out - ref)))
    # bf16 MXU operands in the recurrence -> loosened tolerance vs f32 reference
    # (expected deviation ~1e-2 over 2 stacks x 2 layers x 8 steps).
    assert max_err < 1e-1, f"mismatch vs reference: {max_err}"

    print("KERNEL_OK")
</pallas_src>

<mosaic_0001>
module attributes {stable_mosaic.version = 11 : i64} {
  func.func @fused_kernel(%arg0: memref<64x1xf32, #tpu.memory_space<vmem>>, %arg1: memref<64x1xf32, #tpu.memory_space<vmem>>, %arg2: memref<2x128xf32, #tpu.memory_space<vmem>>, %arg3: memref<32x256xbf16, #tpu.memory_space<vmem>>, %arg4: memref<32x128xbf16, #tpu.memory_space<vmem>>, %arg5: memref<1x128xf32, #tpu.memory_space<vmem>>, %arg6: memref<2x128xf32, #tpu.memory_space<vmem>>, %arg7: memref<32x256xbf16, #tpu.memory_space<vmem>>, %arg8: memref<32x128xbf16, #tpu.memory_space<vmem>>, %arg9: memref<1x128xf32, #tpu.memory_space<vmem>>, %arg10: memref<1x32xf32, #tpu.memory_space<vmem>>, %arg11: memref<1x32xf32, #tpu.memory_space<vmem>>, %arg12: memref<1x32xf32, #tpu.memory_space<vmem>>, %arg13: memref<1x1xf32, #tpu.memory_space<vmem>>, %arg14: memref<1x64xf32, #tpu.memory_space<vmem>>) attributes {dimension_semantics = [], scalar_prefetch = 0 : i64, scratch_operands = 0 : i64, tpu.core_type = #tpu.core_type<tc>} {
    %0 = tpu.iota {dimensions = array<i32: 1>} : vector<8x128xi32>
    %c96_i32 = arith.constant 96 : i32
    %1 = vector.broadcast %c96_i32 : i32 to vector<8x128xi32>
    %2 = arith.cmpi sge, %0, %1 : vector<8x128xi32>
    %cst = arith.constant 0.000000e+00 : f32
    %3 = vector.broadcast %cst : f32 to vector<8x32xf32>
    %c0 = arith.constant 0 : index
    %c0_0 = arith.constant 0 : index
    %4 = vector.load %arg0[%c0, %c0_0] : memref<64x1xf32, #tpu.memory_space<vmem>>, vector<64x1xf32>
    %cst_1 = arith.constant 5.000000e-01 : f32
    %5 = vector.broadcast %cst_1 : f32 to vector<64x1xf32>
    %6 = arith.cmpf ogt, %4, %5 : vector<64x1xf32>
    %c1 = arith.constant 1 : index
    %c0_2 = arith.constant 0 : index
    %7 = vector.load %arg2[%c1, %c0_2] : memref<2x128xf32, #tpu.memory_space<vmem>>, vector<1x128xf32>
    %c0_3 = arith.constant 0 : index
    %c0_4 = arith.constant 0 : index
    %8 = vector.load %arg2[%c0_3, %c0_4] : memref<2x128xf32, #tpu.memory_space<vmem>>, vector<1x128xf32>
    %9 = vector.shape_cast %6 : vector<64x1xi1> to vector<64x1xi1>
    %10 = vector.broadcast %9 : vector<64x1xi1> to vector<64x128xi1>
    %11 = vector.shape_cast %7 : vector<1x128xf32> to vector<1x128xf32>
    %12 = vector.broadcast %11 : vector<1x128xf32> to vector<64x128xf32>
    %13 = vector.shape_cast %8 : vector<1x128xf32> to vector<1x128xf32>
    %14 = vector.broadcast %13 : vector<1x128xf32> to vector<64x128xf32>
    %15 = arith.select %10, %12, %14 : vector<64x128xi1>, vector<64x128xf32>
    %c0_5 = arith.constant 0 : index
    %c0_6 = arith.constant 0 : index
    %16 = vector.load %arg3[%c0_5, %c0_6] : memref<32x256xbf16, #tpu.memory_space<vmem>>, vector<32x256xbf16>
    %c0_7 = arith.constant 0 : index
    %c0_8 = arith.constant 0 : index
    %17 = vector.load %arg4[%c0_7, %c0_8] : memref<32x128xbf16, #tpu.memory_space<vmem>>, vector<32x128xbf16>
    %c0_9 = arith.constant 0 : index
    %c0_10 = arith.constant 0 : index
    %18 = vector.load %arg5[%c0_9, %c0_10] : memref<1x128xf32, #tpu.memory_space<vmem>>, vector<1x128xf32>
    %19 = vector.shape_cast %18 : vector<1x128xf32> to vector<1x128xf32>
    %20 = vector.broadcast %19 : vector<1x128xf32> to vector<8x128xf32>
    %21 = arith.truncf %3 : vector<8x32xf32> to vector<8x32xbf16>
    %cst_11 = arith.constant dense<0.000000e+00> : vector<8x256xf32>
    %22 = tpu.matmul %21, %16, %cst_11 {dimension_numbers = #tpu.dot_dimension_numbers<[1], [0], [0], [1], [0, 0, 1, 1], [], []>} : vector<8x32xbf16>, vector<32x256xbf16>, vector<8x256xf32> -> vector<8x256xf32>
    %23 = vector.extract_strided_slice %15 {offsets = [0, 0], sizes = [8, 128], strides = [1, 1]} : vector<64x128xf32> to vector<8x128xf32>
    %24 = vector.extract_strided_slice %22 {offsets = [0, 0], sizes = [8, 128], strides = [1, 1]} : vector<8x256xf32> to vector<8x128xf32>
    %25 = arith.addf %23, %24 : vector<8x128xf32>
    %26 = arith.negf %25 : vector<8x128xf32>
    %27 = math.exp %26 : vector<8x128xf32>
    %cst_12 = arith.constant 1.000000e+00 : f32
    %28 = vector.broadcast %cst_12 : f32 to vector<8x128xf32>
    %29 = arith.addf %28, %27 : vector<8x128xf32>
    %30 = arith.divf %28, %29 : vector<8x128xf32>
    %31 = math.tanh %25 : vector<8x128xf32>
    %32 = arith.select %2, %31, %30 : vector<8x128xi1>, vector<8x128xf32>
    %33 = vector.extract_strided_slice %32 {offsets = [0, 0], sizes = [8, 32], strides = [1, 1]} : vector<8x128xf32> to vector<8x32xf32>
    %34 = vector.extract_strided_slice %32 {offsets = [0, 32], sizes = [8, 32], strides = [1, 1]} : vector<8x128xf32> to vector<8x32xf32>
    %35 = vector.extract_strided_slice %32 {offsets = [0, 64], sizes = [8, 32], strides = [1, 1]} : vector<8x128xf32> to vector<8x32xf32>
    %36 = vector.extract_strided_slice %32 {offsets = [0, 96], sizes = [8, 32], strides = [1, 1]} : vector<8x128xf32> to vector<8x32xf32>
    %37 = arith.mulf %34, %3 : vector<8x32xf32>
    %38 = arith.mulf %33, %36 : vector<8x32xf32>
    %39 = arith.addf %37, %38 : vector<8x32xf32>
    %40 = math.tanh %39 : vector<8x32xf32>
    %41 = arith.mulf %35, %40 : vector<8x32xf32>
    %42 = arith.truncf %41 : vector<8x32xf32> to vector<8x32xbf16>
    %cst_13 = arith.constant dense<0.000000e+00> : vector<8x256xf32>
    %43 = tpu.matmul %42, %16, %cst_13 {dimension_numbers = #tpu.dot_dimension_numbers<[1], [0], [0], [1], [0, 0, 1, 1], [], []>} : vector<8x32xbf16>, vector<32x256xbf16>, vector<8x256xf32> -> vector<8x256xf32>
    %44 = vector.extract_strided_slice %43 {offsets = [0, 128], sizes = [8, 128], strides = [1, 1]} : vector<8x256xf32> to vector<8x128xf32>
    %45 = arith.addf %44, %20 : vector<8x128xf32>
    %46 = arith.truncf %3 : vector<8x32xf32> to vector<8x32xbf16>
    %cst_14 = arith.constant dense<0.000000e+00> : vector<8x128xf32>
    %47 = tpu.matmul %46, %17, %cst_14 {dimension_numbers = #tpu.dot_dimension_numbers<[1], [0], [0], [1], [0, 0, 1, 1], [], []>} : vector<8x32xbf16>, vector<32x128xbf16>, vector<8x128xf32> -> vector<8x128xf32>
    %48 = arith.addf %45, %47 : vector<8x128xf32>
    %49 = arith.negf %48 : vector<8x128xf32>
    %50 = math.exp %49 : vector<8x128xf32>
    %cst_15 = arith.constant 1.000000e+00 : f32
    %51 = vector.broadcast %cst_15 : f32 to vector<8x128xf32>
    %52 = arith.addf %51, %50 : vector<8x128xf32>
    %53 = arith.divf %51, %52 : vector<8x128xf32>
    %54 = math.tanh %48 : vector<8x128xf32>
    %55 = arith.select %2, %54, %53 : vector<8x128xi1>, vector<8x128xf32>
    %56 = vector.extract_strided_slice %55 {offsets = [0, 0], sizes = [8, 32], strides = [1, 1]} : vector<8x128xf32> to vector<8x32xf32>
    %57 = vector.extract_strided_slice %55 {offsets = [0, 32], sizes = [8, 32], strides = [1, 1]} : vector<8x128xf32> to vector<8x32xf32>
    %58 = vector.extract_strided_slice %55 {offsets = [0, 64], sizes = [8, 32], strides = [1, 1]} : vector<8x128xf32> to vector<8x32xf32>
    %59 = vector.extract_strided_slice %55 {offsets = [0, 96], sizes = [8, 32], strides = [1, 1]} : vector<8x128xf32> to vector<8x32xf32>
    %60 = arith.mulf %57, %3 : vector<8x32xf32>
    %61 = arith.mulf %56, %59 : vector<8x32xf32>
    %62 = arith.addf %60, %61 : vector<8x32xf32>
    %63 = math.tanh %62 : vector<8x32xf32>
    %64 = arith.mulf %58, %63 : vector<8x32xf32>
    %65 = vector.extract_strided_slice %15 {offsets = [8, 0], sizes = [8, 128], strides = [1, 1]} : vector<64x128xf32> to vector<8x128xf32>
    %66 = vector.extract_strided_slice %43 {offsets = [0, 0], sizes = [8, 128], strides = [1, 1]} : vector<8x256xf32> to vector<8x128xf32>
    %67 = arith.addf %65, %66 : vector<8x128xf32>
    %68 = arith.negf %67 : vector<8x128xf32>
    %69 = math.exp %68 : vector<8x128xf32>
    %cst_16 = arith.constant 1.000000e+00 : f32
    %70 = vector.broadcast %cst_16 : f32 to vector<8x128xf32>
    %71 = arith.addf %70, %69 : vector<8x128xf32>
    %72 = arith.divf %70, %71 : vector<8x128xf32>
    %73 = math.tanh %67 : vector<8x128xf32>
    %74 = arith.select %2, %73, %72 : vector<8x128xi1>, vector<8x128xf32>
    %75 = vector.extract_strided_slice %74 {offsets = [0, 0], sizes = [8, 32], strides = [1, 1]} : vector<8x128xf32> to vector<8x32xf32>
    %76 = vector.extract_strided_slice %74 {offsets = [0, 32], sizes = [8, 32], strides = [1, 1]} : vector<8x128xf32> to vector<8x32xf32>
    %77 = vector.extract_strided_slice %74 {offsets = [0, 64], sizes = [8, 32], strides = [1, 1]} : vector<8x128xf32> to vector<8x32xf32>
    %78 = vector.extract_strided_slice %74 {offsets = [0, 96], sizes = [8, 32], strides = [1, 1]} : vector<8x128xf32> to vector<8x32xf32>
    %79 = arith.mulf %76, %39 : vector<8x32xf32>
    %80 = arith.mulf %75, %78 : vector<8x32xf32>
    %81 = arith.addf %79, %80 : vector<8x32xf32>
    %82 = math.tanh %81 : vector<8x32xf32>
    %83 = arith.mulf %77, %82 : vector<8x32xf32>
    %84 = arith.truncf %83 : vector<8x32xf32> to vector<8x32xbf16>
    %cst_17 = arith.constant dense<0.000000e+00> : vector<8x256xf32>
    %85 = tpu.matmul %84, %16, %cst_17 {dimension_numbers = #tpu.dot_dimension_numbers<[1], [0], [0], [1], [0, 0, 1, 1], [], []>} : vector<8x32xbf16>, vector<32x256xbf16>, vector<8x256xf32> -> vector<8x256xf32>
    %86 = vector.extract_strided_slice %85 {offsets = [0, 128], sizes = [8, 128], strides = [1, 1]} : vector<8x256xf32> to vector<8x128xf32>
    %87 = arith.addf %86, %20 : vector<8x128xf32>
    %88 = arith.truncf %64 : vector<8x32xf32> to vector<8x32xbf16>
    %cst_18 = arith.constant dense<0.000000e+00> : vector<8x128xf32>
    %89 = tpu.matmul %88, %17, %cst_18 {dimension_numbers = #tpu.dot_dimension_numbers<[1], [0], [0], [1], [0, 0, 1, 1], [], []>} : vector<8x32xbf16>, vector<32x128xbf16>, vector<8x128xf32> -> vector<8x128xf32>
    %90 = arith.addf %87, %89 : vector<8x128xf32>
    %91 = arith.negf %90 : vector<8x128xf32>
    %92 = math.exp %91 : vector<8x128xf32>
    %cst_19 = arith.constant 1.000000e+00 : f32
    %93 = vector.broadcast %cst_19 : f32 to vector<8x128xf32>
    %94 = arith.addf %93, %92 : vector<8x128xf32>
    %95 = arith.divf %93, %94 : vector<8x128xf32>
    %96 = math.tanh %90 : vector<8x128xf32>
    %97 = arith.select %2, %96, %95 : vector<8x128xi1>, vector<8x128xf32>
    %98 = vector.extract_strided_slice %97 {offsets = [0, 0], sizes = [8, 32], strides = [1, 1]} : vector<8x128xf32> to vector<8x32xf32>
    %99 = vector.extract_strided_slice %97 {offsets = [0, 32], sizes = [8, 32], strides = [1, 1]} : vector<8x128xf32> to vector<8x32xf32>
    %100 = vector.extract_strided_slice %97 {offsets = [0, 64], sizes = [8, 32], strides = [1, 1]} : vector<8x128xf32> to vector<8x32xf32>
    %101 = vector.extract_strided_slice %97 {offsets = [0, 96], sizes = [8, 32], strides = [1, 1]} : vector<8x128xf32> to vector<8x32xf32>
    %102 = arith.mulf %99, %62 : vector<8x32xf32>
    %103 = arith.mulf %98, %101 : vector<8x32xf32>
    %104 = arith.addf %102, %103 : vector<8x32xf32>
    %105 = math.tanh %104 : vector<8x32xf32>
    %106 = arith.mulf %100, %105 : vector<8x32xf32>
    %107 = vector.extract_strided_slice %15 {offsets = [16, 0], sizes = [8, 128], strides = [1, 1]} : vector<64x128xf32> to vector<8x128xf32>
    %108 = vector.extract_strided_slice %85 {offsets = [0, 0], sizes = [8, 128], strides = [1, 1]} : vector<8x256xf32> to vector<8x128xf32>
    %109 = arith.addf %107, %108 : vector<8x128xf32>
    %110 = arith.negf %109 : vector<8x128xf32>
    %111 = math.exp %110 : vector<8x128xf32>
    %cst_20 = arith.constant 1.000000e+00 : f32
    %112 = vector.broadcast %cst_20 : f32 to vector<8x128xf32>
    %113 = arith.addf %112, %111 : vector<8x128xf32>
    %114 = arith.divf %112, %113 : vector<8x128xf32>
    %115 = math.tanh %109 : vector<8x128xf32>
    %116 = arith.select %2, %115, %114 : vector<8x128xi1>, vector<8x128xf32>
    %117 = vector.extract_strided_slice %116 {offsets = [0, 0], sizes = [8, 32], strides = [1, 1]} : vector<8x128xf32> to vector<8x32xf32>
    %118 = vector.extract_strided_slice %116 {offsets = [0, 32], sizes = [8, 32], strides = [1, 1]} : vector<8x128xf32> to vector<8x32xf32>
    %119 = vector.extract_strided_slice %116 {offsets = [0, 64], sizes = [8, 32], strides = [1, 1]} : vector<8x128xf32> to vector<8x32xf32>
    %120 = vector.extract_strided_slice %116 {offsets = [0, 96], sizes = [8, 32], strides = [1, 1]} : vector<8x128xf32> to vector<8x32xf32>
    %121 = arith.mulf %118, %81 : vector<8x32xf32>
    %122 = arith.mulf %117, %120 : vector<8x32xf32>
    %123 = arith.addf %121, %122 : vector<8x32xf32>
    %124 = math.tanh %123 : vector<8x32xf32>
    %125 = arith.mulf %119, %124 : vector<8x32xf32>
    %126 = arith.truncf %125 : vector<8x32xf32> to vector<8x32xbf16>
    %cst_21 = arith.constant dense<0.000000e+00> : vector<8x256xf32>
    %127 = tpu.matmul %126, %16, %cst_21 {dimension_numbers = #tpu.dot_dimension_numbers<[1], [0], [0], [1], [0, 0, 1, 1], [], []>} : vector<8x32xbf16>, vector<32x256xbf16>, vector<8x256xf32> -> vector<8x256xf32>
    %128 = vector.extract_strided_slice %127 {offsets = [0, 128], sizes = [8, 128], strides = [1, 1]} : vector<8x256xf32> to vector<8x128xf32>
    %129 = arith.addf %128, %20 : vector<8x128xf32>
    %130 = arith.truncf %106 : vector<8x32xf32> to vector<8x32xbf16>
    %cst_22 = arith.constant dense<0.000000e+00> : vector<8x128xf32>
    %131 = tpu.matmul %130, %17, %cst_22 {dimension_numbers = #tpu.dot_dimension_numbers<[1], [0], [0], [1], [0, 0, 1, 1], [], []>} : vector<8x32xbf16>, vector<32x128xbf16>, vector<8x128xf32> -> vector<8x128xf32>
    %132 = arith.addf %129, %131 : vector<8x128xf32>
    %133 = arith.negf %132 : vector<8x128xf32>
    %134 = math.exp %133 : vector<8x128xf32>
    %cst_23 = arith.constant 1.000000e+00 : f32
    %135 = vector.broadcast %cst_23 : f32 to vector<8x128xf32>
    %136 = arith.addf %135, %134 : vector<8x128xf32>
    %137 = arith.divf %135, %136 : vector<8x128xf32>
    %138 = math.tanh %132 : vector<8x128xf32>
    %139 = arith.select %2, %138, %137 : vector<8x128xi1>, vector<8x128xf32>
    %140 = vector.extract_strided_slice %139 {offsets = [0, 0], sizes = [8, 32], strides = [1, 1]} : vector<8x128xf32> to vector<8x32xf32>
    %141 = vector.extract_strided_slice %139 {offsets = [0, 32], sizes = [8, 32], strides = [1, 1]} : vector<8x128xf32> to vector<8x32xf32>
    %142 = vector.extract_strided_slice %139 {offsets = [0, 64], sizes = [8, 32], strides = [1, 1]} : vector<8x128xf32> to vector<8x32xf32>
    %143 = vector.extract_strided_slice %139 {offsets = [0, 96], sizes = [8, 32], strides = [1, 1]} : vector<8x128xf32> to vector<8x32xf32>
    %144 = arith.mulf %141, %104 : vector<8x32xf32>
    %145 = arith.mulf %140, %143 : vector<8x32xf32>
    %146 = arith.addf %144, %145 : vector<8x32xf32>
    %147 = math.tanh %146 : vector<8x32xf32>
    %148 = arith.mulf %142, %147 : vector<8x32xf32>
    %149 = vector.extract_strided_slice %15 {offsets = [24, 0], sizes = [8, 128], strides = [1, 1]} : vector<64x128xf32> to vector<8x128xf32>
    %150 = vector.extract_strided_slice %127 {offsets = [0, 0], sizes = [8, 128], strides = [1, 1]} : vector<8x256xf32> to vector<8x128xf32>
    %151 = arith.addf %149, %150 : vector<8x128xf32>
    %152 = arith.negf %151 : vector<8x128xf32>
    %153 = math.exp %152 : vector<8x128xf32>
    %cst_24 = arith.constant 1.000000e+00 : f32
    %154 = vector.broadcast %cst_24 : f32 to vector<8x128xf32>
    %155 = arith.addf %154, %153 : vector<8x128xf32>
    %156 = arith.divf %154, %155 : vector<8x128xf32>
    %157 = math.tanh %151 : vector<8x128xf32>
    %158 = arith.select %2, %157, %156 : vector<8x128xi1>, vector<8x128xf32>
    %159 = vector.extract_strided_slice %158 {offsets = [0, 0], sizes = [8, 32], strides = [1, 1]} : vector<8x128xf32> to vector<8x32xf32>
    %160 = vector.extract_strided_slice %158 {offsets = [0, 32], sizes = [8, 32], strides = [1, 1]} : vector<8x128xf32> to vector<8x32xf32>
    %161 = vector.extract_strided_slice %158 {offsets = [0, 64], sizes = [8, 32], strides = [1, 1]} : vector<8x128xf32> to vector<8x32xf32>
    %162 = vector.extract_strided_slice %158 {offsets = [0, 96], sizes = [8, 32], strides = [1, 1]} : vector<8x128xf32> to vector<8x32xf32>
    %163 = arith.mulf %160, %123 : vector<8x32xf32>
    %164 = arith.mulf %159, %162 : vector<8x32xf32>
    %165 = arith.addf %163, %164 : vector<8x32xf32>
    %166 = math.tanh %165 : vector<8x32xf32>
    %167 = arith.mulf %161, %166 : vector<8x32xf32>
    %168 = arith.truncf %167 : vector<8x32xf32> to vector<8x32xbf16>
    %cst_25 = arith.constant dense<0.000000e+00> : vector<8x256xf32>
    %169 = tpu.matmul %168, %16, %cst_25 {dimension_numbers = #tpu.dot_dimension_numbers<[1], [0], [0], [1], [0, 0, 1, 1], [], []>} : vector<8x32xbf16>, vector<32x256xbf16>, vector<8x256xf32> -> vector<8x256xf32>
    %170 = vector.extract_strided_slice %169 {offsets = [0, 128], sizes = [8, 128], strides = [1, 1]} : vector<8x256xf32> to vector<8x128xf32>
    %171 = arith.addf %170, %20 : vector<8x128xf32>
    %172 = arith.truncf %148 : vector<8x32xf32> to vector<8x32xbf16>
    %cst_26 = arith.constant dense<0.000000e+00> : vector<8x128xf32>
    %173 = tpu.matmul %172, %17, %cst_26 {dimension_numbers = #tpu.dot_dimension_numbers<[1], [0], [0], [1], [0, 0, 1, 1], [], []>} : vector<8x32xbf16>, vector<32x128xbf16>, vector<8x128xf32> -> vector<8x128xf32>
    %174 = arith.addf %171, %173 : vector<8x128xf32>
    %175 = arith.negf %174 : vector<8x128xf32>
    %176 = math.exp %175 : vector<8x128xf32>
    %cst_27 = arith.constant 1.000000e+00 : f32
    %177 = vector.broadcast %cst_27 : f32 to vector<8x128xf32>
    %178 = arith.addf %177, %176 : vector<8x128xf32>
    %179 = arith.divf %177, %178 : vector<8x128xf32>
    %180 = math.tanh %174 : vector<8x128xf32>
    %181 = arith.select %2, %180, %179 : vector<8x128xi1>, vector<8x128xf32>
    %182 = vector.extract_strided_slice %181 {offsets = [0, 0], sizes = [8, 32], strides = [1, 1]} : vector<8x128xf32> to vector<8x32xf32>
    %183 = vector.extract_strided_slice %181 {offsets = [0, 32], sizes = [8, 32], strides = [1, 1]} : vector<8x128xf32> to vector<8x32xf32>
    %184 = vector.extract_strided_slice %181 {offsets = [0, 64], sizes = [8, 32], strides = [1, 1]} : vector<8x128xf32> to vector<8x32xf32>
    %185 = vector.extract_strided_slice %181 {offsets = [0, 96], sizes = [8, 32], strides = [1, 1]} : vector<8x128xf32> to vector<8x32xf32>
    %186 = arith.mulf %183, %146 : vector<8x32xf32>
    %187 = arith.mulf %182, %185 : vector<8x32xf32>
    %188 = arith.addf %186, %187 : vector<8x32xf32>
    %189 = math.tanh %188 : vector<8x32xf32>
    %190 = arith.mulf %184, %189 : vector<8x32xf32>
    %191 = vector.extract_strided_slice %15 {offsets = [32, 0], sizes = [8, 128], strides = [1, 1]} : vector<64x128xf32> to vector<8x128xf32>
    %192 = vector.extract_strided_slice %169 {offsets = [0, 0], sizes = [8, 128], strides = [1, 1]} : vector<8x256xf32> to vector<8x128xf32>
    %193 = arith.addf %191, %192 : vector<8x128xf32>
    %194 = arith.negf %193 : vector<8x128xf32>
    %195 = math.exp %194 : vector<8x128xf32>
    %cst_28 = arith.constant 1.000000e+00 : f32
    %196 = vector.broadcast %cst_28 : f32 to vector<8x128xf32>
    %197 = arith.addf %196, %195 : vector<8x128xf32>
    %198 = arith.divf %196, %197 : vector<8x128xf32>
    %199 = math.tanh %193 : vector<8x128xf32>
    %200 = arith.select %2, %199, %198 : vector<8x128xi1>, vector<8x128xf32>
    %201 = vector.extract_strided_slice %200 {offsets = [0, 0], sizes = [8, 32], strides = [1, 1]} : vector<8x128xf32> to vector<8x32xf32>
    %202 = vector.extract_strided_slice %200 {offsets = [0, 32], sizes = [8, 32], strides = [1, 1]} : vector<8x128xf32> to vector<8x32xf32>
    %203 = vector.extract_strided_slice %200 {offsets = [0, 64], sizes = [8, 32], strides = [1, 1]} : vector<8x128xf32> to vector<8x32xf32>
    %204 = vector.extract_strided_slice %200 {offsets = [0, 96], sizes = [8, 32], strides = [1, 1]} : vector<8x128xf32> to vector<8x32xf32>
    %205 = arith.mulf %202, %165 : vector<8x32xf32>
    %206 = arith.mulf %201, %204 : vector<8x32xf32>
    %207 = arith.addf %205, %206 : vector<8x32xf32>
    %208 = math.tanh %207 : vector<8x32xf32>
    %209 = arith.mulf %203, %208 : vector<8x32xf32>
    %210 = arith.truncf %209 : vector<8x32xf32> to vector<8x32xbf16>
    %cst_29 = arith.constant dense<0.000000e+00> : vector<8x256xf32>
    %211 = tpu.matmul %210, %16, %cst_29 {dimension_numbers = #tpu.dot_dimension_numbers<[1], [0], [0], [1], [0, 0, 1, 1], [], []>} : vector<8x32xbf16>, vector<32x256xbf16>, vector<8x256xf32> -> vector<8x256xf32>
    %212 = vector.extract_strided_slice %211 {offsets = [0, 128], sizes = [8, 128], strides = [1, 1]} : vector<8x256xf32> to vector<8x128xf32>
    %213 = arith.addf %212, %20 : vector<8x128xf32>
    %214 = arith.truncf %190 : vector<8x32xf32> to vector<8x32xbf16>
    %cst_30 = arith.constant dense<0.000000e+00> : vector<8x128xf32>
    %215 = tpu.matmul %214, %17, %cst_30 {dimension_numbers = #tpu.dot_dimension_numbers<[1], [0], [0], [1], [0, 0, 1, 1], [], []>} : vector<8x32xbf16>, vector<32x128xbf16>, vector<8x128xf32> -> vector<8x128xf32>
    %216 = arith.addf %213, %215 : vector<8x128xf32>
    %217 = arith.negf %216 : vector<8x128xf32>
    %218 = math.exp %217 : vector<8x128xf32>
    %cst_31 = arith.constant 1.000000e+00 : f32
    %219 = vector.broadcast %cst_31 : f32 to vector<8x128xf32>
    %220 = arith.addf %219, %218 : vector<8x128xf32>
    %221 = arith.divf %219, %220 : vector<8x128xf32>
    %222 = math.tanh %216 : vector<8x128xf32>
    %223 = arith.select %2, %222, %221 : vector<8x128xi1>, vector<8x128xf32>
    %224 = vector.extract_strided_slice %223 {offsets = [0, 0], sizes = [8, 32], strides = [1, 1]} : vector<8x128xf32> to vector<8x32xf32>
    %225 = vector.extract_strided_slice %223 {offsets = [0, 32], sizes = [8, 32], strides = [1, 1]} : vector<8x128xf32> to vector<8x32xf32>
    %226 = vector.extract_strided_slice %223 {offsets = [0, 64], sizes = [8, 32], strides = [1, 1]} : vector<8x128xf32> to vector<8x32xf32>
    %227 = vector.extract_strided_slice %223 {offsets = [0, 96], sizes = [8, 32], strides = [1, 1]} : vector<8x128xf32> to vector<8x32xf32>
    %228 = arith.mulf %225, %188 : vector<8x32xf32>
    %229 = arith.mulf %224, %227 : vector<8x32xf32>
    %230 = arith.addf %228, %229 : vector<8x32xf32>
    %231 = math.tanh %230 : vector<8x32xf32>
    %232 = arith.mulf %226, %231 : vector<8x32xf32>
    %233 = vector.extract_strided_slice %15 {offsets = [40, 0], sizes = [8, 128], strides = [1, 1]} : vector<64x128xf32> to vector<8x128xf32>
    %234 = vector.extract_strided_slice %211 {offsets = [0, 0], sizes = [8, 128], strides = [1, 1]} : vector<8x256xf32> to vector<8x128xf32>
    %235 = arith.addf %233, %234 : vector<8x128xf32>
    %236 = arith.negf %235 : vector<8x128xf32>
    %237 = math.exp %236 : vector<8x128xf32>
    %cst_32 = arith.constant 1.000000e+00 : f32
    %238 = vector.broadcast %cst_32 : f32 to vector<8x128xf32>
    %239 = arith.addf %238, %237 : vector<8x128xf32>
    %240 = arith.divf %238, %239 : vector<8x128xf32>
    %241 = math.tanh %235 : vector<8x128xf32>
    %242 = arith.select %2, %241, %240 : vector<8x128xi1>, vector<8x128xf32>
    %243 = vector.extract_strided_slice %242 {offsets = [0, 0], sizes = [8, 32], strides = [1, 1]} : vector<8x128xf32> to vector<8x32xf32>
    %244 = vector.extract_strided_slice %242 {offsets = [0, 32], sizes = [8, 32], strides = [1, 1]} : vector<8x128xf32> to vector<8x32xf32>
    %245 = vector.extract_strided_slice %242 {offsets = [0, 64], sizes = [8, 32], strides = [1, 1]} : vector<8x128xf32> to vector<8x32xf32>
    %246 = vector.extract_strided_slice %242 {offsets = [0, 96], sizes = [8, 32], strides = [1, 1]} : vector<8x128xf32> to vector<8x32xf32>
    %247 = arith.mulf %244, %207 : vector<8x32xf32>
    %248 = arith.mulf %243, %246 : vector<8x32xf32>
    %249 = arith.addf %247, %248 : vector<8x32xf32>
    %250 = math.tanh %249 : vector<8x32xf32>
    %251 = arith.mulf %245, %250 : vector<8x32xf32>
    %252 = arith.truncf %251 : vector<8x32xf32> to vector<8x32xbf16>
    %cst_33 = arith.constant dense<0.000000e+00> : vector<8x256xf32>
    %253 = tpu.matmul %252, %16, %cst_33 {dimension_numbers = #tpu.dot_dimension_numbers<[1], [0], [0], [1], [0, 0, 1, 1], [], []>} : vector<8x32xbf16>, vector<32x256xbf16>, vector<8x256xf32> -> vector<8x256xf32>
    %254 = vector.extract_strided_slice %253 {offsets = [0, 128], sizes = [8, 128], strides = [1, 1]} : vector<8x256xf32> to vector<8x128xf32>
    %255 = arith.addf %254, %20 : vector<8x128xf32>
    %256 = arith.truncf %232 : vector<8x32xf32> to vector<8x32xbf16>
    %cst_34 = arith.constant dense<0.000000e+00> : vector<8x128xf32>
    %257 = tpu.matmul %256, %17, %cst_34 {dimension_numbers = #tpu.dot_dimension_numbers<[1], [0], [0], [1], [0, 0, 1, 1], [], []>} : vector<8x32xbf16>, vector<32x128xbf16>, vector<8x128xf32> -> vector<8x128xf32>
    %258 = arith.addf %255, %257 : vector<8x128xf32>
    %259 = arith.negf %258 : vector<8x128xf32>
    %260 = math.exp %259 : vector<8x128xf32>
    %cst_35 = arith.constant 1.000000e+00 : f32
    %261 = vector.broadcast %cst_35 : f32 to vector<8x128xf32>
    %262 = arith.addf %261, %260 : vector<8x128xf32>
    %263 = arith.divf %261, %262 : vector<8x128xf32>
    %264 = math.tanh %258 : vector<8x128xf32>
    %265 = arith.select %2, %264, %263 : vector<8x128xi1>, vector<8x128xf32>
    %266 = vector.extract_strided_slice %265 {offsets = [0, 0], sizes = [8, 32], strides = [1, 1]} : vector<8x128xf32> to vector<8x32xf32>
    %267 = vector.extract_strided_slice %265 {offsets = [0, 32], sizes = [8, 32], strides = [1, 1]} : vector<8x128xf32> to vector<8x32xf32>
    %268 = vector.extract_strided_slice %265 {offsets = [0, 64], sizes = [8, 32], strides = [1, 1]} : vector<8x128xf32> to vector<8x32xf32>
    %269 = vector.extract_strided_slice %265 {offsets = [0, 96], sizes = [8, 32], strides = [1, 1]} : vector<8x128xf32> to vector<8x32xf32>
    %270 = arith.mulf %267, %230 : vector<8x32xf32>
    %271 = arith.mulf %266, %269 : vector<8x32xf32>
    %272 = arith.addf %270, %271 : vector<8x32xf32>
    %273 = math.tanh %272 : vector<8x32xf32>
    %274 = arith.mulf %268, %273 : vector<8x32xf32>
    %275 = vector.extract_strided_slice %15 {offsets = [48, 0], sizes = [8, 128], strides = [1, 1]} : vector<64x128xf32> to vector<8x128xf32>
    %276 = vector.extract_strided_slice %253 {offsets = [0, 0], sizes = [8, 128], strides = [1, 1]} : vector<8x256xf32> to vector<8x128xf32>
    %277 = arith.addf %275, %276 : vector<8x128xf32>
    %278 = arith.negf %277 : vector<8x128xf32>
    %279 = math.exp %278 : vector<8x128xf32>
    %cst_36 = arith.constant 1.000000e+00 : f32
    %280 = vector.broadcast %cst_36 : f32 to vector<8x128xf32>
    %281 = arith.addf %280, %279 : vector<8x128xf32>
    %282 = arith.divf %280, %281 : vector<8x128xf32>
    %283 = math.tanh %277 : vector<8x128xf32>
    %284 = arith.select %2, %283, %282 : vector<8x128xi1>, vector<8x128xf32>
    %285 = vector.extract_strided_slice %284 {offsets = [0, 0], sizes = [8, 32], strides = [1, 1]} : vector<8x128xf32> to vector<8x32xf32>
    %286 = vector.extract_strided_slice %284 {offsets = [0, 32], sizes = [8, 32], strides = [1, 1]} : vector<8x128xf32> to vector<8x32xf32>
    %287 = vector.extract_strided_slice %284 {offsets = [0, 64], sizes = [8, 32], strides = [1, 1]} : vector<8x128xf32> to vector<8x32xf32>
    %288 = vector.extract_strided_slice %284 {offsets = [0, 96], sizes = [8, 32], strides = [1, 1]} : vector<8x128xf32> to vector<8x32xf32>
    %289 = arith.mulf %286, %249 : vector<8x32xf32>
    %290 = arith.mulf %285, %288 : vector<8x32xf32>
    %291 = arith.addf %289, %290 : vector<8x32xf32>
    %292 = math.tanh %291 : vector<8x32xf32>
    %293 = arith.mulf %287, %292 : vector<8x32xf32>
    %294 = arith.truncf %293 : vector<8x32xf32> to vector<8x32xbf16>
    %cst_37 = arith.constant dense<0.000000e+00> : vector<8x256xf32>
    %295 = tpu.matmul %294, %16, %cst_37 {dimension_numbers = #tpu.dot_dimension_numbers<[1], [0], [0], [1], [0, 0, 1, 1], [], []>} : vector<8x32xbf16>, vector<32x256xbf16>, vector<8x256xf32> -> vector<8x256xf32>
    %296 = vector.extract_strided_slice %295 {offsets = [0, 128], sizes = [8, 128], strides = [1, 1]} : vector<8x256xf32> to vector<8x128xf32>
    %297 = arith.addf %296, %20 : vector<8x128xf32>
    %298 = arith.truncf %274 : vector<8x32xf32> to vector<8x32xbf16>
    %cst_38 = arith.constant dense<0.000000e+00> : vector<8x128xf32>
    %299 = tpu.matmul %298, %17, %cst_38 {dimension_numbers = #tpu.dot_dimension_numbers<[1], [0], [0], [1], [0, 0, 1, 1], [], []>} : vector<8x32xbf16>, vector<32x128xbf16>, vector<8x128xf32> -> vector<8x128xf32>
    %300 = arith.addf %297, %299 : vector<8x128xf32>
    %301 = arith.negf %300 : vector<8x128xf32>
    %302 = math.exp %301 : vector<8x128xf32>
    %cst_39 = arith.constant 1.000000e+00 : f32
    %303 = vector.broadcast %cst_39 : f32 to vector<8x128xf32>
    %304 = arith.addf %303, %302 : vector<8x128xf32>
    %305 = arith.divf %303, %304 : vector<8x128xf32>
    %306 = math.tanh %300 : vector<8x128xf32>
    %307 = arith.select %2, %306, %305 : vector<8x128xi1>, vector<8x128xf32>
    %308 = vector.extract_strided_slice %307 {offsets = [0, 0], sizes = [8, 32], strides = [1, 1]} : vector<8x128xf32> to vector<8x32xf32>
    %309 = vector.extract_strided_slice %307 {offsets = [0, 32], sizes = [8, 32], strides = [1, 1]} : vector<8x128xf32> to vector<8x32xf32>
    %310 = vector.extract_strided_slice %307 {offsets = [0, 64], sizes = [8, 32], strides = [1, 1]} : vector<8x128xf32> to vector<8x32xf32>
    %311 = vector.extract_strided_slice %307 {offsets = [0, 96], sizes = [8, 32], strides = [1, 1]} : vector<8x128xf32> to vector<8x32xf32>
    %312 = arith.mulf %309, %272 : vector<8x32xf32>
    %313 = arith.mulf %308, %311 : vector<8x32xf32>
    %314 = arith.addf %312, %313 : vector<8x32xf32>
    %315 = math.tanh %314 : vector<8x32xf32>
    %316 = arith.mulf %310, %315 : vector<8x32xf32>
    %317 = vector.extract_strided_slice %15 {offsets = [56, 0], sizes = [8, 128], strides = [1, 1]} : vector<64x128xf32> to vector<8x128xf32>
    %318 = vector.extract_strided_slice %295 {offsets = [0, 0], sizes = [8, 128], strides = [1, 1]} : vector<8x256xf32> to vector<8x128xf32>
    %319 = arith.addf %317, %318 : vector<8x128xf32>
    %320 = arith.negf %319 : vector<8x128xf32>
    %321 = math.exp %320 : vector<8x128xf32>
    %cst_40 = arith.constant 1.000000e+00 : f32
    %322 = vector.broadcast %cst_40 : f32 to vector<8x128xf32>
    %323 = arith.addf %322, %321 : vector<8x128xf32>
    %324 = arith.divf %322, %323 : vector<8x128xf32>
    %325 = math.tanh %319 : vector<8x128xf32>
    %326 = arith.select %2, %325, %324 : vector<8x128xi1>, vector<8x128xf32>
    %327 = vector.extract_strided_slice %326 {offsets = [0, 0], sizes = [8, 32], strides = [1, 1]} : vector<8x128xf32> to vector<8x32xf32>
    %328 = vector.extract_strided_slice %326 {offsets = [0, 32], sizes = [8, 32], strides = [1, 1]} : vector<8x128xf32> to vector<8x32xf32>
    %329 = vector.extract_strided_slice %326 {offsets = [0, 64], sizes = [8, 32], strides = [1, 1]} : vector<8x128xf32> to vector<8x32xf32>
    %330 = vector.extract_strided_slice %326 {offsets = [0, 96], sizes = [8, 32], strides = [1, 1]} : vector<8x128xf32> to vector<8x32xf32>
    %331 = arith.mulf %328, %291 : vector<8x32xf32>
    %332 = arith.mulf %327, %330 : vector<8x32xf32>
    %333 = arith.addf %331, %332 : vector<8x32xf32>
    %334 = math.tanh %333 : vector<8x32xf32>
    %335 = arith.mulf %329, %334 : vector<8x32xf32>
    %336 = arith.truncf %335 : vector<8x32xf32> to vector<8x32xbf16>
    %cst_41 = arith.constant dense<0.000000e+00> : vector<8x256xf32>
    %337 = tpu.matmul %336, %16, %cst_41 {dimension_numbers = #tpu.dot_dimension_numbers<[1], [0], [0], [1], [0, 0, 1, 1], [], []>} : vector<8x32xbf16>, vector<32x256xbf16>, vector<8x256xf32> -> vector<8x256xf32>
    %338 = vector.extract_strided_slice %337 {offsets = [0, 128], sizes = [8, 128], strides = [1, 1]} : vector<8x256xf32> to vector<8x128xf32>
    %339 = arith.addf %338, %20 : vector<8x128xf32>
    %340 = arith.truncf %316 : vector<8x32xf32> to vector<8x32xbf16>
    %cst_42 = arith.constant dense<0.000000e+00> : vector<8x128xf32>
    %341 = tpu.matmul %340, %17, %cst_42 {dimension_numbers = #tpu.dot_dimension_numbers<[1], [0], [0], [1], [0, 0, 1, 1], [], []>} : vector<8x32xbf16>, vector<32x128xbf16>, vector<8x128xf32> -> vector<8x128xf32>
    %342 = arith.addf %339, %341 : vector<8x128xf32>
    %343 = arith.negf %342 : vector<8x128xf32>
    %344 = math.exp %343 : vector<8x128xf32>
    %cst_43 = arith.constant 1.000000e+00 : f32
    %345 = vector.broadcast %cst_43 : f32 to vector<8x128xf32>
    %346 = arith.addf %345, %344 : vector<8x128xf32>
    %347 = arith.divf %345, %346 : vector<8x128xf32>
    %348 = math.tanh %342 : vector<8x128xf32>
    %349 = arith.select %2, %348, %347 : vector<8x128xi1>, vector<8x128xf32>
    %350 = vector.extract_strided_slice %349 {offsets = [0, 0], sizes = [8, 32], strides = [1, 1]} : vector<8x128xf32> to vector<8x32xf32>
    %351 = vector.extract_strided_slice %349 {offsets = [0, 32], sizes = [8, 32], strides = [1, 1]} : vector<8x128xf32> to vector<8x32xf32>
    %352 = vector.extract_strided_slice %349 {offsets = [0, 64], sizes = [8, 32], strides = [1, 1]} : vector<8x128xf32> to vector<8x32xf32>
    %353 = vector.extract_strided_slice %349 {offsets = [0, 96], sizes = [8, 32], strides = [1, 1]} : vector<8x128xf32> to vector<8x32xf32>
    %354 = arith.mulf %351, %314 : vector<8x32xf32>
    %355 = arith.mulf %350, %353 : vector<8x32xf32>
    %356 = arith.addf %354, %355 : vector<8x32xf32>
    %357 = math.tanh %356 : vector<8x32xf32>
    %358 = arith.mulf %352, %357 : vector<8x32xf32>
    %c0_44 = arith.constant 0 : index
    %c0_45 = arith.constant 0 : index
    %359 = vector.load %arg1[%c0_44, %c0_45] : memref<64x1xf32, #tpu.memory_space<vmem>>, vector<64x1xf32>
    %cst_46 = arith.constant 5.000000e-01 : f32
    %360 = vector.broadcast %cst_46 : f32 to vector<64x1xf32>
    %361 = arith.cmpf ogt, %359, %360 : vector<64x1xf32>
    %c1_47 = arith.constant 1 : index
    %c0_48 = arith.constant 0 : index
    %362 = vector.load %arg6[%c1_47, %c0_48] : memref<2x128xf32, #tpu.memory_space<vmem>>, vector<1x128xf32>
    %c0_49 = arith.constant 0 : index
    %c0_50 = arith.constant 0 : index
    %363 = vector.load %arg6[%c0_49, %c0_50] : memref<2x128xf32, #tpu.memory_space<vmem>>, vector<1x128xf32>
    %364 = vector.shape_cast %361 : vector<64x1xi1> to vector<64x1xi1>
    %365 = vector.broadcast %364 : vector<64x1xi1> to vector<64x128xi1>
    %366 = vector.shape_cast %362 : vector<1x128xf32> to vector<1x128xf32>
    %367 = vector.broadcast %366 : vector<1x128xf32> to vector<64x128xf32>
    %368 = vector.shape_cast %363 : vector<1x128xf32> to vector<1x128xf32>
    %369 = vector.broadcast %368 : vector<1x128xf32> to vector<64x128xf32>
    %370 = arith.select %365, %367, %369 : vector<64x128xi1>, vector<64x128xf32>
    %c0_51 = arith.constant 0 : index
    %c0_52 = arith.constant 0 : index
    %371 = vector.load %arg7[%c0_51, %c0_52] : memref<32x256xbf16, #tpu.memory_space<vmem>>, vector<32x256xbf16>
    %c0_53 = arith.constant 0 : index
    %c0_54 = arith.constant 0 : index
    %372 = vector.load %arg8[%c0_53, %c0_54] : memref<32x128xbf16, #tpu.memory_space<vmem>>, vector<32x128xbf16>
    %c0_55 = arith.constant 0 : index
    %c0_56 = arith.constant 0 : index
    %373 = vector.load %arg9[%c0_55, %c0_56] : memref<1x128xf32, #tpu.memory_space<vmem>>, vector<1x128xf32>
    %374 = vector.shape_cast %373 : vector<1x128xf32> to vector<1x128xf32>
    %375 = vector.broadcast %374 : vector<1x128xf32> to vector<8x128xf32>
    %376 = arith.truncf %335 : vector<8x32xf32> to vector<8x32xbf16>
    %cst_57 = arith.constant dense<0.000000e+00> : vector<8x256xf32>
    %377 = tpu.matmul %376, %371, %cst_57 {dimension_numbers = #tpu.dot_dimension_numbers<[1], [0], [0], [1], [0, 0, 1, 1], [], []>} : vector<8x32xbf16>, vector<32x256xbf16>, vector<8x256xf32> -> vector<8x256xf32>
    %378 = vector.extract_strided_slice %370 {offsets = [0, 0], sizes = [8, 128], strides = [1, 1]} : vector<64x128xf32> to vector<8x128xf32>
    %379 = vector.extract_strided_slice %377 {offsets = [0, 0], sizes = [8, 128], strides = [1, 1]} : vector<8x256xf32> to vector<8x128xf32>
    %380 = arith.addf %378, %379 : vector<8x128xf32>
    %381 = arith.negf %380 : vector<8x128xf32>
    %382 = math.exp %381 : vector<8x128xf32>
    %cst_58 = arith.constant 1.000000e+00 : f32
    %383 = vector.broadcast %cst_58 : f32 to vector<8x128xf32>
    %384 = arith.addf %383, %382 : vector<8x128xf32>
    %385 = arith.divf %383, %384 : vector<8x128xf32>
    %386 = math.tanh %380 : vector<8x128xf32>
    %387 = arith.select %2, %386, %385 : vector<8x128xi1>, vector<8x128xf32>
    %388 = vector.extract_strided_slice %387 {offsets = [0, 0], sizes = [8, 32], strides = [1, 1]} : vector<8x128xf32> to vector<8x32xf32>
    %389 = vector.extract_strided_slice %387 {offsets = [0, 32], sizes = [8, 32], strides = [1, 1]} : vector<8x128xf32> to vector<8x32xf32>
    %390 = vector.extract_strided_slice %387 {offsets = [0, 64], sizes = [8, 32], strides = [1, 1]} : vector<8x128xf32> to vector<8x32xf32>
    %391 = vector.extract_strided_slice %387 {offsets = [0, 96], sizes = [8, 32], strides = [1, 1]} : vector<8x128xf32> to vector<8x32xf32>
    %392 = arith.mulf %389, %333 : vector<8x32xf32>
    %393 = arith.mulf %388, %391 : vector<8x32xf32>
    %394 = arith.addf %392, %393 : vector<8x32xf32>
    %395 = math.tanh %394 : vector<8x32xf32>
    %396 = arith.mulf %390, %395 : vector<8x32xf32>
    %397 = arith.truncf %396 : vector<8x32xf32> to vector<8x32xbf16>
    %cst_59 = arith.constant dense<0.000000e+00> : vector<8x256xf32>
    %398 = tpu.matmul %397, %371, %cst_59 {dimension_numbers = #tpu.dot_dimension_numbers<[1], [0], [0], [1], [0, 0, 1, 1], [], []>} : vector<8x32xbf16>, vector<32x256xbf16>, vector<8x256xf32> -> vector<8x256xf32>
    %399 = vector.extract_strided_slice %398 {offsets = [0, 128], sizes = [8, 128], strides = [1, 1]} : vector<8x256xf32> to vector<8x128xf32>
    %400 = arith.addf %399, %375 : vector<8x128xf32>
    %401 = arith.truncf %358 : vector<8x32xf32> to vector<8x32xbf16>
    %cst_60 = arith.constant dense<0.000000e+00> : vector<8x128xf32>
    %402 = tpu.matmul %401, %372, %cst_60 {dimension_numbers = #tpu.dot_dimension_numbers<[1], [0], [0], [1], [0, 0, 1, 1], [], []>} : vector<8x32xbf16>, vector<32x128xbf16>, vector<8x128xf32> -> vector<8x128xf32>
    %403 = arith.addf %400, %402 : vector<8x128xf32>
    %404 = arith.negf %403 : vector<8x128xf32>
    %405 = math.exp %404 : vector<8x128xf32>
    %cst_61 = arith.constant 1.000000e+00 : f32
    %406 = vector.broadcast %cst_61 : f32 to vector<8x128xf32>
    %407 = arith.addf %406, %405 : vector<8x128xf32>
    %408 = arith.divf %406, %407 : vector<8x128xf32>
    %409 = math.tanh %403 : vector<8x128xf32>
    %410 = arith.select %2, %409, %408 : vector<8x128xi1>, vector<8x128xf32>
    %411 = vector.extract_strided_slice %410 {offsets = [0, 0], sizes = [8, 32], strides = [1, 1]} : vector<8x128xf32> to vector<8x32xf32>
    %412 = vector.extract_strided_slice %410 {offsets = [0, 32], sizes = [8, 32], strides = [1, 1]} : vector<8x128xf32> to vector<8x32xf32>
    %413 = vector.extract_strided_slice %410 {offsets = [0, 64], sizes = [8, 32], strides = [1, 1]} : vector<8x128xf32> to vector<8x32xf32>
    %414 = vector.extract_strided_slice %410 {offsets = [0, 96], sizes = [8, 32], strides = [1, 1]} : vector<8x128xf32> to vector<8x32xf32>
    %415 = arith.mulf %412, %356 : vector<8x32xf32>
    %416 = arith.mulf %411, %414 : vector<8x32xf32>
    %417 = arith.addf %415, %416 : vector<8x32xf32>
    %418 = math.tanh %417 : vector<8x32xf32>
    %419 = arith.mulf %413, %418 : vector<8x32xf32>
    %420 = vector.extract_strided_slice %370 {offsets = [8, 0], sizes = [8, 128], strides = [1, 1]} : vector<64x128xf32> to vector<8x128xf32>
    %421 = vector.extract_strided_slice %398 {offsets = [0, 0], sizes = [8, 128], strides = [1, 1]} : vector<8x256xf32> to vector<8x128xf32>
    %422 = arith.addf %420, %421 : vector<8x128xf32>
    %423 = arith.negf %422 : vector<8x128xf32>
    %424 = math.exp %423 : vector<8x128xf32>
    %cst_62 = arith.constant 1.000000e+00 : f32
    %425 = vector.broadcast %cst_62 : f32 to vector<8x128xf32>
    %426 = arith.addf %425, %424 : vector<8x128xf32>
    %427 = arith.divf %425, %426 : vector<8x128xf32>
    %428 = math.tanh %422 : vector<8x128xf32>
    %429 = arith.select %2, %428, %427 : vector<8x128xi1>, vector<8x128xf32>
    %430 = vector.extract_strided_slice %429 {offsets = [0, 0], sizes = [8, 32], strides = [1, 1]} : vector<8x128xf32> to vector<8x32xf32>
    %431 = vector.extract_strided_slice %429 {offsets = [0, 32], sizes = [8, 32], strides = [1, 1]} : vector<8x128xf32> to vector<8x32xf32>
    %432 = vector.extract_strided_slice %429 {offsets = [0, 64], sizes = [8, 32], strides = [1, 1]} : vector<8x128xf32> to vector<8x32xf32>
    %433 = vector.extract_strided_slice %429 {offsets = [0, 96], sizes = [8, 32], strides = [1, 1]} : vector<8x128xf32> to vector<8x32xf32>
    %434 = arith.mulf %431, %394 : vector<8x32xf32>
    %435 = arith.mulf %430, %433 : vector<8x32xf32>
    %436 = arith.addf %434, %435 : vector<8x32xf32>
    %437 = math.tanh %436 : vector<8x32xf32>
    %438 = arith.mulf %432, %437 : vector<8x32xf32>
    %439 = arith.truncf %438 : vector<8x32xf32> to vector<8x32xbf16>
    %cst_63 = arith.constant dense<0.000000e+00> : vector<8x256xf32>
    %440 = tpu.matmul %439, %371, %cst_63 {dimension_numbers = #tpu.dot_dimension_numbers<[1], [0], [0], [1], [0, 0, 1, 1], [], []>} : vector<8x32xbf16>, vector<32x256xbf16>, vector<8x256xf32> -> vector<8x256xf32>
    %441 = vector.extract_strided_slice %440 {offsets = [0, 128], sizes = [8, 128], strides = [1, 1]} : vector<8x256xf32> to vector<8x128xf32>
    %442 = arith.addf %441, %375 : vector<8x128xf32>
    %443 = arith.truncf %419 : vector<8x32xf32> to vector<8x32xbf16>
    %cst_64 = arith.constant dense<0.000000e+00> : vector<8x128xf32>
    %444 = tpu.matmul %443, %372, %cst_64 {dimension_numbers = #tpu.dot_dimension_numbers<[1], [0], [0], [1], [0, 0, 1, 1], [], []>} : vector<8x32xbf16>, vector<32x128xbf16>, vector<8x128xf32> -> vector<8x128xf32>
    %445 = arith.addf %442, %444 : vector<8x128xf32>
    %446 = arith.negf %445 : vector<8x128xf32>
    %447 = math.exp %446 : vector<8x128xf32>
    %cst_65 = arith.constant 1.000000e+00 : f32
    %448 = vector.broadcast %cst_65 : f32 to vector<8x128xf32>
    %449 = arith.addf %448, %447 : vector<8x128xf32>
    %450 = arith.divf %448, %449 : vector<8x128xf32>
    %451 = math.tanh %445 : vector<8x128xf32>
    %452 = arith.select %2, %451, %450 : vector<8x128xi1>, vector<8x128xf32>
    %453 = vector.extract_strided_slice %452 {offsets = [0, 0], sizes = [8, 32], strides = [1, 1]} : vector<8x128xf32> to vector<8x32xf32>
    %454 = vector.extract_strided_slice %452 {offsets = [0, 32], sizes = [8, 32], strides = [1, 1]} : vector<8x128xf32> to vector<8x32xf32>
    %455 = vector.extract_strided_slice %452 {offsets = [0, 64], sizes = [8, 32], strides = [1, 1]} : vector<8x128xf32> to vector<8x32xf32>
    %456 = vector.extract_strided_slice %452 {offsets = [0, 96], sizes = [8, 32], strides = [1, 1]} : vector<8x128xf32> to vector<8x32xf32>
    %457 = arith.mulf %454, %417 : vector<8x32xf32>
    %458 = arith.mulf %453, %456 : vector<8x32xf32>
    %459 = arith.addf %457, %458 : vector<8x32xf32>
    %460 = math.tanh %459 : vector<8x32xf32>
    %461 = arith.mulf %455, %460 : vector<8x32xf32>
    %462 = vector.extract_strided_slice %370 {offsets = [16, 0], sizes = [8, 128], strides = [1, 1]} : vector<64x128xf32> to vector<8x128xf32>
    %463 = vector.extract_strided_slice %440 {offsets = [0, 0], sizes = [8, 128], strides = [1, 1]} : vector<8x256xf32> to vector<8x128xf32>
    %464 = arith.addf %462, %463 : vector<8x128xf32>
    %465 = arith.negf %464 : vector<8x128xf32>
    %466 = math.exp %465 : vector<8x128xf32>
    %cst_66 = arith.constant 1.000000e+00 : f32
    %467 = vector.broadcast %cst_66 : f32 to vector<8x128xf32>
    %468 = arith.addf %467, %466 : vector<8x128xf32>
    %469 = arith.divf %467, %468 : vector<8x128xf32>
    %470 = math.tanh %464 : vector<8x128xf32>
    %471 = arith.select %2, %470, %469 : vector<8x128xi1>, vector<8x128xf32>
    %472 = vector.extract_strided_slice %471 {offsets = [0, 0], sizes = [8, 32], strides = [1, 1]} : vector<8x128xf32> to vector<8x32xf32>
    %473 = vector.extract_strided_slice %471 {offsets = [0, 32], sizes = [8, 32], strides = [1, 1]} : vector<8x128xf32> to vector<8x32xf32>
    %474 = vector.extract_strided_slice %471 {offsets = [0, 64], sizes = [8, 32], strides = [1, 1]} : vector<8x128xf32> to vector<8x32xf32>
    %475 = vector.extract_strided_slice %471 {offsets = [0, 96], sizes = [8, 32], strides = [1, 1]} : vector<8x128xf32> to vector<8x32xf32>
    %476 = arith.mulf %473, %436 : vector<8x32xf32>
    %477 = arith.mulf %472, %475 : vector<8x32xf32>
    %478 = arith.addf %476, %477 : vector<8x32xf32>
    %479 = math.tanh %478 : vector<8x32xf32>
    %480 = arith.mulf %474, %479 : vector<8x32xf32>
    %481 = arith.truncf %480 : vector<8x32xf32> to vector<8x32xbf16>
    %cst_67 = arith.constant dense<0.000000e+00> : vector<8x256xf32>
    %482 = tpu.matmul %481, %371, %cst_67 {dimension_numbers = #tpu.dot_dimension_numbers<[1], [0], [0], [1], [0, 0, 1, 1], [], []>} : vector<8x32xbf16>, vector<32x256xbf16>, vector<8x256xf32> -> vector<8x256xf32>
    %483 = vector.extract_strided_slice %482 {offsets = [0, 128], sizes = [8, 128], strides = [1, 1]} : vector<8x256xf32> to vector<8x128xf32>
    %484 = arith.addf %483, %375 : vector<8x128xf32>
    %485 = arith.truncf %461 : vector<8x32xf32> to vector<8x32xbf16>
    %cst_68 = arith.constant dense<0.000000e+00> : vector<8x128xf32>
    %486 = tpu.matmul %485, %372, %cst_68 {dimension_numbers = #tpu.dot_dimension_numbers<[1], [0], [0], [1], [0, 0, 1, 1], [], []>} : vector<8x32xbf16>, vector<32x128xbf16>, vector<8x128xf32> -> vector<8x128xf32>
    %487 = arith.addf %484, %486 : vector<8x128xf32>
    %488 = arith.negf %487 : vector<8x128xf32>
    %489 = math.exp %488 : vector<8x128xf32>
    %cst_69 = arith.constant 1.000000e+00 : f32
    %490 = vector.broadcast %cst_69 : f32 to vector<8x128xf32>
    %491 = arith.addf %490, %489 : vector<8x128xf32>
    %492 = arith.divf %490, %491 : vector<8x128xf32>
    %493 = math.tanh %487 : vector<8x128xf32>
    %494 = arith.select %2, %493, %492 : vector<8x128xi1>, vector<8x128xf32>
    %495 = vector.extract_strided_slice %494 {offsets = [0, 0], sizes = [8, 32], strides = [1, 1]} : vector<8x128xf32> to vector<8x32xf32>
    %496 = vector.extract_strided_slice %494 {offsets = [0, 32], sizes = [8, 32], strides = [1, 1]} : vector<8x128xf32> to vector<8x32xf32>
    %497 = vector.extract_strided_slice %494 {offsets = [0, 64], sizes = [8, 32], strides = [1, 1]} : vector<8x128xf32> to vector<8x32xf32>
    %498 = vector.extract_strided_slice %494 {offsets = [0, 96], sizes = [8, 32], strides = [1, 1]} : vector<8x128xf32> to vector<8x32xf32>
    %499 = arith.mulf %496, %459 : vector<8x32xf32>
    %500 = arith.mulf %495, %498 : vector<8x32xf32>
    %501 = arith.addf %499, %500 : vector<8x32xf32>
    %502 = math.tanh %501 : vector<8x32xf32>
    %503 = arith.mulf %497, %502 : vector<8x32xf32>
    %504 = vector.extract_strided_slice %370 {offsets = [24, 0], sizes = [8, 128], strides = [1, 1]} : vector<64x128xf32> to vector<8x128xf32>
    %505 = vector.extract_strided_slice %482 {offsets = [0, 0], sizes = [8, 128], strides = [1, 1]} : vector<8x256xf32> to vector<8x128xf32>
    %506 = arith.addf %504, %505 : vector<8x128xf32>
    %507 = arith.negf %506 : vector<8x128xf32>
    %508 = math.exp %507 : vector<8x128xf32>
    %cst_70 = arith.constant 1.000000e+00 : f32
    %509 = vector.broadcast %cst_70 : f32 to vector<8x128xf32>
    %510 = arith.addf %509, %508 : vector<8x128xf32>
    %511 = arith.divf %509, %510 : vector<8x128xf32>
    %512 = math.tanh %506 : vector<8x128xf32>
    %513 = arith.select %2, %512, %511 : vector<8x128xi1>, vector<8x128xf32>
    %514 = vector.extract_strided_slice %513 {offsets = [0, 0], sizes = [8, 32], strides = [1, 1]} : vector<8x128xf32> to vector<8x32xf32>
    %515 = vector.extract_strided_slice %513 {offsets = [0, 32], sizes = [8, 32], strides = [1, 1]} : vector<8x128xf32> to vector<8x32xf32>
    %516 = vector.extract_strided_slice %513 {offsets = [0, 64], sizes = [8, 32], strides = [1, 1]} : vector<8x128xf32> to vector<8x32xf32>
    %517 = vector.extract_strided_slice %513 {offsets = [0, 96], sizes = [8, 32], strides = [1, 1]} : vector<8x128xf32> to vector<8x32xf32>
    %518 = arith.mulf %515, %478 : vector<8x32xf32>
    %519 = arith.mulf %514, %517 : vector<8x32xf32>
    %520 = arith.addf %518, %519 : vector<8x32xf32>
    %521 = math.tanh %520 : vector<8x32xf32>
    %522 = arith.mulf %516, %521 : vector<8x32xf32>
    %523 = arith.truncf %522 : vector<8x32xf32> to vector<8x32xbf16>
    %cst_71 = arith.constant dense<0.000000e+00> : vector<8x256xf32>
    %524 = tpu.matmul %523, %371, %cst_71 {dimension_numbers = #tpu.dot_dimension_numbers<[1], [0], [0], [1], [0, 0, 1, 1], [], []>} : vector<8x32xbf16>, vector<32x256xbf16>, vector<8x256xf32> -> vector<8x256xf32>
    %525 = vector.extract_strided_slice %524 {offsets = [0, 128], sizes = [8, 128], strides = [1, 1]} : vector<8x256xf32> to vector<8x128xf32>
    %526 = arith.addf %525, %375 : vector<8x128xf32>
    %527 = arith.truncf %503 : vector<8x32xf32> to vector<8x32xbf16>
    %cst_72 = arith.constant dense<0.000000e+00> : vector<8x128xf32>
    %528 = tpu.matmul %527, %372, %cst_72 {dimension_numbers = #tpu.dot_dimension_numbers<[1], [0], [0], [1], [0, 0, 1, 1], [], []>} : vector<8x32xbf16>, vector<32x128xbf16>, vector<8x128xf32> -> vector<8x128xf32>
    %529 = arith.addf %526, %528 : vector<8x128xf32>
    %530 = arith.negf %529 : vector<8x128xf32>
    %531 = math.exp %530 : vector<8x128xf32>
    %cst_73 = arith.constant 1.000000e+00 : f32
    %532 = vector.broadcast %cst_73 : f32 to vector<8x128xf32>
    %533 = arith.addf %532, %531 : vector<8x128xf32>
    %534 = arith.divf %532, %533 : vector<8x128xf32>
    %535 = math.tanh %529 : vector<8x128xf32>
    %536 = arith.select %2, %535, %534 : vector<8x128xi1>, vector<8x128xf32>
    %537 = vector.extract_strided_slice %536 {offsets = [0, 0], sizes = [8, 32], strides = [1, 1]} : vector<8x128xf32> to vector<8x32xf32>
    %538 = vector.extract_strided_slice %536 {offsets = [0, 32], sizes = [8, 32], strides = [1, 1]} : vector<8x128xf32> to vector<8x32xf32>
    %539 = vector.extract_strided_slice %536 {offsets = [0, 64], sizes = [8, 32], strides = [1, 1]} : vector<8x128xf32> to vector<8x32xf32>
    %540 = vector.extract_strided_slice %536 {offsets = [0, 96], sizes = [8, 32], strides = [1, 1]} : vector<8x128xf32> to vector<8x32xf32>
    %541 = arith.mulf %538, %501 : vector<8x32xf32>
    %542 = arith.mulf %537, %540 : vector<8x32xf32>
    %543 = arith.addf %541, %542 : vector<8x32xf32>
    %544 = math.tanh %543 : vector<8x32xf32>
    %545 = arith.mulf %539, %544 : vector<8x32xf32>
    %546 = vector.extract_strided_slice %370 {offsets = [32, 0], sizes = [8, 128], strides = [1, 1]} : vector<64x128xf32> to vector<8x128xf32>
    %547 = vector.extract_strided_slice %524 {offsets = [0, 0], sizes = [8, 128], strides = [1, 1]} : vector<8x256xf32> to vector<8x128xf32>
    %548 = arith.addf %546, %547 : vector<8x128xf32>
    %549 = arith.negf %548 : vector<8x128xf32>
    %550 = math.exp %549 : vector<8x128xf32>
    %cst_74 = arith.constant 1.000000e+00 : f32
    %551 = vector.broadcast %cst_74 : f32 to vector<8x128xf32>
    %552 = arith.addf %551, %550 : vector<8x128xf32>
    %553 = arith.divf %551, %552 : vector<8x128xf32>
    %554 = math.tanh %548 : vector<8x128xf32>
    %555 = arith.select %2, %554, %553 : vector<8x128xi1>, vector<8x128xf32>
    %556 = vector.extract_strided_slice %555 {offsets = [0, 0], sizes = [8, 32], strides = [1, 1]} : vector<8x128xf32> to vector<8x32xf32>
    %557 = vector.extract_strided_slice %555 {offsets = [0, 32], sizes = [8, 32], strides = [1, 1]} : vector<8x128xf32> to vector<8x32xf32>
    %558 = vector.extract_strided_slice %555 {offsets = [0, 64], sizes = [8, 32], strides = [1, 1]} : vector<8x128xf32> to vector<8x32xf32>
    %559 = vector.extract_strided_slice %555 {offsets = [0, 96], sizes = [8, 32], strides = [1, 1]} : vector<8x128xf32> to vector<8x32xf32>
    %560 = arith.mulf %557, %520 : vector<8x32xf32>
    %561 = arith.mulf %556, %559 : vector<8x32xf32>
    %562 = arith.addf %560, %561 : vector<8x32xf32>
    %563 = math.tanh %562 : vector<8x32xf32>
    %564 = arith.mulf %558, %563 : vector<8x32xf32>
    %565 = arith.truncf %564 : vector<8x32xf32> to vector<8x32xbf16>
    %cst_75 = arith.constant dense<0.000000e+00> : vector<8x256xf32>
    %566 = tpu.matmul %565, %371, %cst_75 {dimension_numbers = #tpu.dot_dimension_numbers<[1], [0], [0], [1], [0, 0, 1, 1], [], []>} : vector<8x32xbf16>, vector<32x256xbf16>, vector<8x256xf32> -> vector<8x256xf32>
    %567 = vector.extract_strided_slice %566 {offsets = [0, 128], sizes = [8, 128], strides = [1, 1]} : vector<8x256xf32> to vector<8x128xf32>
    %568 = arith.addf %567, %375 : vector<8x128xf32>
    %569 = arith.truncf %545 : vector<8x32xf32> to vector<8x32xbf16>
    %cst_76 = arith.constant dense<0.000000e+00> : vector<8x128xf32>
    %570 = tpu.matmul %569, %372, %cst_76 {dimension_numbers = #tpu.dot_dimension_numbers<[1], [0], [0], [1], [0, 0, 1, 1], [], []>} : vector<8x32xbf16>, vector<32x128xbf16>, vector<8x128xf32> -> vector<8x128xf32>
    %571 = arith.addf %568, %570 : vector<8x128xf32>
    %572 = arith.negf %571 : vector<8x128xf32>
    %573 = math.exp %572 : vector<8x128xf32>
    %cst_77 = arith.constant 1.000000e+00 : f32
    %574 = vector.broadcast %cst_77 : f32 to vector<8x128xf32>
    %575 = arith.addf %574, %573 : vector<8x128xf32>
    %576 = arith.divf %574, %575 : vector<8x128xf32>
    %577 = math.tanh %571 : vector<8x128xf32>
    %578 = arith.select %2, %577, %576 : vector<8x128xi1>, vector<8x128xf32>
    %579 = vector.extract_strided_slice %578 {offsets = [0, 0], sizes = [8, 32], strides = [1, 1]} : vector<8x128xf32> to vector<8x32xf32>
    %580 = vector.extract_strided_slice %578 {offsets = [0, 32], sizes = [8, 32], strides = [1, 1]} : vector<8x128xf32> to vector<8x32xf32>
    %581 = vector.extract_strided_slice %578 {offsets = [0, 64], sizes = [8, 32], strides = [1, 1]} : vector<8x128xf32> to vector<8x32xf32>
    %582 = vector.extract_strided_slice %578 {offsets = [0, 96], sizes = [8, 32], strides = [1, 1]} : vector<8x128xf32> to vector<8x32xf32>
    %583 = arith.mulf %580, %543 : vector<8x32xf32>
    %584 = arith.mulf %579, %582 : vector<8x32xf32>
    %585 = arith.addf %583, %584 : vector<8x32xf32>
    %586 = math.tanh %585 : vector<8x32xf32>
    %587 = arith.mulf %581, %586 : vector<8x32xf32>
    %588 = vector.extract_strided_slice %370 {offsets = [40, 0], sizes = [8, 128], strides = [1, 1]} : vector<64x128xf32> to vector<8x128xf32>
    %589 = vector.extract_strided_slice %566 {offsets = [0, 0], sizes = [8, 128], strides = [1, 1]} : vector<8x256xf32> to vector<8x128xf32>
    %590 = arith.addf %588, %589 : vector<8x128xf32>
    %591 = arith.negf %590 : vector<8x128xf32>
    %592 = math.exp %591 : vector<8x128xf32>
    %cst_78 = arith.constant 1.000000e+00 : f32
    %593 = vector.broadcast %cst_78 : f32 to vector<8x128xf32>
    %594 = arith.addf %593, %592 : vector<8x128xf32>
    %595 = arith.divf %593, %594 : vector<8x128xf32>
    %596 = math.tanh %590 : vector<8x128xf32>
    %597 = arith.select %2, %596, %595 : vector<8x128xi1>, vector<8x128xf32>
    %598 = vector.extract_strided_slice %597 {offsets = [0, 0], sizes = [8, 32], strides = [1, 1]} : vector<8x128xf32> to vector<8x32xf32>
    %599 = vector.extract_strided_slice %597 {offsets = [0, 32], sizes = [8, 32], strides = [1, 1]} : vector<8x128xf32> to vector<8x32xf32>
    %600 = vector.extract_strided_slice %597 {offsets = [0, 64], sizes = [8, 32], strides = [1, 1]} : vector<8x128xf32> to vector<8x32xf32>
    %601 = vector.extract_strided_slice %597 {offsets = [0, 96], sizes = [8, 32], strides = [1, 1]} : vector<8x128xf32> to vector<8x32xf32>
    %602 = arith.mulf %599, %562 : vector<8x32xf32>
    %603 = arith.mulf %598, %601 : vector<8x32xf32>
    %604 = arith.addf %602, %603 : vector<8x32xf32>
    %605 = math.tanh %604 : vector<8x32xf32>
    %606 = arith.mulf %600, %605 : vector<8x32xf32>
    %607 = arith.truncf %606 : vector<8x32xf32> to vector<8x32xbf16>
    %cst_79 = arith.constant dense<0.000000e+00> : vector<8x256xf32>
    %608 = tpu.matmul %607, %371, %cst_79 {dimension_numbers = #tpu.dot_dimension_numbers<[1], [0], [0], [1], [0, 0, 1, 1], [], []>} : vector<8x32xbf16>, vector<32x256xbf16>, vector<8x256xf32> -> vector<8x256xf32>
    %609 = vector.extract_strided_slice %608 {offsets = [0, 128], sizes = [8, 128], strides = [1, 1]} : vector<8x256xf32> to vector<8x128xf32>
    %610 = arith.addf %609, %375 : vector<8x128xf32>
    %611 = arith.truncf %587 : vector<8x32xf32> to vector<8x32xbf16>
    %cst_80 = arith.constant dense<0.000000e+00> : vector<8x128xf32>
    %612 = tpu.matmul %611, %372, %cst_80 {dimension_numbers = #tpu.dot_dimension_numbers<[1], [0], [0], [1], [0, 0, 1, 1], [], []>} : vector<8x32xbf16>, vector<32x128xbf16>, vector<8x128xf32> -> vector<8x128xf32>
    %613 = arith.addf %610, %612 : vector<8x128xf32>
    %614 = arith.negf %613 : vector<8x128xf32>
    %615 = math.exp %614 : vector<8x128xf32>
    %cst_81 = arith.constant 1.000000e+00 : f32
    %616 = vector.broadcast %cst_81 : f32 to vector<8x128xf32>
    %617 = arith.addf %616, %615 : vector<8x128xf32>
    %618 = arith.divf %616, %617 : vector<8x128xf32>
    %619 = math.tanh %613 : vector<8x128xf32>
    %620 = arith.select %2, %619, %618 : vector<8x128xi1>, vector<8x128xf32>
    %621 = vector.extract_strided_slice %620 {offsets = [0, 0], sizes = [8, 32], strides = [1, 1]} : vector<8x128xf32> to vector<8x32xf32>
    %622 = vector.extract_strided_slice %620 {offsets = [0, 32], sizes = [8, 32], strides = [1, 1]} : vector<8x128xf32> to vector<8x32xf32>
    %623 = vector.extract_strided_slice %620 {offsets = [0, 64], sizes = [8, 32], strides = [1, 1]} : vector<8x128xf32> to vector<8x32xf32>
    %624 = vector.extract_strided_slice %620 {offsets = [0, 96], sizes = [8, 32], strides = [1, 1]} : vector<8x128xf32> to vector<8x32xf32>
    %625 = arith.mulf %622, %585 : vector<8x32xf32>
    %626 = arith.mulf %621, %624 : vector<8x32xf32>
    %627 = arith.addf %625, %626 : vector<8x32xf32>
    %628 = math.tanh %627 : vector<8x32xf32>
    %629 = arith.mulf %623, %628 : vector<8x32xf32>
    %630 = vector.extract_strided_slice %370 {offsets = [48, 0], sizes = [8, 128], strides = [1, 1]} : vector<64x128xf32> to vector<8x128xf32>
    %631 = vector.extract_strided_slice %608 {offsets = [0, 0], sizes = [8, 128], strides = [1, 1]} : vector<8x256xf32> to vector<8x128xf32>
    %632 = arith.addf %630, %631 : vector<8x128xf32>
    %633 = arith.negf %632 : vector<8x128xf32>
    %634 = math.exp %633 : vector<8x128xf32>
    %cst_82 = arith.constant 1.000000e+00 : f32
    %635 = vector.broadcast %cst_82 : f32 to vector<8x128xf32>
    %636 = arith.addf %635, %634 : vector<8x128xf32>
    %637 = arith.divf %635, %636 : vector<8x128xf32>
    %638 = math.tanh %632 : vector<8x128xf32>
    %639 = arith.select %2, %638, %637 : vector<8x128xi1>, vector<8x128xf32>
    %640 = vector.extract_strided_slice %639 {offsets = [0, 0], sizes = [8, 32], strides = [1, 1]} : vector<8x128xf32> to vector<8x32xf32>
    %641 = vector.extract_strided_slice %639 {offsets = [0, 32], sizes = [8, 32], strides = [1, 1]} : vector<8x128xf32> to vector<8x32xf32>
    %642 = vector.extract_strided_slice %639 {offsets = [0, 64], sizes = [8, 32], strides = [1, 1]} : vector<8x128xf32> to vector<8x32xf32>
    %643 = vector.extract_strided_slice %639 {offsets = [0, 96], sizes = [8, 32], strides = [1, 1]} : vector<8x128xf32> to vector<8x32xf32>
    %644 = arith.mulf %641, %604 : vector<8x32xf32>
    %645 = arith.mulf %640, %643 : vector<8x32xf32>
    %646 = arith.addf %644, %645 : vector<8x32xf32>
    %647 = math.tanh %646 : vector<8x32xf32>
    %648 = arith.mulf %642, %647 : vector<8x32xf32>
    %649 = arith.truncf %648 : vector<8x32xf32> to vector<8x32xbf16>
    %cst_83 = arith.constant dense<0.000000e+00> : vector<8x256xf32>
    %650 = tpu.matmul %649, %371, %cst_83 {dimension_numbers = #tpu.dot_dimension_numbers<[1], [0], [0], [1], [0, 0, 1, 1], [], []>} : vector<8x32xbf16>, vector<32x256xbf16>, vector<8x256xf32> -> vector<8x256xf32>
    %651 = vector.extract_strided_slice %650 {offsets = [0, 128], sizes = [8, 128], strides = [1, 1]} : vector<8x256xf32> to vector<8x128xf32>
    %652 = arith.addf %651, %375 : vector<8x128xf32>
    %653 = arith.truncf %629 : vector<8x32xf32> to vector<8x32xbf16>
    %cst_84 = arith.constant dense<0.000000e+00> : vector<8x128xf32>
    %654 = tpu.matmul %653, %372, %cst_84 {dimension_numbers = #tpu.dot_dimension_numbers<[1], [0], [0], [1], [0, 0, 1, 1], [], []>} : vector<8x32xbf16>, vector<32x128xbf16>, vector<8x128xf32> -> vector<8x128xf32>
    %655 = arith.addf %652, %654 : vector<8x128xf32>
    %656 = arith.negf %655 : vector<8x128xf32>
    %657 = math.exp %656 : vector<8x128xf32>
    %cst_85 = arith.constant 1.000000e+00 : f32
    %658 = vector.broadcast %cst_85 : f32 to vector<8x128xf32>
    %659 = arith.addf %658, %657 : vector<8x128xf32>
    %660 = arith.divf %658, %659 : vector<8x128xf32>
    %661 = math.tanh %655 : vector<8x128xf32>
    %662 = arith.select %2, %661, %660 : vector<8x128xi1>, vector<8x128xf32>
    %663 = vector.extract_strided_slice %662 {offsets = [0, 0], sizes = [8, 32], strides = [1, 1]} : vector<8x128xf32> to vector<8x32xf32>
    %664 = vector.extract_strided_slice %662 {offsets = [0, 32], sizes = [8, 32], strides = [1, 1]} : vector<8x128xf32> to vector<8x32xf32>
    %665 = vector.extract_strided_slice %662 {offsets = [0, 64], sizes = [8, 32], strides = [1, 1]} : vector<8x128xf32> to vector<8x32xf32>
    %666 = vector.extract_strided_slice %662 {offsets = [0, 96], sizes = [8, 32], strides = [1, 1]} : vector<8x128xf32> to vector<8x32xf32>
    %667 = arith.mulf %664, %627 : vector<8x32xf32>
    %668 = arith.mulf %663, %666 : vector<8x32xf32>
    %669 = arith.addf %667, %668 : vector<8x32xf32>
    %670 = math.tanh %669 : vector<8x32xf32>
    %671 = arith.mulf %665, %670 : vector<8x32xf32>
    %672 = vector.extract_strided_slice %370 {offsets = [56, 0], sizes = [8, 128], strides = [1, 1]} : vector<64x128xf32> to vector<8x128xf32>
    %673 = vector.extract_strided_slice %650 {offsets = [0, 0], sizes = [8, 128], strides = [1, 1]} : vector<8x256xf32> to vector<8x128xf32>
    %674 = arith.addf %672, %673 : vector<8x128xf32>
    %675 = arith.negf %674 : vector<8x128xf32>
    %676 = math.exp %675 : vector<8x128xf32>
    %cst_86 = arith.constant 1.000000e+00 : f32
    %677 = vector.broadcast %cst_86 : f32 to vector<8x128xf32>
    %678 = arith.addf %677, %676 : vector<8x128xf32>
    %679 = arith.divf %677, %678 : vector<8x128xf32>
    %680 = math.tanh %674 : vector<8x128xf32>
    %681 = arith.select %2, %680, %679 : vector<8x128xi1>, vector<8x128xf32>
    %682 = vector.extract_strided_slice %681 {offsets = [0, 0], sizes = [8, 32], strides = [1, 1]} : vector<8x128xf32> to vector<8x32xf32>
    %683 = vector.extract_strided_slice %681 {offsets = [0, 32], sizes = [8, 32], strides = [1, 1]} : vector<8x128xf32> to vector<8x32xf32>
    %684 = vector.extract_strided_slice %681 {offsets = [0, 64], sizes = [8, 32], strides = [1, 1]} : vector<8x128xf32> to vector<8x32xf32>
    %685 = vector.extract_strided_slice %681 {offsets = [0, 96], sizes = [8, 32], strides = [1, 1]} : vector<8x128xf32> to vector<8x32xf32>
    %686 = arith.mulf %683, %646 : vector<8x32xf32>
    %687 = arith.mulf %682, %685 : vector<8x32xf32>
    %688 = arith.addf %686, %687 : vector<8x32xf32>
    %689 = math.tanh %688 : vector<8x32xf32>
    %690 = arith.mulf %684, %689 : vector<8x32xf32>
    %691 = arith.truncf %690 : vector<8x32xf32> to vector<8x32xbf16>
    %cst_87 = arith.constant dense<0.000000e+00> : vector<8x256xf32>
    %692 = tpu.matmul %691, %371, %cst_87 {dimension_numbers = #tpu.dot_dimension_numbers<[1], [0], [0], [1], [0, 0, 1, 1], [], []>} : vector<8x32xbf16>, vector<32x256xbf16>, vector<8x256xf32> -> vector<8x256xf32>
    %693 = vector.extract_strided_slice %692 {offsets = [0, 128], sizes = [8, 128], strides = [1, 1]} : vector<8x256xf32> to vector<8x128xf32>
    %694 = arith.addf %693, %375 : vector<8x128xf32>
    %695 = arith.truncf %671 : vector<8x32xf32> to vector<8x32xbf16>
    %cst_88 = arith.constant dense<0.000000e+00> : vector<8x128xf32>
    %696 = tpu.matmul %695, %372, %cst_88 {dimension_numbers = #tpu.dot_dimension_numbers<[1], [0], [0], [1], [0, 0, 1, 1], [], []>} : vector<8x32xbf16>, vector<32x128xbf16>, vector<8x128xf32> -> vector<8x128xf32>
    %697 = arith.addf %694, %696 : vector<8x128xf32>
    %698 = arith.negf %697 : vector<8x128xf32>
    %699 = math.exp %698 : vector<8x128xf32>
    %cst_89 = arith.constant 1.000000e+00 : f32
    %700 = vector.broadcast %cst_89 : f32 to vector<8x128xf32>
    %701 = arith.addf %700, %699 : vector<8x128xf32>
    %702 = arith.divf %700, %701 : vector<8x128xf32>
    %703 = math.tanh %697 : vector<8x128xf32>
    %704 = arith.select %2, %703, %702 : vector<8x128xi1>, vector<8x128xf32>
    %705 = vector.extract_strided_slice %704 {offsets = [0, 0], sizes = [8, 32], strides = [1, 1]} : vector<8x128xf32> to vector<8x32xf32>
    %706 = vector.extract_strided_slice %704 {offsets = [0, 32], sizes = [8, 32], strides = [1, 1]} : vector<8x128xf32> to vector<8x32xf32>
    %707 = vector.extract_strided_slice %704 {offsets = [0, 64], sizes = [8, 32], strides = [1, 1]} : vector<8x128xf32> to vector<8x32xf32>
    %708 = vector.extract_strided_slice %704 {offsets = [0, 96], sizes = [8, 32], strides = [1, 1]} : vector<8x128xf32> to vector<8x32xf32>
    %709 = arith.mulf %706, %669 : vector<8x32xf32>
    %710 = arith.mulf %705, %708 : vector<8x32xf32>
    %711 = arith.addf %709, %710 : vector<8x32xf32>
    %712 = math.tanh %711 : vector<8x32xf32>
    %713 = arith.mulf %707, %712 : vector<8x32xf32>
    %714 = tpu.concatenate %419, %461, %503, %545, %587, %629, %671, %713 in 0 : vector<8x32xf32>, vector<8x32xf32>, vector<8x32xf32>, vector<8x32xf32>, vector<8x32xf32>, vector<8x32xf32>, vector<8x32xf32>, vector<8x32xf32> -> vector<64x32xf32>
    %cst_90 = arith.constant dense<0.000000e+00> : vector<64xf32>
    %715 = vector.multi_reduction <add>, %714, %cst_90 [1] : vector<64x32xf32> to vector<64xf32>
    %716 = vector.shape_cast %715 : vector<64xf32> to vector<64x1xf32>
    %cst_91 = arith.constant 3.200000e+01 : f32
    %717 = vector.broadcast %cst_91 : f32 to vector<64x1xf32>
    %718 = arith.divf %716, %717 : vector<64x1xf32>
    %719 = vector.broadcast %718 : vector<64x1xf32> to vector<64x32xf32>
    %720 = arith.subf %714, %719 : vector<64x32xf32>
    %721 = arith.mulf %720, %720 : vector<64x32xf32>
    %cst_92 = arith.constant dense<0.000000e+00> : vector<64xf32>
    %722 = vector.multi_reduction <add>, %721, %cst_92 [1] : vector<64x32xf32> to vector<64xf32>
    %723 = vector.shape_cast %722 : vector<64xf32> to vector<64x1xf32>
    %cst_93 = arith.constant 3.200000e+01 : f32
    %724 = vector.broadcast %cst_93 : f32 to vector<64x1xf32>
    %725 = arith.divf %723, %724 : vector<64x1xf32>
    %726 = vector.broadcast %718 : vector<64x1xf32> to vector<64x32xf32>
    %727 = arith.subf %714, %726 : vector<64x32xf32>
    %cst_94 = arith.constant 9.99999974E-6 : f32
    %728 = vector.broadcast %cst_94 : f32 to vector<64x1xf32>
    %729 = arith.addf %725, %728 : vector<64x1xf32>
    %730 = math.rsqrt %729 : vector<64x1xf32>
    %731 = vector.broadcast %730 : vector<64x1xf32> to vector<64x32xf32>
    %732 = arith.mulf %727, %731 : vector<64x32xf32>
    %c0_95 = arith.constant 0 : index
    %c0_96 = arith.constant 0 : index
    %733 = vector.load %arg10[%c0_95, %c0_96] : memref<1x32xf32, #tpu.memory_space<vmem>>, vector<1x32xf32>
    %734 = vector.broadcast %733 : vector<1x32xf32> to vector<64x32xf32>
    %735 = arith.mulf %732, %734 : vector<64x32xf32>
    %c0_97 = arith.constant 0 : index
    %c0_98 = arith.constant 0 : index
    %736 = vector.load %arg11[%c0_97, %c0_98] : memref<1x32xf32, #tpu.memory_space<vmem>>, vector<1x32xf32>
    %737 = vector.broadcast %736 : vector<1x32xf32> to vector<64x32xf32>
    %738 = arith.addf %735, %737 : vector<64x32xf32>
    %c0_99 = arith.constant 0 : index
    %c0_100 = arith.constant 0 : index
    %739 = vector.load %arg12[%c0_99, %c0_100] : memref<1x32xf32, #tpu.memory_space<vmem>>, vector<1x32xf32>
    %cst_101 = arith.constant dense<0.000000e+00> : vector<1x64xf32>
    %740 = tpu.matmul %739, %738, %cst_101 {dimension_numbers = #tpu.dot_dimension_numbers<[1], [1], [0], [0], [0, 0, 1, 0], [], []>} : vector<1x32xf32>, vector<64x32xf32>, vector<1x64xf32> -> vector<1x64xf32>
    %c0_102 = arith.constant 0 : index
    %c0_103 = arith.constant 0 : index
    %741 = vector.load %arg13[%c0_102, %c0_103] : memref<1x1xf32, #tpu.memory_space<vmem>>, vector<1x1xf32>
    %742 = vector.broadcast %741 : vector<1x1xf32> to vector<1x64xf32>
    %743 = arith.addf %740, %742 : vector<1x64xf32>
    %c0_104 = arith.constant 0 : index
    %c0_105 = arith.constant 0 : index
    %744 = vector.load %arg14[%c0_104, %c0_105] : memref<1x64xf32, #tpu.memory_space<vmem>>, vector<1x64xf32>
    tpu.vector_store %arg14[%c0_104, %c0_105], %743 {strides = array<i32>} : memref<1x64xf32, #tpu.memory_space<vmem>>, vector<1x64xf32>,
    return
  }
}

</mosaic_0001>

<llo_original>
// kernel: forward.1
$region0: #{forward.1}
  #allocation0 [shape = 'u32[]', space=smem, size = 0x4, offset = 0x4, fixed_abs, tag = 'smem constant byte address 0x4 - core index']
  #allocation1 [shape = 'u32[144,128]{1,0:T(1,128)}', space=vmem, size = 0x12000, scoped, tag = 'internal scratch']
  #allocation2 [shape = 'f32[1,1]{1,0:T(1,128)S(1)}', space=vmem, size = 0x200, scoped, tag = 'scoped memory for forward.1']
  %s0 = inlined_call_operand.vmem [shape: f32[64,1], index: 0, kind: input, shape index: {}]
  %s1 = inlined_call_operand.vmem [shape: f32[64,1], index: 1, kind: input, shape index: {}]
  %s2 = inlined_call_operand.vmem [shape: f32[2,128], index: 2, kind: input, shape index: {}]
  %s3 = inlined_call_operand.vmem [shape: bf16[32,256], index: 3, kind: input, shape index: {}]
  %s4 = inlined_call_operand.vmem [shape: bf16[32,128], index: 4, kind: input, shape index: {}]
  %s5 = inlined_call_operand.vmem [shape: f32[1,128], index: 5, kind: input, shape index: {}]
  %s6 = inlined_call_operand.vmem [shape: f32[2,128], index: 6, kind: input, shape index: {}]
  %s7 = inlined_call_operand.vmem [shape: bf16[32,256], index: 7, kind: input, shape index: {}]
  %s8 = inlined_call_operand.vmem [shape: bf16[32,128], index: 8, kind: input, shape index: {}]
  %s9 = inlined_call_operand.vmem [shape: f32[1,128], index: 9, kind: input, shape index: {}]
  %s10 = inlined_call_operand.vmem [shape: f32[1,32], index: 10, kind: input, shape index: {}]
  %s11 = inlined_call_operand.vmem [shape: f32[1,32], index: 11, kind: input, shape index: {}]
  %s12 = inlined_call_operand.vmem [shape: f32[1,32], index: 12, kind: input, shape index: {}]
  %s13 = inlined_call_operand.<no memory space> [shape: f32[1,1], index: 13, kind: input, shape index: {}]
  %s14 = inlined_call_operand.vmem [shape: f32[1,64], index: 14, kind: output, shape index: {}]
  %s15 = sld [smem:[#allocation0]]
  $region66: #{forward.1} parent=0
    _
  %s17 = ssub.s32 1, %s15
  %s18 = scalar_select 0, %s17, %s15
  %v19 = vstv %s13
  %20 = vst [vmem:[#allocation2] sm:$0x1] %v19
  // Predicated region
  $region2: #{forward.1} parent=0 // pred_check
    _
  $region3: #{forward.1} parent=0 // pred_check_branch
    %22 = sbr.rel (0) target = $region5
  $region4: #{forward.1} parent=0 // pred_region
    _
  $region5: #{forward.1} parent=0 // pred_fallthru
    _
  // Predicated region
  $region6: #{forward.1} parent=0 // pred_check
    _
  $region7: #{forward.1} parent=0 // pred_check_branch
    %24 = sbr.rel (0) target = $region9
  $region8: #{forward.1} parent=0 // pred_region
    _
  $region9: #{forward.1} parent=0 // pred_fallthru
    _
  // Predicated region
  $region10: #{forward.1} parent=0 // pred_check
    _
  $region11: #{forward.1} parent=0 // pred_check_branch
    %26 = sbr.rel (0) target = $region13
  $region12: #{forward.1} parent=0 // pred_region
    _
  $region13: #{forward.1} parent=0 // pred_fallthru
    _
  // Predicated region
  $region14: #{forward.1} parent=0 // pred_check
    _
  $region15: #{forward.1} parent=0 // pred_check_branch
    %28 = sbr.rel (0) target = $region17
  $region16: #{forward.1} parent=0 // pred_region
    _
  $region17: #{forward.1} parent=0 // pred_fallthru
    _
  // Predicated region
  $region18: #{forward.1} parent=0 // pred_check
    _
  $region19: #{forward.1} parent=0 // pred_check_branch
    %30 = sbr.rel (0) target = $region21
  $region20: #{forward.1} parent=0 // pred_region
    _
  $region21: #{forward.1} parent=0 // pred_fallthru
    _
  // Predicated region
  $region22: #{forward.1} parent=0 // pred_check
    _
  $region23: #{forward.1} parent=0 // pred_check_branch
    %32 = sbr.rel (0) target = $region25
  $region24: #{forward.1} parent=0 // pred_region
    _
  $region25: #{forward.1} parent=0 // pred_fallthru
    _
  // Predicated region
  $region26: #{forward.1} parent=0 // pred_check
    _
  $region27: #{forward.1} parent=0 // pred_check_branch
    %34 = sbr.rel (0) target = $region29
  $region28: #{forward.1} parent=0 // pred_region
    _
  $region29: #{forward.1} parent=0 // pred_fallthru
    _
  // Predicated region
  $region30: #{forward.1} parent=0 // pred_check
    _
  $region31: #{forward.1} parent=0 // pred_check_branch
    %36 = sbr.rel (0) target = $region33
  $region32: #{forward.1} parent=0 // pred_region
    _
  $region33: #{forward.1} parent=0 // pred_fallthru
    _
  // Predicated region
  $region34: #{forward.1} parent=0 // pred_check
    _
  $region35: #{forward.1} parent=0 // pred_check_branch
    %38 = sbr.rel (0) target = $region37
  $region36: #{forward.1} parent=0 // pred_region
    _
  $region37: #{forward.1} parent=0 // pred_fallthru
    _
  // Predicated region
  $region38: #{forward.1} parent=0 // pred_check
    _
  $region39: #{forward.1} parent=0 // pred_check_branch
    %40 = sbr.rel (0) target = $region41
  $region40: #{forward.1} parent=0 // pred_region
    _
  $region41: #{forward.1} parent=0 // pred_fallthru
    _
  // Predicated region
  $region42: #{forward.1} parent=0 // pred_check
    _
  $region43: #{forward.1} parent=0 // pred_check_branch
    %42 = sbr.rel (0) target = $region45
  $region44: #{forward.1} parent=0 // pred_region
    _
  $region45: #{forward.1} parent=0 // pred_fallthru
    _
  // Predicated region
  $region46: #{forward.1} parent=0 // pred_check
    _
  $region47: #{forward.1} parent=0 // pred_check_branch
    %44 = sbr.rel (0) target = $region49
  $region48: #{forward.1} parent=0 // pred_region
    _
  $region49: #{forward.1} parent=0 // pred_fallthru
    _
  // Predicated region
  $region50: #{forward.1} parent=0 // pred_check
    _
  $region51: #{forward.1} parent=0 // pred_check_branch
    %46 = sbr.rel (0) target = $region53
  $region52: #{forward.1} parent=0 // pred_region
    _
  $region53: #{forward.1} parent=0 // pred_fallthru
    _
  // Predicated region
  $region54: #{forward.1} parent=0 // pred_check
    _
  $region55: #{forward.1} parent=0 // pred_check_branch
    %48 = sbr.rel (0) target = $region57
  $region56: #{forward.1} parent=0 // pred_region
    _
  $region57: #{forward.1} parent=0 // pred_fallthru
    _
  %v50 = vlaneseq
  %v51 = vand.u32 %v50, 127
  %vm52 = vcmp.ge.s32.totalorder %v51, 96
  %v53 = vld [vmem:[%s0] sm:$0xff]
  %v54 = vld [vmem:[%s0 + $0x8] sm:$0xff]
  %v55 = vld [vmem:[%s0 + $0x10] sm:$0xff]
  %v56 = vld [vmem:[%s0 + $0x18] sm:$0xff]
  %v57 = vld [vmem:[%s0 + $0x20] sm:$0xff]
  %v58 = vld [vmem:[%s0 + $0x28] sm:$0xff]
  %v59 = vld [vmem:[%s0 + $0x30] sm:$0xff]
  %v60 = vld [vmem:[%s0 + $0x38] sm:$0xff]
  %vm61 = vcmp.gt.f32.partialorder %v53, 0.5
  %vm62 = vcmp.gt.f32.partialorder %v54, 0.5
  %vm63 = vcmp.gt.f32.partialorder %v55, 0.5
  %vm64 = vcmp.gt.f32.partialorder %v56, 0.5
  %vm65 = vcmp.gt.f32.partialorder %v57, 0.5
  %vm66 = vcmp.gt.f32.partialorder %v58, 0.5
  %vm67 = vcmp.gt.f32.partialorder %v59, 0.5
  %vm68 = vcmp.gt.f32.partialorder %v60, 0.5
  %v69 = vld [vmem:[%s2 + $0x1] sm:$0x1]
  %v70 = vld [vmem:[%s2] sm:$0x1]
  %v71 = vsel %vm61, 1, 0
  %v72 = vsel %vm62, 1, 0
  %v73 = vsel %vm63, 1, 0
  %v74 = vsel %vm64, 1, 0
  %v75 = vsel %vm65, 1, 0
  %v76 = vsel %vm66, 1, 0
  %v77 = vsel %vm67, 1, 0
  %v78 = vsel %vm68, 1, 0
  %79 = vset.pattern.permute.xlu0 0
  %80 = vperm.xlu0 %79, %v71
  %v81 = vpop.permute.xlu0 %80
  %82 = vset.pattern.permute.xlu0 0
  %83 = vperm.xlu0 %82, %v72
  %v84 = vpop.permute.xlu0 %83
  %85 = vset.pattern.permute.xlu0 0
  %86 = vperm.xlu0 %85, %v73
  %v87 = vpop.permute.xlu0 %86
  %88 = vset.pattern.permute.xlu0 0
  %89 = vperm.xlu0 %88, %v74
  %v90 = vpop.permute.xlu0 %89
  %91 = vset.pattern.permute.xlu0 0
  %92 = vperm.xlu0 %91, %v75
  %v93 = vpop.permute.xlu0 %92
  %94 = vset.pattern.permute.xlu0 0
  %95 = vperm.xlu0 %94, %v76
  %v96 = vpop.permute.xlu0 %95
  %97 = vset.pattern.permute.xlu0 0
  %98 = vperm.xlu0 %97, %v77
  %v99 = vpop.permute.xlu0 %98
  %100 = vset.pattern.permute.xlu0 0
  %101 = vperm.xlu0 %100, %v78
  %v102 = vpop.permute.xlu0 %101
  %vm103 = vcmp.eq.s32.totalorder %v81, 1
  %vm104 = vcmp.eq.s32.totalorder %v84, 1
  %vm105 = vcmp.eq.s32.totalorder %v87, 1
  %vm106 = vcmp.eq.s32.totalorder %v90, 1
  %vm107 = vcmp.eq.s32.totalorder %v93, 1
  %vm108 = vcmp.eq.s32.totalorder %v96, 1
  %vm109 = vcmp.eq.s32.totalorder %v99, 1
  %vm110 = vcmp.eq.s32.totalorder %v102, 1
  %v111 = vlaneseq
  %v112 = vshrl.u32 %v111, 7
  %v113 = vsub.s32 0, %v112
  %v114 = vrot.slane %v69, %v113
  %v115 = vlaneseq
  %v116 = vshrl.u32 %v115, 7
  %v117 = vsub.s32 0, %v116
  %v118 = vrot.slane %v70, %v117
  %v119 = vsel %vm103, %v114, %v118
  %v120 = vsel %vm104, %v114, %v118
  %v121 = vsel %vm105, %v114, %v118
  %v122 = vsel %vm106, %v114, %v118
  %v123 = vsel %vm107, %v114, %v118
  %v124 = vsel %vm108, %v114, %v118
  %v125 = vsel %vm109, %v114, %v118
  %v126 = vsel %vm110, %v114, %v118
  %v127 = vld [vmem:[%s3] sm:$0xff]
  %v128 = vld [vmem:[%s3 + $0x8] sm:$0xff]
  %v129 = vld [vmem:[%s3 + $0x10] sm:$0xff]
  %v130 = vld [vmem:[%s3 + $0x18] sm:$0xff]
  %v131 = vld [vmem:[%s4] sm:$0xf]
  %v132 = vld [vmem:[%s4 + $0x4] sm:$0xf]
  %v133 = vld [vmem:[%s4 + $0x8] sm:$0xf]
  %v134 = vld [vmem:[%s4 + $0xc] sm:$0xf]
  %v135 = vld [vmem:[%s5] sm:$0x1]
  %v137 = vlaneseq
  %v138 = vshrl.u32 %v137, 7
  %v139 = vsub.s32 0, %v138
  %v140 = vrot.slane %v135, %v139
  %v146 = vunpack.c.l.b16 %v127
  %v147 = vunpack.c.h.b16 %v127
  %v148 = vunpack.c.l.b16 %v128
  %v149 = vunpack.c.h.b16 %v128
  %v150 = vunpack.c.l.b16 %v129
  %v151 = vunpack.c.h.b16 %v129
  %v152 = vunpack.c.l.b16 %v130
  %v153 = vunpack.c.h.b16 %v130
  %v154 = vpack.c.b16 %v148, %v146
  %v155 = vpack.c.b16 %v149, %v147
  %v156 = vpack.c.b16 %v152, %v150
  %v157 = vpack.c.b16 %v153, %v151
  %vm162 = vcmask 261120
  %v164 = vsel %vm162, 0, 0
  %166 = vmatprep.subr.bf16.mxu0 %v155
  %167 = vmatpush1.bf16.msra.mxu0 %v154
  %168 = vmatprep.subr.bf16.mxu0 %v157
  %169 = vmatpush1.bf16.msra.mxu0 %v156
  %170 = vmatprep.subr.bf16.mxu0 0
  %171 = vmatpush1.bf16.msra.mxu0 0
  %172 = vmatprep.subr.bf16.mxu0 0
  %173 = vmatpush1.bf16.msra.mxu0 0
  %174 = vmatprep.subr.bf16.mxu0 0
  %175 = vmatpush1.bf16.msra.mxu0 0
  %176 = vmatprep.subr.bf16.mxu0 0
  %177 = vmatpush1.bf16.msra.mxu0 0
  %178 = vmatprep.subr.bf16.mxu0 0
  %179 = vmatpush1.bf16.msra.mxu0 0
  %180 = vmatprep.subr.bf16.mxu0 0
  %181 = vmatpush1.bf16.msra.mxu0 0
  %182 = vmatprep.subr.bf16.mxu0 0
  %183 = vmatpush1.bf16.msra.mxu0 0
  %184 = vmatprep.subr.bf16.mxu0 0
  %185 = vmatpush1.bf16.msra.mxu0 0
  %186 = vmatprep.subr.bf16.mxu0 0
  %187 = vmatpush1.bf16.msra.mxu0 0
  %188 = vmatprep.subr.bf16.mxu0 0
  %189 = vmatpush1.bf16.msra.mxu0 0
  %190 = vmatprep.subr.bf16.mxu0 0
  %191 = vmatpush1.bf16.msra.mxu0 0
  %192 = vmatprep.subr.bf16.mxu0 0
  %193 = vmatpush1.bf16.msra.mxu0 0
  %194 = vmatprep.subr.bf16.mxu0 0
  %195 = vmatpush1.bf16.msra.mxu0 0
  %196 = vmatprep.subr.bf16.mxu0 0
  %197 = vmatpush1.bf16.msra.mxu0 0
  %198 = vmatprep.mubr.bf16.mxu0 0
  %199 = vmatmul.mubr.bf16.gmra.mrb[0].mxu0 %v164
  %v200 = vpop.f32.mrb[0].mxu0
  %v201 = vadd.f32 0.0, %v200
  %v202 = vpop.f32.mrb[0].mxu0
  %v203 = vpop.f32.mrb[0].mxu0
  %v204 = vpop.f32.mrb[0].mxu0
  %205 = vdwg.mxu0
  %v206 = vadd.f32 %v119, %v201
  %v207 = vxor.u32 %v206, 2147483648
  %v208 = vmul.f32 %v207, 1.442695
  %v209 = vpow.pop %v208
  %v210 = vadd.f32 %v209, 1.0
  %v211 = vrcp.pop %v210
  %v212 = vmul.f32 1.0, %v211
  %v213 = vtanh.pop %v206
  %v214 = vsel %vm52, %v213, %v212
  %v215 = vmul.f32 %v214, 0.0
  %217 = vrot.lane.b32.xlu0 %v214, 32
  %v218 = vpop.permute.xlu0 %217
  %v220 = vmul.f32 %v214, %v218
  %222 = vrot.lane.b32.xlu0 %v220, 32
  %v223 = vpop.permute.xlu0 %222
  %v225 = vadd.f32 %v215, %v223
  %v226 = vtanh.pop %v225
  %228 = vrot.lane.b32.xlu0 %v226, 32
  %v229 = vpop.permute.xlu0 %228
  %v231 = vmul.f32 %v214, %v229
  %v232 = vpack.c.bf16 %v231, %v231
  %234 = vrot.lane.b32.xlu0 %v232, 64
  %v235 = vpop.permute.xlu0 %234
  %v237 = vsel %vm162, %v235, 0
  %239 = vmatprep.subr.bf16.mxu0 %v155
  %240 = vmatpush1.bf16.msra.mxu0 %v154
  %241 = vmatprep.subr.bf16.mxu0 %v157
  %242 = vmatpush1.bf16.msra.mxu0 %v156
  %243 = vmatprep.subr.bf16.mxu0 0
  %244 = vmatpush1.bf16.msra.mxu0 0
  %245 = vmatprep.subr.bf16.mxu0 0
  %246 = vmatpush1.bf16.msra.mxu0 0
  %247 = vmatprep.subr.bf16.mxu0 0
  %248 = vmatpush1.bf16.msra.mxu0 0
  %249 = vmatprep.subr.bf16.mxu0 0
  %250 = vmatpush1.bf16.msra.mxu0 0
  %251 = vmatprep.subr.bf16.mxu0 0
  %252 = vmatpush1.bf16.msra.mxu0 0
  %253 = vmatprep.subr.bf16.mxu0 0
  %254 = vmatpush1.bf16.msra.mxu0 0
  %255 = vmatprep.subr.bf16.mxu0 0
  %256 = vmatpush1.bf16.msra.mxu0 0
  %257 = vmatprep.subr.bf16.mxu0 0
  %258 = vmatpush1.bf16.msra.mxu0 0
  %259 = vmatprep.subr.bf16.mxu0 0
  %260 = vmatpush1.bf16.msra.mxu0 0
  %261 = vmatprep.subr.bf16.mxu0 0
  %262 = vmatpush1.bf16.msra.mxu0 0
  %263 = vmatprep.subr.bf16.mxu0 0
  %264 = vmatpush1.bf16.msra.mxu0 0
  %265 = vmatprep.subr.bf16.mxu0 0
  %266 = vmatpush1.bf16.msra.mxu0 0
  %267 = vmatprep.subr.bf16.mxu0 0
  %268 = vmatpush1.bf16.msra.mxu0 0
  %269 = vmatprep.subr.bf16.mxu0 0
  %270 = vmatpush1.bf16.msra.mxu0 0
  %271 = vmatprep.mubr.bf16.mxu0 0
  %272 = vmatmul.mubr.bf16.gmra.mrb[0].mxu0 %v237
  %v273 = vpop.f32.mrb[0].mxu0
  %v274 = vadd.f32 0.0, %v273
  %v275 = vpop.f32.mrb[0].mxu0
  %v276 = vadd.f32 0.0, %v275
  %v277 = vpop.f32.mrb[0].mxu0
  %v278 = vpop.f32.mrb[0].mxu0
  %279 = vdwg.mxu0
  %v280 = vadd.f32 %v276, %v140
  %v285 = vunpack.c.l.b16 %v131
  %v286 = vunpack.c.l.b16 %v132
  %v287 = vunpack.c.l.b16 %v133
  %v288 = vunpack.c.l.b16 %v134
  %v289 = vpack.c.b16 %v286, %v285
  %v290 = vpack.c.b16 %v288, %v287
  %293 = vmatprep.subr.bf16.mxu0 0
  %294 = vmatpush1.bf16.msra.mxu0 %v289
  %295 = vmatprep.subr.bf16.mxu0 0
  %296 = vmatpush1.bf16.msra.mxu0 %v290
  %297 = vmatprep.subr.bf16.mxu0 0
  %298 = vmatpush1.bf16.msra.mxu0 0
  %299 = vmatprep.subr.bf16.mxu0 0
  %300 = vmatpush1.bf16.msra.mxu0 0
  %301 = vmatprep.subr.bf16.mxu0 0
  %302 = vmatpush1.bf16.msra.mxu0 0
  %303 = vmatprep.subr.bf16.mxu0 0
  %304 = vmatpush1.bf16.msra.mxu0 0
  %305 = vmatprep.subr.bf16.mxu0 0
  %306 = vmatpush1.bf16.msra.mxu0 0
  %307 = vmatprep.subr.bf16.mxu0 0
  %308 = vmatpush1.bf16.msra.mxu0 0
  %309 = vmatprep.subr.bf16.mxu0 0
  %310 = vmatpush1.bf16.msra.mxu0 0
  %311 = vmatprep.subr.bf16.mxu0 0
  %312 = vmatpush1.bf16.msra.mxu0 0
  %313 = vmatprep.subr.bf16.mxu0 0
  %314 = vmatpush1.bf16.msra.mxu0 0
  %315 = vmatprep.subr.bf16.mxu0 0
  %316 = vmatpush1.bf16.msra.mxu0 0
  %317 = vmatprep.subr.bf16.mxu0 0
  %318 = vmatpush1.bf16.msra.mxu0 0
  %319 = vmatprep.subr.bf16.mxu0 0
  %320 = vmatpush1.bf16.msra.mxu0 0
  %321 = vmatprep.subr.bf16.mxu0 0
  %322 = vmatpush1.bf16.msra.mxu0 0
  %323 = vmatprep.subr.bf16.mxu0 0
  %324 = vmatpush1.bf16.msra.mxu0 0
  %325 = vmatprep.mubr.bf16.mxu0 0
  %326 = vmatmul.mubr.bf16.gmra.mrb[0].mxu0 %v164
  %v327 = vpop.f32.mrb[0].mxu0
  %v328 = vadd.f32 0.0, %v327
  %v329 = vpop.f32.mrb[0].mxu0
  %v330 = vpop.f32.mrb[0].mxu0
  %v331 = vpop.f32.mrb[0].mxu0
  %332 = vdwg.mxu0
  %v333 = vadd.f32 %v280, %v328
  %v334 = vxor.u32 %v333, 2147483648
  %v335 = vmul.f32 %v334, 1.442695
  %v336 = vpow.pop %v335
  %v337 = vadd.f32 %v336, 1.0
  %v338 = vrcp.pop %v337
  %v339 = vmul.f32 1.0, %v338
  %v340 = vtanh.pop %v333
  %v341 = vsel %vm52, %v340, %v339
  %v342 = vmul.f32 %v341, 0.0
  %344 = vrot.lane.b32.xlu0 %v341, 32
  %v345 = vpop.permute.xlu0 %344
  %v347 = vmul.f32 %v341, %v345
  %349 = vrot.lane.b32.xlu0 %v347, 32
  %v350 = vpop.permute.xlu0 %349
  %v352 = vadd.f32 %v342, %v350
  %v353 = vtanh.pop %v352
  %355 = vrot.lane.b32.xlu0 %v353, 32
  %v356 = vpop.permute.xlu0 %355
  %v358 = vmul.f32 %v341, %v356
  %v359 = vadd.f32 %v120, %v274
  %v360 = vxor.u32 %v359, 2147483648
  %v361 = vmul.f32 %v360, 1.442695
  %v362 = vpow.pop %v361
  %v363 = vadd.f32 %v362, 1.0
  %v364 = vrcp.pop %v363
  %v365 = vmul.f32 1.0, %v364
  %v366 = vtanh.pop %v359
  %v367 = vsel %vm52, %v366, %v365
  %v368 = vmul.f32 %v367, %v225
  %370 = vrot.lane.b32.xlu0 %v367, 32
  %v371 = vpop.permute.xlu0 %370
  %v373 = vmul.f32 %v367, %v371
  %375 = vrot.lane.b32.xlu0 %v373, 32
  %v376 = vpop.permute.xlu0 %375
  %v378 = vadd.f32 %v368, %v376
  %v379 = vtanh.pop %v378
  %381 = vrot.lane.b32.xlu0 %v379, 32
  %v382 = vpop.permute.xlu0 %381
  %v384 = vmul.f32 %v367, %v382
  %v385 = vpack.c.bf16 %v384, %v384
  %387 = vrot.lane.b32.xlu0 %v385, 64
  %v388 = vpop.permute.xlu0 %387
  %v390 = vsel %vm162, %v388, 0
  %392 = vmatprep.subr.bf16.mxu0 %v155
  %393 = vmatpush1.bf16.msra.mxu0 %v154
  %394 = vmatprep.subr.bf16.mxu0 %v157
  %395 = vmatpush1.bf16.msra.mxu0 %v156
  %396 = vmatprep.subr.bf16.mxu0 0
  %397 = vmatpush1.bf16.msra.mxu0 0
  %398 = vmatprep.subr.bf16.mxu0 0
  %399 = vmatpush1.bf16.msra.mxu0 0
  %400 = vmatprep.subr.bf16.mxu0 0
  %401 = vmatpush1.bf16.msra.mxu0 0
  %402 = vmatprep.subr.bf16.mxu0 0
  %403 = vmatpush1.bf16.msra.mxu0 0
  %404 = vmatprep.subr.bf16.mxu0 0
  %405 = vmatpush1.bf16.msra.mxu0 0
  %406 = vmatprep.subr.bf16.mxu0 0
  %407 = vmatpush1.bf16.msra.mxu0 0
  %408 = vmatprep.subr.bf16.mxu0 0
  %409 = vmatpush1.bf16.msra.mxu0 0
  %410 = vmatprep.subr.bf16.mxu0 0
  %411 = vmatpush1.bf16.msra.mxu0 0
  %412 = vmatprep.subr.bf16.mxu0 0
  %413 = vmatpush1.bf16.msra.mxu0 0
  %414 = vmatprep.subr.bf16.mxu0 0
  %415 = vmatpush1.bf16.msra.mxu0 0
  %416 = vmatprep.subr.bf16.mxu0 0
  %417 = vmatpush1.bf16.msra.mxu0 0
  %418 = vmatprep.subr.bf16.mxu0 0
  %419 = vmatpush1.bf16.msra.mxu0 0
  %420 = vmatprep.subr.bf16.mxu0 0
  %421 = vmatpush1.bf16.msra.mxu0 0
  %422 = vmatprep.subr.bf16.mxu0 0
  %423 = vmatpush1.bf16.msra.mxu0 0
  %424 = vmatprep.mubr.bf16.mxu0 0
  %425 = vmatmul.mubr.bf16.gmra.mrb[0].mxu0 %v390
  %v426 = vpop.f32.mrb[0].mxu0
  %v427 = vadd.f32 0.0, %v426
  %v428 = vpop.f32.mrb[0].mxu0
  %v429 = vadd.f32 0.0, %v428
  %v430 = vpop.f32.mrb[0].mxu0
  %v431 = vpop.f32.mrb[0].mxu0
  %432 = vdwg.mxu0
  %v433 = vadd.f32 %v429, %v140
  %v434 = vpack.c.bf16 %v358, %v358
  %436 = vrot.lane.b32.xlu0 %v434, 64
  %v437 = vpop.permute.xlu0 %436
  %v439 = vsel %vm162, %v437, 0
  %441 = vmatprep.subr.bf16.mxu0 0
  %442 = vmatpush1.bf16.msra.mxu0 %v289
  %443 = vmatprep.subr.bf16.mxu0 0
  %444 = vmatpush1.bf16.msra.mxu0 %v290
  %445 = vmatprep.subr.bf16.mxu0 0
  %446 = vmatpush1.bf16.msra.mxu0 0
  %447 = vmatprep.subr.bf16.mxu0 0
  %448 = vmatpush1.bf16.msra.mxu0 0
  %449 = vmatprep.subr.bf16.mxu0 0
  %450 = vmatpush1.bf16.msra.mxu0 0
  %451 = vmatprep.subr.bf16.mxu0 0
  %452 = vmatpush1.bf16.msra.mxu0 0
  %453 = vmatprep.subr.bf16.mxu0 0
  %454 = vmatpush1.bf16.msra.mxu0 0
  %455 = vmatprep.subr.bf16.mxu0 0
  %456 = vmatpush1.bf16.msra.mxu0 0
  %457 = vmatprep.subr.bf16.mxu0 0
  %458 = vmatpush1.bf16.msra.mxu0 0
  %459 = vmatprep.subr.bf16.mxu0 0
  %460 = vmatpush1.bf16.msra.mxu0 0
  %461 = vmatprep.subr.bf16.mxu0 0
  %462 = vmatpush1.bf16.msra.mxu0 0
  %463 = vmatprep.subr.bf16.mxu0 0
  %464 = vmatpush1.bf16.msra.mxu0 0
  %465 = vmatprep.subr.bf16.mxu0 0
  %466 = vmatpush1.bf16.msra.mxu0 0
  %467 = vmatprep.subr.bf16.mxu0 0
  %468 = vmatpush1.bf16.msra.mxu0 0
  %469 = vmatprep.subr.bf16.mxu0 0
  %470 = vmatpush1.bf16.msra.mxu0 0
  %471 = vmatprep.subr.bf16.mxu0 0
  %472 = vmatpush1.bf16.msra.mxu0 0
  %473 = vmatprep.mubr.bf16.mxu0 0
  %474 = vmatmul.mubr.bf16.gmra.mrb[0].mxu0 %v439
  %v475 = vpop.f32.mrb[0].mxu0
  %v476 = vadd.f32 0.0, %v475
  %v477 = vpop.f32.mrb[0].mxu0
  %v478 = vpop.f32.mrb[0].mxu0
  %v479 = vpop.f32.mrb[0].mxu0
  %480 = vdwg.mxu0
  %v481 = vadd.f32 %v433, %v476
  %v482 = vxor.u32 %v481, 2147483648
  %v483 = vmul.f32 %v482, 1.442695
  %v484 = vpow.pop %v483
  %v485 = vadd.f32 %v484, 1.0
  %v486 = vrcp.pop %v485
  %v487 = vmul.f32 1.0, %v486
  %v488 = vtanh.pop %v481
  %v489 = vsel %vm52, %v488, %v487
  %v490 = vmul.f32 %v489, %v352
  %492 = vrot.lane.b32.xlu0 %v489, 32
  %v493 = vpop.permute.xlu0 %492
  %v495 = vmul.f32 %v489, %v493
  %497 = vrot.lane.b32.xlu0 %v495, 32
  %v498 = vpop.permute.xlu0 %497
  %v500 = vadd.f32 %v490, %v498
  %v501 = vtanh.pop %v500
  %503 = vrot.lane.b32.xlu0 %v501, 32
  %v504 = vpop.permute.xlu0 %503
  %v506 = vmul.f32 %v489, %v504
  %v507 = vadd.f32 %v121, %v427
  %v508 = vxor.u32 %v507, 2147483648
  %v509 = vmul.f32 %v508, 1.442695
  %v510 = vpow.pop %v509
  %v511 = vadd.f32 %v510, 1.0
  %v512 = vrcp.pop %v511
  %v513 = vmul.f32 1.0, %v512
  %v514 = vtanh.pop %v507
  %v515 = vsel %vm52, %v514, %v513
  %v516 = vmul.f32 %v515, %v378
  %518 = vrot.lane.b32.xlu0 %v515, 32
  %v519 = vpop.permute.xlu0 %518
  %v521 = vmul.f32 %v515, %v519
  %523 = vrot.lane.b32.xlu0 %v521, 32
  %v524 = vpop.permute.xlu0 %523
  %v526 = vadd.f32 %v516, %v524
  %v527 = vtanh.pop %v526
  %529 = vrot.lane.b32.xlu0 %v527, 32
  %v530 = vpop.permute.xlu0 %529
  %v532 = vmul.f32 %v515, %v530
  %v533 = vpack.c.bf16 %v532, %v532
  %535 = vrot.lane.b32.xlu0 %v533, 64
  %v536 = vpop.permute.xlu0 %535
  %v538 = vsel %vm162, %v536, 0
  %540 = vmatprep.subr.bf16.mxu0 %v155
  %541 = vmatpush1.bf16.msra.mxu0 %v154
  %542 = vmatprep.subr.bf16.mxu0 %v157
  %543 = vmatpush1.bf16.msra.mxu0 %v156
  %544 = vmatprep.subr.bf16.mxu0 0
  %545 = vmatpush1.bf16.msra.mxu0 0
  %546 = vmatprep.subr.bf16.mxu0 0
  %547 = vmatpush1.bf16.msra.mxu0 0
  %548 = vmatprep.subr.bf16.mxu0 0
  %549 = vmatpush1.bf16.msra.mxu0 0
  %550 = vmatprep.subr.bf16.mxu0 0
  %551 = vmatpush1.bf16.msra.mxu0 0
  %552 = vmatprep.subr.bf16.mxu0 0
  %553 = vmatpush1.bf16.msra.mxu0 0
  %554 = vmatprep.subr.bf16.mxu0 0
  %555 = vmatpush1.bf16.msra.mxu0 0
  %556 = vmatprep.subr.bf16.mxu0 0
  %557 = vmatpush1.bf16.msra.mxu0 0
  %558 = vmatprep.subr.bf16.mxu0 0
  %559 = vmatpush1.bf16.msra.mxu0 0
  %560 = vmatprep.subr.bf16.mxu0 0
  %561 = vmatpush1.bf16.msra.mxu0 0
  %562 = vmatprep.subr.bf16.mxu0 0
  %563 = vmatpush1.bf16.msra.mxu0 0
  %564 = vmatprep.subr.bf16.mxu0 0
  %565 = vmatpush1.bf16.msra.mxu0 0
  %566 = vmatprep.subr.bf16.mxu0 0
  %567 = vmatpush1.bf16.msra.mxu0 0
  %568 = vmatprep.subr.bf16.mxu0 0
  %569 = vmatpush1.bf16.msra.mxu0 0
  %570 = vmatprep.subr.bf16.mxu0 0
  %571 = vmatpush1.bf16.msra.mxu0 0
  %572 = vmatprep.mubr.bf16.mxu0 0
  %573 = vmatmul.mubr.bf16.gmra.mrb[0].mxu0 %v538
  %v574 = vpop.f32.mrb[0].mxu0
  %v575 = vadd.f32 0.0, %v574
  %v576 = vpop.f32.mrb[0].mxu0
  %v577 = vadd.f32 0.0, %v576
  %v578 = vpop.f32.mrb[0].mxu0
  %v579 = vpop.f32.mrb[0].mxu0
  %580 = vdwg.mxu0
  %v581 = vadd.f32 %v577, %v140
  %v582 = vpack.c.bf16 %v506, %v506
  %584 = vrot.lane.b32.xlu0 %v582, 64
  %v585 = vpop.permute.xlu0 %584
  %v587 = vsel %vm162, %v585, 0
  %589 = vmatprep.subr.bf16.mxu0 0
  %590 = vmatpush1.bf16.msra.mxu0 %v289
  %591 = vmatprep.subr.bf16.mxu0 0
  %592 = vmatpush1.bf16.msra.mxu0 %v290
  %593 = vmatprep.subr.bf16.mxu0 0
  %594 = vmatpush1.bf16.msra.mxu0 0
  %595 = vmatprep.subr.bf16.mxu0 0
  %596 = vmatpush1.bf16.msra.mxu0 0
  %597 = vmatprep.subr.bf16.mxu0 0
  %598 = vmatpush1.bf16.msra.mxu0 0
  %599 = vmatprep.subr.bf16.mxu0 0
  %600 = vmatpush1.bf16.msra.mxu0 0
  %601 = vmatprep.subr.bf16.mxu0 0
  %602 = vmatpush1.bf16.msra.mxu0 0
  %603 = vmatprep.subr.bf16.mxu0 0
  %604 = vmatpush1.bf16.msra.mxu0 0
  %605 = vmatprep.subr.bf16.mxu0 0
  %606 = vmatpush1.bf16.msra.mxu0 0
  %607 = vmatprep.subr.bf16.mxu0 0
  %608 = vmatpush1.bf16.msra.mxu0 0
  %609 = vmatprep.subr.bf16.mxu0 0
  %610 = vmatpush1.bf16.msra.mxu0 0
  %611 = vmatprep.subr.bf16.mxu0 0
  %612 = vmatpush1.bf16.msra.mxu0 0
  %613 = vmatprep.subr.bf16.mxu0 0
  %614 = vmatpush1.bf16.msra.mxu0 0
  %615 = vmatprep.subr.bf16.mxu0 0
  %616 = vmatpush1.bf16.msra.mxu0 0
  %617 = vmatprep.subr.bf16.mxu0 0
  %618 = vmatpush1.bf16.msra.mxu0 0
  %619 = vmatprep.subr.bf16.mxu0 0
  %620 = vmatpush1.bf16.msra.mxu0 0
  %621 = vmatprep.mubr.bf16.mxu0 0
  %622 = vmatmul.mubr.bf16.gmra.mrb[0].mxu0 %v587
  %v623 = vpop.f32.mrb[0].mxu0
  %v624 = vadd.f32 0.0, %v623
  %v625 = vpop.f32.mrb[0].mxu0
  %v626 = vpop.f32.mrb[0].mxu0
  %v627 = vpop.f32.mrb[0].mxu0
  %628 = vdwg.mxu0
  %v629 = vadd.f32 %v581, %v624
  %v630 = vxor.u32 %v629, 2147483648
  %v631 = vmul.f32 %v630, 1.442695
  %v632 = vpow.pop %v631
  %v633 = vadd.f32 %v632, 1.0
  %v634 = vrcp.pop %v633
  %v635 = vmul.f32 1.0, %v634
  %v636 = vtanh.pop %v629
  %v637 = vsel %vm52, %v636, %v635
  %v638 = vmul.f32 %v637, %v500
  %640 = vrot.lane.b32.xlu0 %v637, 32
  %v641 = vpop.permute.xlu0 %640
  %v643 = vmul.f32 %v637, %v641
  %645 = vrot.lane.b32.xlu0 %v643, 32
  %v646 = vpop.permute.xlu0 %645
  %v648 = vadd.f32 %v638, %v646
  %v649 = vtanh.pop %v648
  %651 = vrot.lane.b32.xlu0 %v649, 32
  %v652 = vpop.permute.xlu0 %651
  %v654 = vmul.f32 %v637, %v652
  %v655 = vadd.f32 %v122, %v575
  %v656 = vxor.u32 %v655, 2147483648
  %v657 = vmul.f32 %v656, 1.442695
  %v658 = vpow.pop %v657
  %v659 = vadd.f32 %v658, 1.0
  %v660 = vrcp.pop %v659
  %v661 = vmul.f32 1.0, %v660
  %v662 = vtanh.pop %v655
  %v663 = vsel %vm52, %v662, %v661
  %v664 = vmul.f32 %v663, %v526
  %666 = vrot.lane.b32.xlu0 %v663, 32
  %v667 = vpop.permute.xlu0 %666
  %v669 = vmul.f32 %v663, %v667
  %671 = vrot.lane.b32.xlu0 %v669, 32
  %v672 = vpop.permute.xlu0 %671
  %v674 = vadd.f32 %v664, %v672
  %v675 = vtanh.pop %v674
  %677 = vrot.lane.b32.xlu0 %v675, 32
  %v678 = vpop.permute.xlu0 %677
  %v680 = vmul.f32 %v663, %v678
  %v681 = vpack.c.bf16 %v680, %v680
  %683 = vrot.lane.b32.xlu0 %v681, 64
  %v684 = vpop.permute.xlu0 %683
  %v686 = vsel %vm162, %v684, 0
  %688 = vmatprep.subr.bf16.mxu0 %v155
  %689 = vmatpush1.bf16.msra.mxu0 %v154
  %690 = vmatprep.subr.bf16.mxu0 %v157
  %691 = vmatpush1.bf16.msra.mxu0 %v156
  %692 = vmatprep.subr.bf16.mxu0 0
  %693 = vmatpush1.bf16.msra.mxu0 0
  %694 = vmatprep.subr.bf16.mxu0 0
  %695 = vmatpush1.bf16.msra.mxu0 0
  %696 = vmatprep.subr.bf16.mxu0 0
  %697 = vmatpush1.bf16.msra.mxu0 0
  %698 = vmatprep.subr.bf16.mxu0 0
  %699 = vmatpush1.bf16.msra.mxu0 0
  %700 = vmatprep.subr.bf16.mxu0 0
  %701 = vmatpush1.bf16.msra.mxu0 0
  %702 = vmatprep.subr.bf16.mxu0 0
  %703 = vmatpush1.bf16.msra.mxu0 0
  %704 = vmatprep.subr.bf16.mxu0 0
  %705 = vmatpush1.bf16.msra.mxu0 0
  %706 = vmatprep.subr.bf16.mxu0 0
  %707 = vmatpush1.bf16.msra.mxu0 0
  %708 = vmatprep.subr.bf16.mxu0 0
  %709 = vmatpush1.bf16.msra.mxu0 0
  %710 = vmatprep.subr.bf16.mxu0 0
  %711 = vmatpush1.bf16.msra.mxu0 0
  %712 = vmatprep.subr.bf16.mxu0 0
  %713 = vmatpush1.bf16.msra.mxu0 0
  %714 = vmatprep.subr.bf16.mxu0 0
  %715 = vmatpush1.bf16.msra.mxu0 0
  %716 = vmatprep.subr.bf16.mxu0 0
  %717 = vmatpush1.bf16.msra.mxu0 0
  %718 = vmatprep.subr.bf16.mxu0 0
  %719 = vmatpush1.bf16.msra.mxu0 0
  %720 = vmatprep.mubr.bf16.mxu0 0
  %721 = vmatmul.mubr.bf16.gmra.mrb[0].mxu0 %v686
  %v722 = vpop.f32.mrb[0].mxu0
  %v723 = vadd.f32 0.0, %v722
  %v724 = vpop.f32.mrb[0].mxu0
  %v725 = vadd.f32 0.0, %v724
  %v726 = vpop.f32.mrb[0].mxu0
  %v727 = vpop.f32.mrb[0].mxu0
  %728 = vdwg.mxu0
  %v729 = vadd.f32 %v725, %v140
  %v730 = vpack.c.bf16 %v654, %v654
  %732 = vrot.lane.b32.xlu0 %v730, 64
  %v733 = vpop.permute.xlu0 %732
  %v735 = vsel %vm162, %v733, 0
  %737 = vmatprep.subr.bf16.mxu0 0
  %738 = vmatpush1.bf16.msra.mxu0 %v289
  %739 = vmatprep.subr.bf16.mxu0 0
  %740 = vmatpush1.bf16.msra.mxu0 %v290
  %741 = vmatprep.subr.bf16.mxu0 0
  %742 = vmatpush1.bf16.msra.mxu0 0
  %743 = vmatprep.subr.bf16.mxu0 0
  %744 = vmatpush1.bf16.msra.mxu0 0
  %745 = vmatprep.subr.bf16.mxu0 0
  %746 = vmatpush1.bf16.msra.mxu0 0
  %747 = vmatprep.subr.bf16.mxu0 0
  %748 = vmatpush1.bf16.msra.mxu0 0
  %749 = vmatprep.subr.bf16.mxu0 0
  %750 = vmatpush1.bf16.msra.mxu0 0
  %751 = vmatprep.subr.bf16.mxu0 0
  %752 = vmatpush1.bf16.msra.mxu0 0
  %753 = vmatprep.subr.bf16.mxu0 0
  %754 = vmatpush1.bf16.msra.mxu0 0
  %755 = vmatprep.subr.bf16.mxu0 0
  %756 = vmatpush1.bf16.msra.mxu0 0
  %757 = vmatprep.subr.bf16.mxu0 0
  %758 = vmatpush1.bf16.msra.mxu0 0
  %759 = vmatprep.subr.bf16.mxu0 0
  %760 = vmatpush1.bf16.msra.mxu0 0
  %761 = vmatprep.subr.bf16.mxu0 0
  %762 = vmatpush1.bf16.msra.mxu0 0
  %763 = vmatprep.subr.bf16.mxu0 0
  %764 = vmatpush1.bf16.msra.mxu0 0
  %765 = vmatprep.subr.bf16.mxu0 0
  %766 = vmatpush1.bf16.msra.mxu0 0
  %767 = vmatprep.subr.bf16.mxu0 0
  %768 = vmatpush1.bf16.msra.mxu0 0
  %769 = vmatprep.mubr.bf16.mxu0 0
  %770 = vmatmul.mubr.bf16.gmra.mrb[0].mxu0 %v735
  %v771 = vpop.f32.mrb[0].mxu0
  %v772 = vadd.f32 0.0, %v771
  %v773 = vpop.f32.mrb[0].mxu0
  %v774 = vpop.f32.mrb[0].mxu0
  %v775 = vpop.f32.mrb[0].mxu0
  %776 = vdwg.mxu0
  %v777 = vadd.f32 %v729, %v772
  %v778 = vxor.u32 %v777, 2147483648
  %v779 = vmul.f32 %v778, 1.442695
  %v780 = vpow.pop %v779
  %v781 = vadd.f32 %v780, 1.0
  %v782 = vrcp.pop %v781
  %v783 = vmul.f32 1.0, %v782
  %v784 = vtanh.pop %v777
  %v785 = vsel %vm52, %v784, %v783
  %v786 = vmul.f32 %v785, %v648
  %788 = vrot.lane.b32.xlu0 %v785, 32
  %v789 = vpop.permute.xlu0 %788
  %v791 = vmul.f32 %v785, %v789
  %793 = vrot.lane.b32.xlu0 %v791, 32
  %v794 = vpop.permute.xlu0 %793
  %v796 = vadd.f32 %v786, %v794
  %v797 = vtanh.pop %v796
  %799 = vrot.lane.b32.xlu0 %v797, 32
  %v800 = vpop.permute.xlu0 %799
  %v802 = vmul.f32 %v785, %v800
  %v803 = vadd.f32 %v123, %v723
  %v804 = vxor.u32 %v803, 2147483648
  %v805 = vmul.f32 %v804, 1.442695
  %v806 = vpow.pop %v805
  %v807 = vadd.f32 %v806, 1.0
  %v808 = vrcp.pop %v807
  %v809 = vmul.f32 1.0, %v808
  %v810 = vtanh.pop %v803
  %v811 = vsel %vm52, %v810, %v809
  %v812 = vmul.f32 %v811, %v674
  %814 = vrot.lane.b32.xlu0 %v811, 32
  %v815 = vpop.permute.xlu0 %814
  %v817 = vmul.f32 %v811, %v815
  %819 = vrot.lane.b32.xlu0 %v817, 32
  %v820 = vpop.permute.xlu0 %819
  %v822 = vadd.f32 %v812, %v820
  %v823 = vtanh.pop %v822
  %825 = vrot.lane.b32.xlu0 %v823, 32
  %v826 = vpop.permute.xlu0 %825
  %v828 = vmul.f32 %v811, %v826
  %v829 = vpack.c.bf16 %v828, %v828
  %831 = vrot.lane.b32.xlu0 %v829, 64
  %v832 = vpop.permute.xlu0 %831
  %v834 = vsel %vm162, %v832, 0
  %836 = vmatprep.subr.bf16.mxu0 %v155
  %837 = vmatpush1.bf16.msra.mxu0 %v154
  %838 = vmatprep.subr.bf16.mxu0 %v157
  %839 = vmatpush1.bf16.msra.mxu0 %v156
  %840 = vmatprep.subr.bf16.mxu0 0
  %841 = vmatpush1.bf16.msra.mxu0 0
  %842 = vmatprep.subr.bf16.mxu0 0
  %843 = vmatpush1.bf16.msra.mxu0 0
  %844 = vmatprep.subr.bf16.mxu0 0
  %845 = vmatpush1.bf16.msra.mxu0 0
  %846 = vmatprep.subr.bf16.mxu0 0
  %847 = vmatpush1.bf16.msra.mxu0 0
  %848 = vmatprep.subr.bf16.mxu0 0
  %849 = vmatpush1.bf16.msra.mxu0 0
  %850 = vmatprep.subr.bf16.mxu0 0
  %851 = vmatpush1.bf16.msra.mxu0 0
  %852 = vmatprep.subr.bf16.mxu0 0
  %853 = vmatpush1.bf16.msra.mxu0 0
  %854 = vmatprep.subr.bf16.mxu0 0
  %855 = vmatpush1.bf16.msra.mxu0 0
  %856 = vmatprep.subr.bf16.mxu0 0
  %857 = vmatpush1.bf16.msra.mxu0 0
  %858 = vmatprep.subr.bf16.mxu0 0
  %859 = vmatpush1.bf16.msra.mxu0 0
  %860 = vmatprep.subr.bf16.mxu0 0
  %861 = vmatpush1.bf16.msra.mxu0 0
  %862 = vmatprep.subr.bf16.mxu0 0
  %863 = vmatpush1.bf16.msra.mxu0 0
  %864 = vmatprep.subr.bf16.mxu0 0
  %865 = vmatpush1.bf16.msra.mxu0 0
  %866 = vmatprep.subr.bf16.mxu0 0
  %867 = vmatpush1.bf16.msra.mxu0 0
  %868 = vmatprep.mubr.bf16.mxu0 0
  %869 = vmatmul.mubr.bf16.gmra.mrb[0].mxu0 %v834
  %v870 = vpop.f32.mrb[0].mxu0
  %v871 = vadd.f32 0.0, %v870
  %v872 = vpop.f32.mrb[0].mxu0
  %v873 = vadd.f32 0.0, %v872
  %v874 = vpop.f32.mrb[0].mxu0
  %v875 = vpop.f32.mrb[0].mxu0
  %876 = vdwg.mxu0
  %v877 = vadd.f32 %v873, %v140
  %v878 = vpack.c.bf16 %v802, %v802
  %880 = vrot.lane.b32.xlu0 %v878, 64
  %v881 = vpop.permute.xlu0 %880
  %v883 = vsel %vm162, %v881, 0
  %885 = vmatprep.subr.bf16.mxu0 0
  %886 = vmatpush1.bf16.msra.mxu0 %v289
  %887 = vmatprep.subr.bf16.mxu0 0
  %888 = vmatpush1.bf16.msra.mxu0 %v290
  %889 = vmatprep.subr.bf16.mxu0 0
  %890 = vmatpush1.bf16.msra.mxu0 0
  %891 = vmatprep.subr.bf16.mxu0 0
  %892 = vmatpush1.bf16.msra.mxu0 0
  %893 = vmatprep.subr.bf16.mxu0 0
  %894 = vmatpush1.bf16.msra.mxu0 0
  %895 = vmatprep.subr.bf16.mxu0 0
  %896 = vmatpush1.bf16.msra.mxu0 0
  %897 = vmatprep.subr.bf16.mxu0 0
  %898 = vmatpush1.bf16.msra.mxu0 0
  %899 = vmatprep.subr.bf16.mxu0 0
  %900 = vmatpush1.bf16.msra.mxu0 0
  %901 = vmatprep.subr.bf16.mxu0 0
  %902 = vmatpush1.bf16.msra.mxu0 0
  %903 = vmatprep.subr.bf16.mxu0 0
  %904 = vmatpush1.bf16.msra.mxu0 0
  %905 = vmatprep.subr.bf16.mxu0 0
  %906 = vmatpush1.bf16.msra.mxu0 0
  %907 = vmatprep.subr.bf16.mxu0 0
  %908 = vmatpush1.bf16.msra.mxu0 0
  %909 = vmatprep.subr.bf16.mxu0 0
  %910 = vmatpush1.bf16.msra.mxu0 0
  %911 = vmatprep.subr.bf16.mxu0 0
  %912 = vmatpush1.bf16.msra.mxu0 0
  %913 = vmatprep.subr.bf16.mxu0 0
  %914 = vmatpush1.bf16.msra.mxu0 0
  %915 = vmatprep.subr.bf16.mxu0 0
  %916 = vmatpush1.bf16.msra.mxu0 0
  %917 = vmatprep.mubr.bf16.mxu0 0
  %918 = vmatmul.mubr.bf16.gmra.mrb[0].mxu0 %v883
  %v919 = vpop.f32.mrb[0].mxu0
  %v920 = vadd.f32 0.0, %v919
  %v921 = vpop.f32.mrb[0].mxu0
  %v922 = vpop.f32.mrb[0].mxu0
  %v923 = vpop.f32.mrb[0].mxu0
  %924 = vdwg.mxu0
  %v925 = vadd.f32 %v877, %v920
  %v926 = vxor.u32 %v925, 2147483648
  %v927 = vmul.f32 %v926, 1.442695
  %v928 = vpow.pop %v927
  %v929 = vadd.f32 %v928, 1.0
  %v930 = vrcp.pop %v929
  %v931 = vmul.f32 1.0, %v930
  %v932 = vtanh.pop %v925
  %v933 = vsel %vm52, %v932, %v931
  %v934 = vmul.f32 %v933, %v796
  %936 = vrot.lane.b32.xlu0 %v933, 32
  %v937 = vpop.permute.xlu0 %936
  %v939 = vmul.f32 %v933, %v937
  %941 = vrot.lane.b32.xlu0 %v939, 32
  %v942 = vpop.permute.xlu0 %941
  %v944 = vadd.f32 %v934, %v942
  %v945 = vtanh.pop %v944
  %947 = vrot.lane.b32.xlu0 %v945, 32
  %v948 = vpop.permute.xlu0 %947
  %v950 = vmul.f32 %v933, %v948
  %v951 = vadd.f32 %v124, %v871
  %v952 = vxor.u32 %v951, 2147483648
  %v953 = vmul.f32 %v952, 1.442695
  %v954 = vpow.pop %v953
  %v955 = vadd.f32 %v954, 1.0
  %v956 = vrcp.pop %v955
  %v957 = vmul.f32 1.0, %v956
  %v958 = vtanh.pop %v951
  %v959 = vsel %vm52, %v958, %v957
  %v960 = vmul.f32 %v959, %v822
  %962 = vrot.lane.b32.xlu0 %v959, 32
  %v963 = vpop.permute.xlu0 %962
  %v965 = vmul.f32 %v959, %v963
  %967 = vrot.lane.b32.xlu0 %v965, 32
  %v968 = vpop.permute.xlu0 %967
  %v970 = vadd.f32 %v960, %v968
  %v971 = vtanh.pop %v970
  %973 = vrot.lane.b32.xlu0 %v971, 32
  %v974 = vpop.permute.xlu0 %973
  %v976 = vmul.f32 %v959, %v974
  %v977 = vpack.c.bf16 %v976, %v976
  %979 = vrot.lane.b32.xlu0 %v977, 64
  %v980 = vpop.permute.xlu0 %979
  %v982 = vsel %vm162, %v980, 0
  %984 = vmatprep.subr.bf16.mxu0 %v155
  %985 = vmatpush1.bf16.msra.mxu0 %v154
  %986 = vmatprep.subr.bf16.mxu0 %v157
  %987 = vmatpush1.bf16.msra.mxu0 %v156
  %988 = vmatprep.subr.bf16.mxu0 0
  %989 = vmatpush1.bf16.msra.mxu0 0
  %990 = vmatprep.subr.bf16.mxu0 0
  %991 = vmatpush1.bf16.msra.mxu0 0
  %992 = vmatprep.subr.bf16.mxu0 0
  %993 = vmatpush1.bf16.msra.mxu0 0
  %994 = vmatprep.subr.bf16.mxu0 0
  %995 = vmatpush1.bf16.msra.mxu0 0
  %996 = vmatprep.subr.bf16.mxu0 0
  %997 = vmatpush1.bf16.msra.mxu0 0
  %998 = vmatprep.subr.bf16.mxu0 0
  %999 = vmatpush1.bf16.msra.mxu0 0
  %1000 = vmatprep.subr.bf16.mxu0 0
  %1001 = vmatpush1.bf16.msra.mxu0 0
  %1002 = vmatprep.subr.bf16.mxu0 0
  %1003 = vmatpush1.bf16.msra.mxu0 0
  %1004 = vmatprep.subr.bf16.mxu0 0
  %1005 = vmatpush1.bf16.msra.mxu0 0
  %1006 = vmatprep.subr.bf16.mxu0 0
  %1007 = vmatpush1.bf16.msra.mxu0 0
  %1008 = vmatprep.subr.bf16.mxu0 0
  %1009 = vmatpush1.bf16.msra.mxu0 0
  %1010 = vmatprep.subr.bf16.mxu0 0
  %1011 = vmatpush1.bf16.msra.mxu0 0
  %1012 = vmatprep.subr.bf16.mxu0 0
  %1013 = vmatpush1.bf16.msra.mxu0 0
  %1014 = vmatprep.subr.bf16.mxu0 0
  %1015 = vmatpush1.bf16.msra.mxu0 0
  %1016 = vmatprep.mubr.bf16.mxu0 0
  %1017 = vmatmul.mubr.bf16.gmra.mrb[0].mxu0 %v982
  %v1018 = vpop.f32.mrb[0].mxu0
  %v1019 = vadd.f32 0.0, %v1018
  %v1020 = vpop.f32.mrb[0].mxu0
  %v1021 = vadd.f32 0.0, %v1020
  %v1022 = vpop.f32.mrb[0].mxu0
  %v1023 = vpop.f32.mrb[0].mxu0
  %1024 = vdwg.mxu0
  %v1025 = vadd.f32 %v1021, %v140
  %v1026 = vpack.c.bf16 %v950, %v950
  %1028 = vrot.lane.b32.xlu0 %v1026, 64
  %v1029 = vpop.permute.xlu0 %1028
  %v1031 = vsel %vm162, %v1029, 0
  %1033 = vmatprep.subr.bf16.mxu0 0
  %1034 = vmatpush1.bf16.msra.mxu0 %v289
  %1035 = vmatprep.subr.bf16.mxu0 0
  %1036 = vmatpush1.bf16.msra.mxu0 %v290
  %1037 = vmatprep.subr.bf16.mxu0 0
  %1038 = vmatpush1.bf16.msra.mxu0 0
  %1039 = vmatprep.subr.bf16.mxu0 0
  %1040 = vmatpush1.bf16.msra.mxu0 0
  %1041 = vmatprep.subr.bf16.mxu0 0
  %1042 = vmatpush1.bf16.msra.mxu0 0
  %1043 = vmatprep.subr.bf16.mxu0 0
  %1044 = vmatpush1.bf16.msra.mxu0 0
  %1045 = vmatprep.subr.bf16.mxu0 0
  %1046 = vmatpush1.bf16.msra.mxu0 0
  %1047 = vmatprep.subr.bf16.mxu0 0
  %1048 = vmatpush1.bf16.msra.mxu0 0
  %1049 = vmatprep.subr.bf16.mxu0 0
  %1050 = vmatpush1.bf16.msra.mxu0 0
  %1051 = vmatprep.subr.bf16.mxu0 0
  %1052 = vmatpush1.bf16.msra.mxu0 0
  %1053 = vmatprep.subr.bf16.mxu0 0
  %1054 = vmatpush1.bf16.msra.mxu0 0
  %1055 = vmatprep.subr.bf16.mxu0 0
  %1056 = vmatpush1.bf16.msra.mxu0 0
  %1057 = vmatprep.subr.bf16.mxu0 0
  %1058 = vmatpush1.bf16.msra.mxu0 0
  %1059 = vmatprep.subr.bf16.mxu0 0
  %1060 = vmatpush1.bf16.msra.mxu0 0
  %1061 = vmatprep.subr.bf16.mxu0 0
  %1062 = vmatpush1.bf16.msra.mxu0 0
  %1063 = vmatprep.subr.bf16.mxu0 0
  %1064 = vmatpush1.bf16.msra.mxu0 0
  %1065 = vmatprep.mubr.bf16.mxu0 0
  %1066 = vmatmul.mubr.bf16.gmra.mrb[0].mxu0 %v1031
  %v1067 = vpop.f32.mrb[0].mxu0
  %v1068 = vadd.f32 0.0, %v1067
  %v1069 = vpop.f32.mrb[0].mxu0
  %v1070 = vpop.f32.mrb[0].mxu0
  %v1071 = vpop.f32.mrb[0].mxu0
  %1072 = vdwg.mxu0
  %v1073 = vadd.f32 %v1025, %v1068
  %v1074 = vxor.u32 %v1073, 2147483648
  %v1075 = vmul.f32 %v1074, 1.442695
  %v1076 = vpow.pop %v1075
  %v1077 = vadd.f32 %v1076, 1.0
  %v1078 = vrcp.pop %v1077
  %v1079 = vmul.f32 1.0, %v1078
  %v1080 = vtanh.pop %v1073
  %v1081 = vsel %vm52, %v1080, %v1079
  %v1082 = vmul.f32 %v1081, %v944
  %1084 = vrot.lane.b32.xlu0 %v1081, 32
  %v1085 = vpop.permute.xlu0 %1084
  %v1087 = vmul.f32 %v1081, %v1085
  %1089 = vrot.lane.b32.xlu0 %v1087, 32
  %v1090 = vpop.permute.xlu0 %1089
  %v1092 = vadd.f32 %v1082, %v1090
  %v1093 = vtanh.pop %v1092
  %1095 = vrot.lane.b32.xlu0 %v1093, 32
  %v1096 = vpop.permute.xlu0 %1095
  %v1098 = vmul.f32 %v1081, %v1096
  %v1099 = vadd.f32 %v125, %v1019
  %v1100 = vxor.u32 %v1099, 2147483648
  %v1101 = vmul.f32 %v1100, 1.442695
  %v1102 = vpow.pop %v1101
  %v1103 = vadd.f32 %v1102, 1.0
  %v1104 = vrcp.pop %v1103
  %v1105 = vmul.f32 1.0, %v1104
  %v1106 = vtanh.pop %v1099
  %v1107 = vsel %vm52, %v1106, %v1105
  %v1108 = vmul.f32 %v1107, %v970
  %1110 = vrot.lane.b32.xlu0 %v1107, 32
  %v1111 = vpop.permute.xlu0 %1110
  %v1113 = vmul.f32 %v1107, %v1111
  %1115 = vrot.lane.b32.xlu0 %v1113, 32
  %v1116 = vpop.permute.xlu0 %1115
  %v1118 = vadd.f32 %v1108, %v1116
  %v1119 = vtanh.pop %v1118
  %1121 = vrot.lane.b32.xlu0 %v1119, 32
  %v1122 = vpop.permute.xlu0 %1121
  %v1124 = vmul.f32 %v1107, %v1122
  %v1125 = vpack.c.bf16 %v1124, %v1124
  %1127 = vrot.lane.b32.xlu0 %v1125, 64
  %v1128 = vpop.permute.xlu0 %1127
  %v1130 = vsel %vm162, %v1128, 0
  %1132 = vmatprep.subr.bf16.mxu0 %v155
  %1133 = vmatpush1.bf16.msra.mxu0 %v154
  %1134 = vmatprep.subr.bf16.mxu0 %v157
  %1135 = vmatpush1.bf16.msra.mxu0 %v156
  %1136 = vmatprep.subr.bf16.mxu0 0
  %1137 = vmatpush1.bf16.msra.mxu0 0
  %1138 = vmatprep.subr.bf16.mxu0 0
  %1139 = vmatpush1.bf16.msra.mxu0 0
  %1140 = vmatprep.subr.bf16.mxu0 0
  %1141 = vmatpush1.bf16.msra.mxu0 0
  %1142 = vmatprep.subr.bf16.mxu0 0
  %1143 = vmatpush1.bf16.msra.mxu0 0
  %1144 = vmatprep.subr.bf16.mxu0 0
  %1145 = vmatpush1.bf16.msra.mxu0 0
  %1146 = vmatprep.subr.bf16.mxu0 0
  %1147 = vmatpush1.bf16.msra.mxu0 0
  %1148 = vmatprep.subr.bf16.mxu0 0
  %1149 = vmatpush1.bf16.msra.mxu0 0
  %1150 = vmatprep.subr.bf16.mxu0 0
  %1151 = vmatpush1.bf16.msra.mxu0 0
  %1152 = vmatprep.subr.bf16.mxu0 0
  %1153 = vmatpush1.bf16.msra.mxu0 0
  %1154 = vmatprep.subr.bf16.mxu0 0
  %1155 = vmatpush1.bf16.msra.mxu0 0
  %1156 = vmatprep.subr.bf16.mxu0 0
  %1157 = vmatpush1.bf16.msra.mxu0 0
  %1158 = vmatprep.subr.bf16.mxu0 0
  %1159 = vmatpush1.bf16.msra.mxu0 0
  %1160 = vmatprep.subr.bf16.mxu0 0
  %1161 = vmatpush1.bf16.msra.mxu0 0
  %1162 = vmatprep.subr.bf16.mxu0 0
  %1163 = vmatpush1.bf16.msra.mxu0 0
  %1164 = vmatprep.mubr.bf16.mxu0 0
  %1165 = vmatmul.mubr.bf16.gmra.mrb[0].mxu0 %v1130
  %v1166 = vpop.f32.mrb[0].mxu0
  %v1167 = vadd.f32 0.0, %v1166
  %v1168 = vpop.f32.mrb[0].mxu0
  %v1169 = vadd.f32 0.0, %v1168
  %v1170 = vpop.f32.mrb[0].mxu0
  %v1171 = vpop.f32.mrb[0].mxu0
  %1172 = vdwg.mxu0
  %v1173 = vadd.f32 %v1169, %v140
  %v1174 = vpack.c.bf16 %v1098, %v1098
  %1176 = vrot.lane.b32.xlu0 %v1174, 64
  %v1177 = vpop.permute.xlu0 %1176
  %v1179 = vsel %vm162, %v1177, 0
  %1181 = vmatprep.subr.bf16.mxu0 0
  %1182 = vmatpush1.bf16.msra.mxu0 %v289
  %1183 = vmatprep.subr.bf16.mxu0 0
  %1184 = vmatpush1.bf16.msra.mxu0 %v290
  %1185 = vmatprep.subr.bf16.mxu0 0
  %1186 = vmatpush1.bf16.msra.mxu0 0
  %1187 = vmatprep.subr.bf16.mxu0 0
  %1188 = vmatpush1.bf16.msra.mxu0 0
  %1189 = vmatprep.subr.bf16.mxu0 0
  %1190 = vmatpush1.bf16.msra.mxu0 0
  %1191 = vmatprep.subr.bf16.mxu0 0
  %1192 = vmatpush1.bf16.msra.mxu0 0
  %1193 = vmatprep.subr.bf16.mxu0 0
  %1194 = vmatpush1.bf16.msra.mxu0 0
  %1195 = vmatprep.subr.bf16.mxu0 0
  %1196 = vmatpush1.bf16.msra.mxu0 0
  %1197 = vmatprep.subr.bf16.mxu0 0
  %1198 = vmatpush1.bf16.msra.mxu0 0
  %1199 = vmatprep.subr.bf16.mxu0 0
  %1200 = vmatpush1.bf16.msra.mxu0 0
  %1201 = vmatprep.subr.bf16.mxu0 0
  %1202 = vmatpush1.bf16.msra.mxu0 0
  %1203 = vmatprep.subr.bf16.mxu0 0
  %1204 = vmatpush1.bf16.msra.mxu0 0
  %1205 = vmatprep.subr.bf16.mxu0 0
  %1206 = vmatpush1.bf16.msra.mxu0 0
  %1207 = vmatprep.subr.bf16.mxu0 0
  %1208 = vmatpush1.bf16.msra.mxu0 0
  %1209 = vmatprep.subr.bf16.mxu0 0
  %1210 = vmatpush1.bf16.msra.mxu0 0
  %1211 = vmatprep.subr.bf16.mxu0 0
  %1212 = vmatpush1.bf16.msra.mxu0 0
  %1213 = vmatprep.mubr.bf16.mxu0 0
  %1214 = vmatmul.mubr.bf16.gmra.mrb[0].mxu0 %v1179
  %v1215 = vpop.f32.mrb[0].mxu0
  %v1216 = vadd.f32 0.0, %v1215
  %v1217 = vpop.f32.mrb[0].mxu0
  %v1218 = vpop.f32.mrb[0].mxu0
  %v1219 = vpop.f32.mrb[0].mxu0
  %1220 = vdwg.mxu0
  %v1221 = vadd.f32 %v1173, %v1216
  %v1222 = vxor.u32 %v1221, 2147483648
  %v1223 = vmul.f32 %v1222, 1.442695
  %v1224 = vpow.pop %v1223
  %v1225 = vadd.f32 %v1224, 1.0
  %v1226 = vrcp.pop %v1225
  %v1227 = vmul.f32 1.0, %v1226
  %v1228 = vtanh.pop %v1221
  %v1229 = vsel %vm52, %v1228, %v1227
  %v1230 = vmul.f32 %v1229, %v1092
  %1232 = vrot.lane.b32.xlu0 %v1229, 32
  %v1233 = vpop.permute.xlu0 %1232
  %v1235 = vmul.f32 %v1229, %v1233
  %1237 = vrot.lane.b32.xlu0 %v1235, 32
  %v1238 = vpop.permute.xlu0 %1237
  %v1240 = vadd.f32 %v1230, %v1238
  %v1241 = vtanh.pop %v1240
  %1243 = vrot.lane.b32.xlu0 %v1241, 32
  %v1244 = vpop.permute.xlu0 %1243
  %v1246 = vmul.f32 %v1229, %v1244
  %v1247 = vadd.f32 %v126, %v1167
  %v1248 = vxor.u32 %v1247, 2147483648
  %v1249 = vmul.f32 %v1248, 1.442695
  %v1250 = vpow.pop %v1249
  %v1251 = vadd.f32 %v1250, 1.0
  %v1252 = vrcp.pop %v1251
  %v1253 = vmul.f32 1.0, %v1252
  %v1254 = vtanh.pop %v1247
  %v1255 = vsel %vm52, %v1254, %v1253
  %v1256 = vmul.f32 %v1255, %v1118
  %1258 = vrot.lane.b32.xlu0 %v1255, 32
  %v1259 = vpop.permute.xlu0 %1258
  %v1261 = vmul.f32 %v1255, %v1259
  %1263 = vrot.lane.b32.xlu0 %v1261, 32
  %v1264 = vpop.permute.xlu0 %1263
  %v1266 = vadd.f32 %v1256, %v1264
  %v1267 = vtanh.pop %v1266
  %1269 = vrot.lane.b32.xlu0 %v1267, 32
  %v1270 = vpop.permute.xlu0 %1269
  %v1272 = vmul.f32 %v1255, %v1270
  %v1273 = vpack.c.bf16 %v1272, %v1272
  %1275 = vrot.lane.b32.xlu0 %v1273, 64
  %v1276 = vpop.permute.xlu0 %1275
  %v1278 = vsel %vm162, %v1276, 0
  %1280 = vmatprep.subr.bf16.mxu0 %v155
  %1281 = vmatpush1.bf16.msra.mxu0 %v154
  %1282 = vmatprep.subr.bf16.mxu0 %v157
  %1283 = vmatpush1.bf16.msra.mxu0 %v156
  %1284 = vmatprep.subr.bf16.mxu0 0
  %1285 = vmatpush1.bf16.msra.mxu0 0
  %1286 = vmatprep.subr.bf16.mxu0 0
  %1287 = vmatpush1.bf16.msra.mxu0 0
  %1288 = vmatprep.subr.bf16.mxu0 0
  %1289 = vmatpush1.bf16.msra.mxu0 0
  %1290 = vmatprep.subr.bf16.mxu0 0
  %1291 = vmatpush1.bf16.msra.mxu0 0
  %1292 = vmatprep.subr.bf16.mxu0 0
  %1293 = vmatpush1.bf16.msra.mxu0 0
  %1294 = vmatprep.subr.bf16.mxu0 0
  %1295 = vmatpush1.bf16.msra.mxu0 0
  %1296 = vmatprep.subr.bf16.mxu0 0
  %1297 = vmatpush1.bf16.msra.mxu0 0
  %1298 = vmatprep.subr.bf16.mxu0 0
  %1299 = vmatpush1.bf16.msra.mxu0 0
  %1300 = vmatprep.subr.bf16.mxu0 0
  %1301 = vmatpush1.bf16.msra.mxu0 0
  %1302 = vmatprep.subr.bf16.mxu0 0
  %1303 = vmatpush1.bf16.msra.mxu0 0
  %1304 = vmatprep.subr.bf16.mxu0 0
  %1305 = vmatpush1.bf16.msra.mxu0 0
  %1306 = vmatprep.subr.bf16.mxu0 0
  %1307 = vmatpush1.bf16.msra.mxu0 0
  %1308 = vmatprep.subr.bf16.mxu0 0
  %1309 = vmatpush1.bf16.msra.mxu0 0
  %1310 = vmatprep.subr.bf16.mxu0 0
  %1311 = vmatpush1.bf16.msra.mxu0 0
  %1312 = vmatprep.mubr.bf16.mxu0 0
  %1313 = vmatmul.mubr.bf16.gmra.mrb[0].mxu0 %v1278
  %v1314 = vpop.f32.mrb[0].mxu0
  %v1315 = vpop.f32.mrb[0].mxu0
  %v1316 = vadd.f32 0.0, %v1315
  %v1317 = vpop.f32.mrb[0].mxu0
  %v1318 = vpop.f32.mrb[0].mxu0
  %1319 = vdwg.mxu0
  %v1320 = vadd.f32 %v1316, %v140
  %v1321 = vpack.c.bf16 %v1246, %v1246
  %1323 = vrot.lane.b32.xlu0 %v1321, 64
  %v1324 = vpop.permute.xlu0 %1323
  %v1326 = vsel %vm162, %v1324, 0
  %1328 = vmatprep.subr.bf16.mxu0 0
  %1329 = vmatpush1.bf16.msra.mxu0 %v289
  %1330 = vmatprep.subr.bf16.mxu0 0
  %1331 = vmatpush1.bf16.msra.mxu0 %v290
  %1332 = vmatprep.subr.bf16.mxu0 0
  %1333 = vmatpush1.bf16.msra.mxu0 0
  %1334 = vmatprep.subr.bf16.mxu0 0
  %1335 = vmatpush1.bf16.msra.mxu0 0
  %1336 = vmatprep.subr.bf16.mxu0 0
  %1337 = vmatpush1.bf16.msra.mxu0 0
  %1338 = vmatprep.subr.bf16.mxu0 0
  %1339 = vmatpush1.bf16.msra.mxu0 0
  %1340 = vmatprep.subr.bf16.mxu0 0
  %1341 = vmatpush1.bf16.msra.mxu0 0
  %1342 = vmatprep.subr.bf16.mxu0 0
  %1343 = vmatpush1.bf16.msra.mxu0 0
  %1344 = vmatprep.subr.bf16.mxu0 0
  %1345 = vmatpush1.bf16.msra.mxu0 0
  %1346 = vmatprep.subr.bf16.mxu0 0
  %1347 = vmatpush1.bf16.msra.mxu0 0
  %1348 = vmatprep.subr.bf16.mxu0 0
  %1349 = vmatpush1.bf16.msra.mxu0 0
  %1350 = vmatprep.subr.bf16.mxu0 0
  %1351 = vmatpush1.bf16.msra.mxu0 0
  %1352 = vmatprep.subr.bf16.mxu0 0
  %1353 = vmatpush1.bf16.msra.mxu0 0
  %1354 = vmatprep.subr.bf16.mxu0 0
  %1355 = vmatpush1.bf16.msra.mxu0 0
  %1356 = vmatprep.subr.bf16.mxu0 0
  %1357 = vmatpush1.bf16.msra.mxu0 0
  %1358 = vmatprep.subr.bf16.mxu0 0
  %1359 = vmatpush1.bf16.msra.mxu0 0
  %1360 = vmatprep.mubr.bf16.mxu0 0
  %1361 = vmatmul.mubr.bf16.gmra.mrb[0].mxu0 %v1326
  %v1362 = vpop.f32.mrb[0].mxu0
  %v1363 = vadd.f32 0.0, %v1362
  %v1364 = vpop.f32.mrb[0].mxu0
  %v1365 = vpop.f32.mrb[0].mxu0
  %v1366 = vpop.f32.mrb[0].mxu0
  %1367 = vdwg.mxu0
  %v1368 = vadd.f32 %v1320, %v1363
  %v1369 = vxor.u32 %v1368, 2147483648
  %v1370 = vmul.f32 %v1369, 1.442695
  %v1371 = vpow.pop %v1370
  %v1372 = vadd.f32 %v1371, 1.0
  %v1373 = vrcp.pop %v1372
  %v1374 = vmul.f32 1.0, %v1373
  %v1375 = vtanh.pop %v1368
  %v1376 = vsel %vm52, %v1375, %v1374
  %v1377 = vmul.f32 %v1376, %v1240
  %1379 = vrot.lane.b32.xlu0 %v1376, 32
  %v1380 = vpop.permute.xlu0 %1379
  %v1382 = vmul.f32 %v1376, %v1380
  %1384 = vrot.lane.b32.xlu0 %v1382, 32
  %v1385 = vpop.permute.xlu0 %1384
  %v1387 = vadd.f32 %v1377, %v1385
  %v1388 = vtanh.pop %v1387
  %1390 = vrot.lane.b32.xlu0 %v1388, 32
  %v1391 = vpop.permute.xlu0 %1390
  %v1393 = vmul.f32 %v1376, %v1391
  %v1394 = vld [vmem:[%s1] sm:$0xff]
  %v1395 = vld [vmem:[%s1 + $0x8] sm:$0xff]
  %v1396 = vld [vmem:[%s1 + $0x10] sm:$0xff]
  %v1397 = vld [vmem:[%s1 + $0x18] sm:$0xff]
  %v1398 = vld [vmem:[%s1 + $0x20] sm:$0xff]
  %v1399 = vld [vmem:[%s1 + $0x28] sm:$0xff]
  %v1400 = vld [vmem:[%s1 + $0x30] sm:$0xff]
  %v1401 = vld [vmem:[%s1 + $0x38] sm:$0xff]
  %vm1402 = vcmp.gt.f32.partialorder %v1394, 0.5
  %vm1403 = vcmp.gt.f32.partialorder %v1395, 0.5
  %vm1404 = vcmp.gt.f32.partialorder %v1396, 0.5
  %vm1405 = vcmp.gt.f32.partialorder %v1397, 0.5
  %vm1406 = vcmp.gt.f32.partialorder %v1398, 0.5
  %vm1407 = vcmp.gt.f32.partialorder %v1399, 0.5
  %vm1408 = vcmp.gt.f32.partialorder %v1400, 0.5
  %vm1409 = vcmp.gt.f32.partialorder %v1401, 0.5
  %v1410 = vld [vmem:[%s6 + $0x1] sm:$0x1]
  %v1411 = vld [vmem:[%s6] sm:$0x1]
  %v1412 = vsel %vm1402, 1, 0
  %v1413 = vsel %vm1403, 1, 0
  %v1414 = vsel %vm1404, 1, 0
  %v1415 = vsel %vm1405, 1, 0
  %v1416 = vsel %vm1406, 1, 0
  %v1417 = vsel %vm1407, 1, 0
  %v1418 = vsel %vm1408, 1, 0
  %v1419 = vsel %vm1409, 1, 0
  %1420 = vset.pattern.permute.xlu0 0
  %1421 = vperm.xlu0 %1420, %v1412
  %v1422 = vpop.permute.xlu0 %1421
  %1423 = vset.pattern.permute.xlu0 0
  %1424 = vperm.xlu0 %1423, %v1413
  %v1425 = vpop.permute.xlu0 %1424
  %1426 = vset.pattern.permute.xlu0 0
  %1427 = vperm.xlu0 %1426, %v1414
  %v1428 = vpop.permute.xlu0 %1427
  %1429 = vset.pattern.permute.xlu0 0
  %1430 = vperm.xlu0 %1429, %v1415
  %v1431 = vpop.permute.xlu0 %1430
  %1432 = vset.pattern.permute.xlu0 0
  %1433 = vperm.xlu0 %1432, %v1416
  %v1434 = vpop.permute.xlu0 %1433
  %1435 = vset.pattern.permute.xlu0 0
  %1436 = vperm.xlu0 %1435, %v1417
  %v1437 = vpop.permute.xlu0 %1436
  %1438 = vset.pattern.permute.xlu0 0
  %1439 = vperm.xlu0 %1438, %v1418
  %v1440 = vpop.permute.xlu0 %1439
  %1441 = vset.pattern.permute.xlu0 0
  %1442 = vperm.xlu0 %1441, %v1419
  %v1443 = vpop.permute.xlu0 %1442
  %vm1444 = vcmp.eq.s32.totalorder %v1422, 1
  %vm1445 = vcmp.eq.s32.totalorder %v1425, 1
  %vm1446 = vcmp.eq.s32.totalorder %v1428, 1
  %vm1447 = vcmp.eq.s32.totalorder %v1431, 1
  %vm1448 = vcmp.eq.s32.totalorder %v1434, 1
  %vm1449 = vcmp.eq.s32.totalorder %v1437, 1
  %vm1450 = vcmp.eq.s32.totalorder %v1440, 1
  %vm1451 = vcmp.eq.s32.totalorder %v1443, 1
  %v1452 = vlaneseq
  %v1453 = vshrl.u32 %v1452, 7
  %v1454 = vsub.s32 0, %v1453
  %v1455 = vrot.slane %v1410, %v1454
  %v1456 = vlaneseq
  %v1457 = vshrl.u32 %v1456, 7
  %v1458 = vsub.s32 0, %v1457
  %v1459 = vrot.slane %v1411, %v1458
  %v1460 = vsel %vm1444, %v1455, %v1459
  %v1461 = vsel %vm1445, %v1455, %v1459
  %v1462 = vsel %vm1446, %v1455, %v1459
  %v1463 = vsel %vm1447, %v1455, %v1459
  %v1464 = vsel %vm1448, %v1455, %v1459
  %v1465 = vsel %vm1449, %v1455, %v1459
  %v1466 = vsel %vm1450, %v1455, %v1459
  %v1467 = vsel %vm1451, %v1455, %v1459
  %v1468 = vld [vmem:[%s7] sm:$0xff]
  %v1469 = vld [vmem:[%s7 + $0x8] sm:$0xff]
  %v1470 = vld [vmem:[%s7 + $0x10] sm:$0xff]
  %v1471 = vld [vmem:[%s7 + $0x18] sm:$0xff]
  %v1472 = vld [vmem:[%s8] sm:$0xf]
  %v1473 = vld [vmem:[%s8 + $0x4] sm:$0xf]
  %v1474 = vld [vmem:[%s8 + $0x8] sm:$0xf]
  %v1475 = vld [vmem:[%s8 + $0xc] sm:$0xf]
  %v1476 = vld [vmem:[%s9] sm:$0x1]
  %v1478 = vlaneseq
  %v1479 = vshrl.u32 %v1478, 7
  %v1480 = vsub.s32 0, %v1479
  %v1481 = vrot.slane %v1476, %v1480
  %v1487 = vunpack.c.l.b16 %v1468
  %v1488 = vunpack.c.h.b16 %v1468
  %v1489 = vunpack.c.l.b16 %v1469
  %v1490 = vunpack.c.h.b16 %v1469
  %v1491 = vunpack.c.l.b16 %v1470
  %v1492 = vunpack.c.h.b16 %v1470
  %v1493 = vunpack.c.l.b16 %v1471
  %v1494 = vunpack.c.h.b16 %v1471
  %v1495 = vpack.c.b16 %v1489, %v1487
  %v1496 = vpack.c.b16 %v1490, %v1488
  %v1497 = vpack.c.b16 %v1493, %v1491
  %v1498 = vpack.c.b16 %v1494, %v1492
  %1503 = vmatprep.subr.bf16.mxu0 %v1496
  %1504 = vmatpush1.bf16.msra.mxu0 %v1495
  %1505 = vmatprep.subr.bf16.mxu0 %v1498
  %1506 = vmatpush1.bf16.msra.mxu0 %v1497
  %1507 = vmatprep.subr.bf16.mxu0 0
  %1508 = vmatpush1.bf16.msra.mxu0 0
  %1509 = vmatprep.subr.bf16.mxu0 0
  %1510 = vmatpush1.bf16.msra.mxu0 0
  %1511 = vmatprep.subr.bf16.mxu0 0
  %1512 = vmatpush1.bf16.msra.mxu0 0
  %1513 = vmatprep.subr.bf16.mxu0 0
  %1514 = vmatpush1.bf16.msra.mxu0 0
  %1515 = vmatprep.subr.bf16.mxu0 0
  %1516 = vmatpush1.bf16.msra.mxu0 0
  %1517 = vmatprep.subr.bf16.mxu0 0
  %1518 = vmatpush1.bf16.msra.mxu0 0
  %1519 = vmatprep.subr.bf16.mxu0 0
  %1520 = vmatpush1.bf16.msra.mxu0 0
  %1521 = vmatprep.subr.bf16.mxu0 0
  %1522 = vmatpush1.bf16.msra.mxu0 0
  %1523 = vmatprep.subr.bf16.mxu0 0
  %1524 = vmatpush1.bf16.msra.mxu0 0
  %1525 = vmatprep.subr.bf16.mxu0 0
  %1526 = vmatpush1.bf16.msra.mxu0 0
  %1527 = vmatprep.subr.bf16.mxu0 0
  %1528 = vmatpush1.bf16.msra.mxu0 0
  %1529 = vmatprep.subr.bf16.mxu0 0
  %1530 = vmatpush1.bf16.msra.mxu0 0
  %1531 = vmatprep.subr.bf16.mxu0 0
  %1532 = vmatpush1.bf16.msra.mxu0 0
  %1533 = vmatprep.subr.bf16.mxu0 0
  %1534 = vmatpush1.bf16.msra.mxu0 0
  %1535 = vmatprep.mubr.bf16.mxu0 0
  %1536 = vmatmul.mubr.bf16.gmra.mrb[0].mxu0 %v1278
  %v1537 = vpop.f32.mrb[0].mxu0
  %v1538 = vadd.f32 0.0, %v1537
  %v1539 = vpop.f32.mrb[0].mxu0
  %v1540 = vpop.f32.mrb[0].mxu0
  %v1541 = vpop.f32.mrb[0].mxu0
  %1542 = vdwg.mxu0
  %v1543 = vadd.f32 %v1460, %v1538
  %v1544 = vxor.u32 %v1543, 2147483648
  %v1545 = vmul.f32 %v1544, 1.442695
  %v1546 = vpow.pop %v1545
  %v1547 = vadd.f32 %v1546, 1.0
  %v1548 = vrcp.pop %v1547
  %v1549 = vmul.f32 1.0, %v1548
  %v1550 = vtanh.pop %v1543
  %v1551 = vsel %vm52, %v1550, %v1549
  %v1552 = vmul.f32 %v1551, %v1266
  %1554 = vrot.lane.b32.xlu0 %v1551, 32
  %v1555 = vpop.permute.xlu0 %1554
  %v1557 = vmul.f32 %v1551, %v1555
  %1559 = vrot.lane.b32.xlu0 %v1557, 32
  %v1560 = vpop.permute.xlu0 %1559
  %v1562 = vadd.f32 %v1552, %v1560
  %v1563 = vtanh.pop %v1562
  %1565 = vrot.lane.b32.xlu0 %v1563, 32
  %v1566 = vpop.permute.xlu0 %1565
  %v1568 = vmul.f32 %v1551, %v1566
  %v1569 = vpack.c.bf16 %v1568, %v1568
  %1571 = vrot.lane.b32.xlu0 %v1569, 64
  %v1572 = vpop.permute.xlu0 %1571
  %v1574 = vsel %vm162, %v1572, 0
  %1576 = vmatprep.subr.bf16.mxu0 %v1496
  %1577 = vmatpush1.bf16.msra.mxu0 %v1495
  %1578 = vmatprep.subr.bf16.mxu0 %v1498
  %1579 = vmatpush1.bf16.msra.mxu0 %v1497
  %1580 = vmatprep.subr.bf16.mxu0 0
  %1581 = vmatpush1.bf16.msra.mxu0 0
  %1582 = vmatprep.subr.bf16.mxu0 0
  %1583 = vmatpush1.bf16.msra.mxu0 0
  %1584 = vmatprep.subr.bf16.mxu0 0
  %1585 = vmatpush1.bf16.msra.mxu0 0
  %1586 = vmatprep.subr.bf16.mxu0 0
  %1587 = vmatpush1.bf16.msra.mxu0 0
  %1588 = vmatprep.subr.bf16.mxu0 0
  %1589 = vmatpush1.bf16.msra.mxu0 0
  %1590 = vmatprep.subr.bf16.mxu0 0
  %1591 = vmatpush1.bf16.msra.mxu0 0
  %1592 = vmatprep.subr.bf16.mxu0 0
  %1593 = vmatpush1.bf16.msra.mxu0 0
  %1594 = vmatprep.subr.bf16.mxu0 0
  %1595 = vmatpush1.bf16.msra.mxu0 0
  %1596 = vmatprep.subr.bf16.mxu0 0
  %1597 = vmatpush1.bf16.msra.mxu0 0
  %1598 = vmatprep.subr.bf16.mxu0 0
  %1599 = vmatpush1.bf16.msra.mxu0 0
  %1600 = vmatprep.subr.bf16.mxu0 0
  %1601 = vmatpush1.bf16.msra.mxu0 0
  %1602 = vmatprep.subr.bf16.mxu0 0
  %1603 = vmatpush1.bf16.msra.mxu0 0
  %1604 = vmatprep.subr.bf16.mxu0 0
  %1605 = vmatpush1.bf16.msra.mxu0 0
  %1606 = vmatprep.subr.bf16.mxu0 0
  %1607 = vmatpush1.bf16.msra.mxu0 0
  %1608 = vmatprep.mubr.bf16.mxu0 0
  %1609 = vmatmul.mubr.bf16.gmra.mrb[0].mxu0 %v1574
  %v1610 = vpop.f32.mrb[0].mxu0
  %v1611 = vadd.f32 0.0, %v1610
  %v1612 = vpop.f32.mrb[0].mxu0
  %v1613 = vadd.f32 0.0, %v1612
  %v1614 = vpop.f32.mrb[0].mxu0
  %v1615 = vpop.f32.mrb[0].mxu0
  %1616 = vdwg.mxu0
  %v1617 = vadd.f32 %v1613, %v1481
  %v1618 = vpack.c.bf16 %v1393, %v1393
  %1620 = vrot.lane.b32.xlu0 %v1618, 64
  %v1621 = vpop.permute.xlu0 %1620
  %v1626 = vunpack.c.l.b16 %v1472
  %v1627 = vunpack.c.l.b16 %v1473
  %v1628 = vunpack.c.l.b16 %v1474
  %v1629 = vunpack.c.l.b16 %v1475
  %v1630 = vpack.c.b16 %v1627, %v1626
  %v1631 = vpack.c.b16 %v1629, %v1628
  %v1635 = vsel %vm162, %v1621, 0
  %1637 = vmatprep.subr.bf16.mxu0 0
  %1638 = vmatpush1.bf16.msra.mxu0 %v1630
  %1639 = vmatprep.subr.bf16.mxu0 0
  %1640 = vmatpush1.bf16.msra.mxu0 %v1631
  %1641 = vmatprep.subr.bf16.mxu0 0
  %1642 = vmatpush1.bf16.msra.mxu0 0
  %1643 = vmatprep.subr.bf16.mxu0 0
  %1644 = vmatpush1.bf16.msra.mxu0 0
  %1645 = vmatprep.subr.bf16.mxu0 0
  %1646 = vmatpush1.bf16.msra.mxu0 0
  %1647 = vmatprep.subr.bf16.mxu0 0
  %1648 = vmatpush1.bf16.msra.mxu0 0
  %1649 = vmatprep.subr.bf16.mxu0 0
  %1650 = vmatpush1.bf16.msra.mxu0 0
  %1651 = vmatprep.subr.bf16.mxu0 0
  %1652 = vmatpush1.bf16.msra.mxu0 0
  %1653 = vmatprep.subr.bf16.mxu0 0
  %1654 = vmatpush1.bf16.msra.mxu0 0
  %1655 = vmatprep.subr.bf16.mxu0 0
  %1656 = vmatpush1.bf16.msra.mxu0 0
  %1657 = vmatprep.subr.bf16.mxu0 0
  %1658 = vmatpush1.bf16.msra.mxu0 0
  %1659 = vmatprep.subr.bf16.mxu0 0
  %1660 = vmatpush1.bf16.msra.mxu0 0
  %1661 = vmatprep.subr.bf16.mxu0 0
  %1662 = vmatpush1.bf16.msra.mxu0 0
  %1663 = vmatprep.subr.bf16.mxu0 0
  %1664 = vmatpush1.bf16.msra.mxu0 0
  %1665 = vmatprep.subr.bf16.mxu0 0
  %1666 = vmatpush1.bf16.msra.mxu0 0
  %1667 = vmatprep.subr.bf16.mxu0 0
  %1668 = vmatpush1.bf16.msra.mxu0 0
  %1669 = vmatprep.mubr.bf16.mxu0 0
  %1670 = vmatmul.mubr.bf16.gmra.mrb[0].mxu0 %v1635
  %v1671 = vpop.f32.mrb[0].mxu0
  %v1672 = vadd.f32 0.0, %v1671
  %v1673 = vpop.f32.mrb[0].mxu0
  %v1674 = vpop.f32.mrb[0].mxu0
  %v1675 = vpop.f32.mrb[0].mxu0
  %1676 = vdwg.mxu0
  %v1677 = vadd.f32 %v1617, %v1672
  %v1678 = vxor.u32 %v1677, 2147483648
  %v1679 = vmul.f32 %v1678, 1.442695
  %v1680 = vpow.pop %v1679
  %v1681 = vadd.f32 %v1680, 1.0
  %v1682 = vrcp.pop %v1681
  %v1683 = vmul.f32 1.0, %v1682
  %v1684 = vtanh.pop %v1677
  %v1685 = vsel %vm52, %v1684, %v1683
  %v1686 = vmul.f32 %v1685, %v1387
  %1688 = vrot.lane.b32.xlu0 %v1685, 32
  %v1689 = vpop.permute.xlu0 %1688
  %v1691 = vmul.f32 %v1685, %v1689
  %1693 = vrot.lane.b32.xlu0 %v1691, 32
  %v1694 = vpop.permute.xlu0 %1693
  %v1696 = vadd.f32 %v1686, %v1694
  %v1697 = vtanh.pop %v1696
  %1699 = vrot.lane.b32.xlu0 %v1697, 32
  %v1700 = vpop.permute.xlu0 %1699
  %v1702 = vmul.f32 %v1685, %v1700
  %v1703 = vadd.f32 %v1461, %v1611
  %v1704 = vxor.u32 %v1703, 2147483648
  %v1705 = vmul.f32 %v1704, 1.442695
  %v1706 = vpow.pop %v1705
  %v1707 = vadd.f32 %v1706, 1.0
  %v1708 = vrcp.pop %v1707
  %v1709 = vmul.f32 1.0, %v1708
  %v1710 = vtanh.pop %v1703
  %v1711 = vsel %vm52, %v1710, %v1709
  %v1712 = vmul.f32 %v1711, %v1562
  %1714 = vrot.lane.b32.xlu0 %v1711, 32
  %v1715 = vpop.permute.xlu0 %1714
  %v1717 = vmul.f32 %v1711, %v1715
  %1719 = vrot.lane.b32.xlu0 %v1717, 32
  %v1720 = vpop.permute.xlu0 %1719
  %v1722 = vadd.f32 %v1712, %v1720
  %v1723 = vtanh.pop %v1722
  %1725 = vrot.lane.b32.xlu0 %v1723, 32
  %v1726 = vpop.permute.xlu0 %1725
  %v1728 = vmul.f32 %v1711, %v1726
  %v1729 = vpack.c.bf16 %v1728, %v1728
  %1731 = vrot.lane.b32.xlu0 %v1729, 64
  %v1732 = vpop.permute.xlu0 %1731
  %v1734 = vsel %vm162, %v1732, 0
  %1736 = vmatprep.subr.bf16.mxu0 %v1496
  %1737 = vmatpush1.bf16.msra.mxu0 %v1495
  %1738 = vmatprep.subr.bf16.mxu0 %v1498
  %1739 = vmatpush1.bf16.msra.mxu0 %v1497
  %1740 = vmatprep.subr.bf16.mxu0 0
  %1741 = vmatpush1.bf16.msra.mxu0 0
  %1742 = vmatprep.subr.bf16.mxu0 0
  %1743 = vmatpush1.bf16.msra.mxu0 0
  %1744 = vmatprep.subr.bf16.mxu0 0
  %1745 = vmatpush1.bf16.msra.mxu0 0
  %1746 = vmatprep.subr.bf16.mxu0 0
  %1747 = vmatpush1.bf16.msra.mxu0 0
  %1748 = vmatprep.subr.bf16.mxu0 0
  %1749 = vmatpush1.bf16.msra.mxu0 0
  %1750 = vmatprep.subr.bf16.mxu0 0
  %1751 = vmatpush1.bf16.msra.mxu0 0
  %1752 = vmatprep.subr.bf16.mxu0 0
  %1753 = vmatpush1.bf16.msra.mxu0 0
  %1754 = vmatprep.subr.bf16.mxu0 0
  %1755 = vmatpush1.bf16.msra.mxu0 0
  %1756 = vmatprep.subr.bf16.mxu0 0
  %1757 = vmatpush1.bf16.msra.mxu0 0
  %1758 = vmatprep.subr.bf16.mxu0 0
  %1759 = vmatpush1.bf16.msra.mxu0 0
  %1760 = vmatprep.subr.bf16.mxu0 0
  %1761 = vmatpush1.bf16.msra.mxu0 0
  %1762 = vmatprep.subr.bf16.mxu0 0
  %1763 = vmatpush1.bf16.msra.mxu0 0
  %1764 = vmatprep.subr.bf16.mxu0 0
  %1765 = vmatpush1.bf16.msra.mxu0 0
  %1766 = vmatprep.subr.bf16.mxu0 0
  %1767 = vmatpush1.bf16.msra.mxu0 0
  %1768 = vmatprep.mubr.bf16.mxu0 0
  %1769 = vmatmul.mubr.bf16.gmra.mrb[0].mxu0 %v1734
  %v1770 = vpop.f32.mrb[0].mxu0
  %v1771 = vadd.f32 0.0, %v1770
  %v1772 = vpop.f32.mrb[0].mxu0
  %v1773 = vadd.f32 0.0, %v1772
  %v1774 = vpop.f32.mrb[0].mxu0
  %v1775 = vpop.f32.mrb[0].mxu0
  %1776 = vdwg.mxu0
  %v1777 = vadd.f32 %v1773, %v1481
  %v1778 = vpack.c.bf16 %v1702, %v1702
  %1780 = vrot.lane.b32.xlu0 %v1778, 64
  %v1781 = vpop.permute.xlu0 %1780
  %v1783 = vsel %vm162, %v1781, 0
  %1785 = vmatprep.subr.bf16.mxu0 0
  %1786 = vmatpush1.bf16.msra.mxu0 %v1630
  %1787 = vmatprep.subr.bf16.mxu0 0
  %1788 = vmatpush1.bf16.msra.mxu0 %v1631
  %1789 = vmatprep.subr.bf16.mxu0 0
  %1790 = vmatpush1.bf16.msra.mxu0 0
  %1791 = vmatprep.subr.bf16.mxu0 0
  %1792 = vmatpush1.bf16.msra.mxu0 0
  %1793 = vmatprep.subr.bf16.mxu0 0
  %1794 = vmatpush1.bf16.msra.mxu0 0
  %1795 = vmatprep.subr.bf16.mxu0 0
  %1796 = vmatpush1.bf16.msra.mxu0 0
  %1797 = vmatprep.subr.bf16.mxu0 0
  %1798 = vmatpush1.bf16.msra.mxu0 0
  %1799 = vmatprep.subr.bf16.mxu0 0
  %1800 = vmatpush1.bf16.msra.mxu0 0
  %1801 = vmatprep.subr.bf16.mxu0 0
  %1802 = vmatpush1.bf16.msra.mxu0 0
  %1803 = vmatprep.subr.bf16.mxu0 0
  %1804 = vmatpush1.bf16.msra.mxu0 0
  %1805 = vmatprep.subr.bf16.mxu0 0
  %1806 = vmatpush1.bf16.msra.mxu0 0
  %1807 = vmatprep.subr.bf16.mxu0 0
  %1808 = vmatpush1.bf16.msra.mxu0 0
  %1809 = vmatprep.subr.bf16.mxu0 0
  %1810 = vmatpush1.bf16.msra.mxu0 0
  %1811 = vmatprep.subr.bf16.mxu0 0
  %1812 = vmatpush1.bf16.msra.mxu0 0
  %1813 = vmatprep.subr.bf16.mxu0 0
  %1814 = vmatpush1.bf16.msra.mxu0 0
  %1815 = vmatprep.subr.bf16.mxu0 0
  %1816 = vmatpush1.bf16.msra.mxu0 0
  %1817 = vmatprep.mubr.bf16.mxu0 0
  %1818 = vmatmul.mubr.bf16.gmra.mrb[0].mxu0 %v1783
  %v1819 = vpop.f32.mrb[0].mxu0
  %v1820 = vadd.f32 0.0, %v1819
  %v1821 = vpop.f32.mrb[0].mxu0
  %v1822 = vpop.f32.mrb[0].mxu0
  %v1823 = vpop.f32.mrb[0].mxu0
  %1824 = vdwg.mxu0
  %v1825 = vadd.f32 %v1777, %v1820
  %v1826 = vxor.u32 %v1825, 2147483648
  %v1827 = vmul.f32 %v1826, 1.442695
  %v1828 = vpow.pop %v1827
  %v1829 = vadd.f32 %v1828, 1.0
  %v1830 = vrcp.pop %v1829
  %v1831 = vmul.f32 1.0, %v1830
  %v1832 = vtanh.pop %v1825
  %v1833 = vsel %vm52, %v1832, %v1831
  %v1834 = vmul.f32 %v1833, %v1696
  %1836 = vrot.lane.b32.xlu0 %v1833, 32
  %v1837 = vpop.permute.xlu0 %1836
  %v1839 = vmul.f32 %v1833, %v1837
  %1841 = vrot.lane.b32.xlu0 %v1839, 32
  %v1842 = vpop.permute.xlu0 %1841
  %v1844 = vadd.f32 %v1834, %v1842
  %v1845 = vtanh.pop %v1844
  %1847 = vrot.lane.b32.xlu0 %v1845, 32
  %v1848 = vpop.permute.xlu0 %1847
  %v1850 = vmul.f32 %v1833, %v1848
  %v1851 = vadd.f32 %v1462, %v1771
  %v1852 = vxor.u32 %v1851, 2147483648
  %v1853 = vmul.f32 %v1852, 1.442695
  %v1854 = vpow.pop %v1853
  %v1855 = vadd.f32 %v1854, 1.0
  %v1856 = vrcp.pop %v1855
  %v1857 = vmul.f32 1.0, %v1856
  %v1858 = vtanh.pop %v1851
  %v1859 = vsel %vm52, %v1858, %v1857
  %v1860 = vmul.f32 %v1859, %v1722
  %1862 = vrot.lane.b32.xlu0 %v1859, 32
  %v1863 = vpop.permute.xlu0 %1862
  %v1865 = vmul.f32 %v1859, %v1863
  %1867 = vrot.lane.b32.xlu0 %v1865, 32
  %v1868 = vpop.permute.xlu0 %1867
  %v1870 = vadd.f32 %v1860, %v1868
  %v1871 = vtanh.pop %v1870
  %1873 = vrot.lane.b32.xlu0 %v1871, 32
  %v1874 = vpop.permute.xlu0 %1873
  %v1876 = vmul.f32 %v1859, %v1874
  %v1877 = vpack.c.bf16 %v1876, %v1876
  %1879 = vrot.lane.b32.xlu0 %v1877, 64
  %v1880 = vpop.permute.xlu0 %1879
  %v1882 = vsel %vm162, %v1880, 0
  %1884 = vmatprep.subr.bf16.mxu0 %v1496
  %1885 = vmatpush1.bf16.msra.mxu0 %v1495
  %1886 = vmatprep.subr.bf16.mxu0 %v1498
  %1887 = vmatpush1.bf16.msra.mxu0 %v1497
  %1888 = vmatprep.subr.bf16.mxu0 0
  %1889 = vmatpush1.bf16.msra.mxu0 0
  %1890 = vmatprep.subr.bf16.mxu0 0
  %1891 = vmatpush1.bf16.msra.mxu0 0
  %1892 = vmatprep.subr.bf16.mxu0 0
  %1893 = vmatpush1.bf16.msra.mxu0 0
  %1894 = vmatprep.subr.bf16.mxu0 0
  %1895 = vmatpush1.bf16.msra.mxu0 0
  %1896 = vmatprep.subr.bf16.mxu0 0
  %1897 = vmatpush1.bf16.msra.mxu0 0
  %1898 = vmatprep.subr.bf16.mxu0 0
  %1899 = vmatpush1.bf16.msra.mxu0 0
  %1900 = vmatprep.subr.bf16.mxu0 0
  %1901 = vmatpush1.bf16.msra.mxu0 0
  %1902 = vmatprep.subr.bf16.mxu0 0
  %1903 = vmatpush1.bf16.msra.mxu0 0
  %1904 = vmatprep.subr.bf16.mxu0 0
  %1905 = vmatpush1.bf16.msra.mxu0 0
  %1906 = vmatprep.subr.bf16.mxu0 0
  %1907 = vmatpush1.bf16.msra.mxu0 0
  %1908 = vmatprep.subr.bf16.mxu0 0
  %1909 = vmatpush1.bf16.msra.mxu0 0
  %1910 = vmatprep.subr.bf16.mxu0 0
  %1911 = vmatpush1.bf16.msra.mxu0 0
  %1912 = vmatprep.subr.bf16.mxu0 0
  %1913 = vmatpush1.bf16.msra.mxu0 0
  %1914 = vmatprep.subr.bf16.mxu0 0
  %1915 = vmatpush1.bf16.msra.mxu0 0
  %1916 = vmatprep.mubr.bf16.mxu0 0
  %1917 = vmatmul.mubr.bf16.gmra.mrb[0].mxu0 %v1882
  %v1918 = vpop.f32.mrb[0].mxu0
  %v1919 = vadd.f32 0.0, %v1918
  %v1920 = vpop.f32.mrb[0].mxu0
  %v1921 = vadd.f32 0.0, %v1920
  %v1922 = vpop.f32.mrb[0].mxu0
  %v1923 = vpop.f32.mrb[0].mxu0
  %1924 = vdwg.mxu0
  %v1925 = vadd.f32 %v1921, %v1481
  %v1926 = vpack.c.bf16 %v1850, %v1850
  %1928 = vrot.lane.b32.xlu0 %v1926, 64
  %v1929 = vpop.permute.xlu0 %1928
  %v1931 = vsel %vm162, %v1929, 0
  %1933 = vmatprep.subr.bf16.mxu0 0
  %1934 = vmatpush1.bf16.msra.mxu0 %v1630
  %1935 = vmatprep.subr.bf16.mxu0 0
  %1936 = vmatpush1.bf16.msra.mxu0 %v1631
  %1937 = vmatprep.subr.bf16.mxu0 0
  %1938 = vmatpush1.bf16.msra.mxu0 0
  %1939 = vmatprep.subr.bf16.mxu0 0
  %1940 = vmatpush1.bf16.msra.mxu0 0
  %1941 = vmatprep.subr.bf16.mxu0 0
  %1942 = vmatpush1.bf16.msra.mxu0 0
  %1943 = vmatprep.subr.bf16.mxu0 0
  %1944 = vmatpush1.bf16.msra.mxu0 0
  %1945 = vmatprep.subr.bf16.mxu0 0
  %1946 = vmatpush1.bf16.msra.mxu0 0
  %1947 = vmatprep.subr.bf16.mxu0 0
  %1948 = vmatpush1.bf16.msra.mxu0 0
  %1949 = vmatprep.subr.bf16.mxu0 0
  %1950 = vmatpush1.bf16.msra.mxu0 0
  %1951 = vmatprep.subr.bf16.mxu0 0
  %1952 = vmatpush1.bf16.msra.mxu0 0
  %1953 = vmatprep.subr.bf16.mxu0 0
  %1954 = vmatpush1.bf16.msra.mxu0 0
  %1955 = vmatprep.subr.bf16.mxu0 0
  %1956 = vmatpush1.bf16.msra.mxu0 0
  %1957 = vmatprep.subr.bf16.mxu0 0
  %1958 = vmatpush1.bf16.msra.mxu0 0
  %1959 = vmatprep.subr.bf16.mxu0 0
  %1960 = vmatpush1.bf16.msra.mxu0 0
  %1961 = vmatprep.subr.bf16.mxu0 0
  %1962 = vmatpush1.bf16.msra.mxu0 0
  %1963 = vmatprep.subr.bf16.mxu0 0
  %1964 = vmatpush1.bf16.msra.mxu0 0
  %1965 = vmatprep.mubr.bf16.mxu0 0
  %1966 = vmatmul.mubr.bf16.gmra.mrb[0].mxu0 %v1931
  %v1967 = vpop.f32.mrb[0].mxu0
  %v1968 = vadd.f32 0.0, %v1967
  %v1969 = vpop.f32.mrb[0].mxu0
  %v1970 = vpop.f32.mrb[0].mxu0
  %v1971 = vpop.f32.mrb[0].mxu0
  %1972 = vdwg.mxu0
  %v1973 = vadd.f32 %v1925, %v1968
  %v1974 = vxor.u32 %v1973, 2147483648
  %v1975 = vmul.f32 %v1974, 1.442695
  %v1976 = vpow.pop %v1975
  %v1977 = vadd.f32 %v1976, 1.0
  %v1978 = vrcp.pop %v1977
  %v1979 = vmul.f32 1.0, %v1978
  %v1980 = vtanh.pop %v1973
  %v1981 = vsel %vm52, %v1980, %v1979
  %v1982 = vmul.f32 %v1981, %v1844
  %1984 = vrot.lane.b32.xlu0 %v1981, 32
  %v1985 = vpop.permute.xlu0 %1984
  %v1987 = vmul.f32 %v1981, %v1985
  %1989 = vrot.lane.b32.xlu0 %v1987, 32
  %v1990 = vpop.permute.xlu0 %1989
  %v1992 = vadd.f32 %v1982, %v1990
  %v1993 = vtanh.pop %v1992
  %1995 = vrot.lane.b32.xlu0 %v1993, 32
  %v1996 = vpop.permute.xlu0 %1995
  %v1998 = vmul.f32 %v1981, %v1996
  %v1999 = vadd.f32 %v1463, %v1919
  %v2000 = vxor.u32 %v1999, 2147483648
  %v2001 = vmul.f32 %v2000, 1.442695
  %v2002 = vpow.pop %v2001
  %v2003 = vadd.f32 %v2002, 1.0
  %v2004 = vrcp.pop %v2003
  %v2005 = vmul.f32 1.0, %v2004
  %v2006 = vtanh.pop %v1999
  %v2007 = vsel %vm52, %v2006, %v2005
  %v2008 = vmul.f32 %v2007, %v1870
  %2010 = vrot.lane.b32.xlu0 %v2007, 32
  %v2011 = vpop.permute.xlu0 %2010
  %v2013 = vmul.f32 %v2007, %v2011
  %2015 = vrot.lane.b32.xlu0 %v2013, 32
  %v2016 = vpop.permute.xlu0 %2015
  %v2018 = vadd.f32 %v2008, %v2016
  %v2019 = vtanh.pop %v2018
  %2021 = vrot.lane.b32.xlu0 %v2019, 32
  %v2022 = vpop.permute.xlu0 %2021
  %v2024 = vmul.f32 %v2007, %v2022
  %v2025 = vpack.c.bf16 %v2024, %v2024
  %2027 = vrot.lane.b32.xlu0 %v2025, 64
  %v2028 = vpop.permute.xlu0 %2027
  %v2030 = vsel %vm162, %v2028, 0
  %2032 = vmatprep.subr.bf16.mxu0 %v1496
  %2033 = vmatpush1.bf16.msra.mxu0 %v1495
  %2034 = vmatprep.subr.bf16.mxu0 %v1498
  %2035 = vmatpush1.bf16.msra.mxu0 %v1497
  %2036 = vmatprep.subr.bf16.mxu0 0
  %2037 = vmatpush1.bf16.msra.mxu0 0
  %2038 = vmatprep.subr.bf16.mxu0 0
  %2039 = vmatpush1.bf16.msra.mxu0 0
  %2040 = vmatprep.subr.bf16.mxu0 0
  %2041 = vmatpush1.bf16.msra.mxu0 0
  %2042 = vmatprep.subr.bf16.mxu0 0
  %2043 = vmatpush1.bf16.msra.mxu0 0
  %2044 = vmatprep.subr.bf16.mxu0 0
  %2045 = vmatpush1.bf16.msra.mxu0 0
  %2046 = vmatprep.subr.bf16.mxu0 0
  %2047 = vmatpush1.bf16.msra.mxu0 0
  %2048 = vmatprep.subr.bf16.mxu0 0
  %2049 = vmatpush1.bf16.msra.mxu0 0
  %2050 = vmatprep.subr.bf16.mxu0 0
  %2051 = vmatpush1.bf16.msra.mxu0 0
  %2052 = vmatprep.subr.bf16.mxu0 0
  %2053 = vmatpush1.bf16.msra.mxu0 0
  %2054 = vmatprep.subr.bf16.mxu0 0
  %2055 = vmatpush1.bf16.msra.mxu0 0
  %2056 = vmatprep.subr.bf16.mxu0 0
  %2057 = vmatpush1.bf16.msra.mxu0 0
  %2058 = vmatprep.subr.bf16.mxu0 0
  %2059 = vmatpush1.bf16.msra.mxu0 0
  %2060 = vmatprep.subr.bf16.mxu0 0
  %2061 = vmatpush1.bf16.msra.mxu0 0
  %2062 = vmatprep.subr.bf16.mxu0 0
  %2063 = vmatpush1.bf16.msra.mxu0 0
  %2064 = vmatprep.mubr.bf16.mxu0 0
  %2065 = vmatmul.mubr.bf16.gmra.mrb[0].mxu0 %v2030
  %v2066 = vpop.f32.mrb[0].mxu0
  %v2067 = vadd.f32 0.0, %v2066
  %v2068 = vpop.f32.mrb[0].mxu0
  %v2069 = vadd.f32 0.0, %v2068
  %v2070 = vpop.f32.mrb[0].mxu0
  %v2071 = vpop.f32.mrb[0].mxu0
  %2072 = vdwg.mxu0
  %v2073 = vadd.f32 %v2069, %v1481
  %v2074 = vpack.c.bf16 %v1998, %v1998
  %2076 = vrot.lane.b32.xlu0 %v2074, 64
  %v2077 = vpop.permute.xlu0 %2076
  %v2079 = vsel %vm162, %v2077, 0
  %2081 = vmatprep.subr.bf16.mxu0 0
  %2082 = vmatpush1.bf16.msra.mxu0 %v1630
  %2083 = vmatprep.subr.bf16.mxu0 0
  %2084 = vmatpush1.bf16.msra.mxu0 %v1631
  %2085 = vmatprep.subr.bf16.mxu0 0
  %2086 = vmatpush1.bf16.msra.mxu0 0
  %2087 = vmatprep.subr.bf16.mxu0 0
  %2088 = vmatpush1.bf16.msra.mxu0 0
  %2089 = vmatprep.subr.bf16.mxu0 0
  %2090 = vmatpush1.bf16.msra.mxu0 0
  %2091 = vmatprep.subr.bf16.mxu0 0
  %2092 = vmatpush1.bf16.msra.mxu0 0
  %2093 = vmatprep.subr.bf16.mxu0 0
  %2094 = vmatpush1.bf16.msra.mxu0 0
  %2095 = vmatprep.subr.bf16.mxu0 0
  %2096 = vmatpush1.bf16.msra.mxu0 0
  %2097 = vmatprep.subr.bf16.mxu0 0
  %2098 = vmatpush1.bf16.msra.mxu0 0
  %2099 = vmatprep.subr.bf16.mxu0 0
  %2100 = vmatpush1.bf16.msra.mxu0 0
  %2101 = vmatprep.subr.bf16.mxu0 0
  %2102 = vmatpush1.bf16.msra.mxu0 0
  %2103 = vmatprep.subr.bf16.mxu0 0
  %2104 = vmatpush1.bf16.msra.mxu0 0
  %2105 = vmatprep.subr.bf16.mxu0 0
  %2106 = vmatpush1.bf16.msra.mxu0 0
  %2107 = vmatprep.subr.bf16.mxu0 0
  %2108 = vmatpush1.bf16.msra.mxu0 0
  %2109 = vmatprep.subr.bf16.mxu0 0
  %2110 = vmatpush1.bf16.msra.mxu0 0
  %2111 = vmatprep.subr.bf16.mxu0 0
  %2112 = vmatpush1.bf16.msra.mxu0 0
  %2113 = vmatprep.mubr.bf16.mxu0 0
  %2114 = vmatmul.mubr.bf16.gmra.mrb[0].mxu0 %v2079
  %v2115 = vpop.f32.mrb[0].mxu0
  %v2116 = vadd.f32 0.0, %v2115
  %v2117 = vpop.f32.mrb[0].mxu0
  %v2118 = vpop.f32.mrb[0].mxu0
  %v2119 = vpop.f32.mrb[0].mxu0
  %2120 = vdwg.mxu0
  %v2121 = vadd.f32 %v2073, %v2116
  %v2122 = vxor.u32 %v2121, 2147483648
  %v2123 = vmul.f32 %v2122, 1.442695
  %v2124 = vpow.pop %v2123
  %v2125 = vadd.f32 %v2124, 1.0
  %v2126 = vrcp.pop %v2125
  %v2127 = vmul.f32 1.0, %v2126
  %v2128 = vtanh.pop %v2121
  %v2129 = vsel %vm52, %v2128, %v2127
  %v2130 = vmul.f32 %v2129, %v1992
  %2132 = vrot.lane.b32.xlu0 %v2129, 32
  %v2133 = vpop.permute.xlu0 %2132
  %v2135 = vmul.f32 %v2129, %v2133
  %2137 = vrot.lane.b32.xlu0 %v2135, 32
  %v2138 = vpop.permute.xlu0 %2137
  %v2140 = vadd.f32 %v2130, %v2138
  %v2141 = vtanh.pop %v2140
  %2143 = vrot.lane.b32.xlu0 %v2141, 32
  %v2144 = vpop.permute.xlu0 %2143
  %v2146 = vmul.f32 %v2129, %v2144
  %v2147 = vadd.f32 %v1464, %v2067
  %v2148 = vxor.u32 %v2147, 2147483648
  %v2149 = vmul.f32 %v2148, 1.442695
  %v2150 = vpow.pop %v2149
  %v2151 = vadd.f32 %v2150, 1.0
  %v2152 = vrcp.pop %v2151
  %v2153 = vmul.f32 1.0, %v2152
  %v2154 = vtanh.pop %v2147
  %v2155 = vsel %vm52, %v2154, %v2153
  %v2156 = vmul.f32 %v2155, %v2018
  %2158 = vrot.lane.b32.xlu0 %v2155, 32
  %v2159 = vpop.permute.xlu0 %2158
  %v2161 = vmul.f32 %v2155, %v2159
  %2163 = vrot.lane.b32.xlu0 %v2161, 32
  %v2164 = vpop.permute.xlu0 %2163
  %v2166 = vadd.f32 %v2156, %v2164
  %v2167 = vtanh.pop %v2166
  %2169 = vrot.lane.b32.xlu0 %v2167, 32
  %v2170 = vpop.permute.xlu0 %2169
  %v2172 = vmul.f32 %v2155, %v2170
  %v2173 = vpack.c.bf16 %v2172, %v2172
  %2175 = vrot.lane.b32.xlu0 %v2173, 64
  %v2176 = vpop.permute.xlu0 %2175
  %v2178 = vsel %vm162, %v2176, 0
  %2180 = vmatprep.subr.bf16.mxu0 %v1496
  %2181 = vmatpush1.bf16.msra.mxu0 %v1495
  %2182 = vmatprep.subr.bf16.mxu0 %v1498
  %2183 = vmatpush1.bf16.msra.mxu0 %v1497
  %2184 = vmatprep.subr.bf16.mxu0 0
  %2185 = vmatpush1.bf16.msra.mxu0 0
  %2186 = vmatprep.subr.bf16.mxu0 0
  %2187 = vmatpush1.bf16.msra.mxu0 0
  %2188 = vmatprep.subr.bf16.mxu0 0
  %2189 = vmatpush1.bf16.msra.mxu0 0
  %2190 = vmatprep.subr.bf16.mxu0 0
  %2191 = vmatpush1.bf16.msra.mxu0 0
  %2192 = vmatprep.subr.bf16.mxu0 0
  %2193 = vmatpush1.bf16.msra.mxu0 0
  %2194 = vmatprep.subr.bf16.mxu0 0
  %2195 = vmatpush1.bf16.msra.mxu0 0
  %2196 = vmatprep.subr.bf16.mxu0 0
  %2197 = vmatpush1.bf16.msra.mxu0 0
  %2198 = vmatprep.subr.bf16.mxu0 0
  %2199 = vmatpush1.bf16.msra.mxu0 0
  %2200 = vmatprep.subr.bf16.mxu0 0
  %2201 = vmatpush1.bf16.msra.mxu0 0
  %2202 = vmatprep.subr.bf16.mxu0 0
  %2203 = vmatpush1.bf16.msra.mxu0 0
  %2204 = vmatprep.subr.bf16.mxu0 0
  %2205 = vmatpush1.bf16.msra.mxu0 0
  %2206 = vmatprep.subr.bf16.mxu0 0
  %2207 = vmatpush1.bf16.msra.mxu0 0
  %2208 = vmatprep.subr.bf16.mxu0 0
  %2209 = vmatpush1.bf16.msra.mxu0 0
  %2210 = vmatprep.subr.bf16.mxu0 0
  %2211 = vmatpush1.bf16.msra.mxu0 0
  %2212 = vmatprep.mubr.bf16.mxu0 0
  %2213 = vmatmul.mubr.bf16.gmra.mrb[0].mxu0 %v2178
  %v2214 = vpop.f32.mrb[0].mxu0
  %v2215 = vadd.f32 0.0, %v2214
  %v2216 = vpop.f32.mrb[0].mxu0
  %v2217 = vadd.f32 0.0, %v2216
  %v2218 = vpop.f32.mrb[0].mxu0
  %v2219 = vpop.f32.mrb[0].mxu0
  %2220 = vdwg.mxu0
  %v2221 = vadd.f32 %v2217, %v1481
  %v2222 = vpack.c.bf16 %v2146, %v2146
  %2224 = vrot.lane.b32.xlu0 %v2222, 64
  %v2225 = vpop.permute.xlu0 %2224
  %v2227 = vsel %vm162, %v2225, 0
  %2229 = vmatprep.subr.bf16.mxu0 0
  %2230 = vmatpush1.bf16.msra.mxu0 %v1630
  %2231 = vmatprep.subr.bf16.mxu0 0
  %2232 = vmatpush1.bf16.msra.mxu0 %v1631
  %2233 = vmatprep.subr.bf16.mxu0 0
  %2234 = vmatpush1.bf16.msra.mxu0 0
  %2235 = vmatprep.subr.bf16.mxu0 0
  %2236 = vmatpush1.bf16.msra.mxu0 0
  %2237 = vmatprep.subr.bf16.mxu0 0
  %2238 = vmatpush1.bf16.msra.mxu0 0
  %2239 = vmatprep.subr.bf16.mxu0 0
  %2240 = vmatpush1.bf16.msra.mxu0 0
  %2241 = vmatprep.subr.bf16.mxu0 0
  %2242 = vmatpush1.bf16.msra.mxu0 0
  %2243 = vmatprep.subr.bf16.mxu0 0
  %2244 = vmatpush1.bf16.msra.mxu0 0
  %2245 = vmatprep.subr.bf16.mxu0 0
  %2246 = vmatpush1.bf16.msra.mxu0 0
  %2247 = vmatprep.subr.bf16.mxu0 0
  %2248 = vmatpush1.bf16.msra.mxu0 0
  %2249 = vmatprep.subr.bf16.mxu0 0
  %2250 = vmatpush1.bf16.msra.mxu0 0
  %2251 = vmatprep.subr.bf16.mxu0 0
  %2252 = vmatpush1.bf16.msra.mxu0 0
  %2253 = vmatprep.subr.bf16.mxu0 0
  %2254 = vmatpush1.bf16.msra.mxu0 0
  %2255 = vmatprep.subr.bf16.mxu0 0
  %2256 = vmatpush1.bf16.msra.mxu0 0
  %2257 = vmatprep.subr.bf16.mxu0 0
  %2258 = vmatpush1.bf16.msra.mxu0 0
  %2259 = vmatprep.subr.bf16.mxu0 0
  %2260 = vmatpush1.bf16.msra.mxu0 0
  %2261 = vmatprep.mubr.bf16.mxu0 0
  %2262 = vmatmul.mubr.bf16.gmra.mrb[0].mxu0 %v2227
  %v2263 = vpop.f32.mrb[0].mxu0
  %v2264 = vadd.f32 0.0, %v2263
  %v2265 = vpop.f32.mrb[0].mxu0
  %v2266 = vpop.f32.mrb[0].mxu0
  %v2267 = vpop.f32.mrb[0].mxu0
  %2268 = vdwg.mxu0
  %v2269 = vadd.f32 %v2221, %v2264
  %v2270 = vxor.u32 %v2269, 2147483648
  %v2271 = vmul.f32 %v2270, 1.442695
  %v2272 = vpow.pop %v2271
  %v2273 = vadd.f32 %v2272, 1.0
  %v2274 = vrcp.pop %v2273
  %v2275 = vmul.f32 1.0, %v2274
  %v2276 = vtanh.pop %v2269
  %v2277 = vsel %vm52, %v2276, %v2275
  %v2278 = vmul.f32 %v2277, %v2140
  %2280 = vrot.lane.b32.xlu0 %v2277, 32
  %v2281 = vpop.permute.xlu0 %2280
  %v2283 = vmul.f32 %v2277, %v2281
  %2285 = vrot.lane.b32.xlu0 %v2283, 32
  %v2286 = vpop.permute.xlu0 %2285
  %v2288 = vadd.f32 %v2278, %v2286
  %v2289 = vtanh.pop %v2288
  %2291 = vrot.lane.b32.xlu0 %v2289, 32
  %v2292 = vpop.permute.xlu0 %2291
  %v2294 = vmul.f32 %v2277, %v2292
  %v2295 = vadd.f32 %v1465, %v2215
  %v2296 = vxor.u32 %v2295, 2147483648
  %v2297 = vmul.f32 %v2296, 1.442695
  %v2298 = vpow.pop %v2297
  %v2299 = vadd.f32 %v2298, 1.0
  %v2300 = vrcp.pop %v2299
  %v2301 = vmul.f32 1.0, %v2300
  %v2302 = vtanh.pop %v2295
  %v2303 = vsel %vm52, %v2302, %v2301
  %v2304 = vmul.f32 %v2303, %v2166
  %2306 = vrot.lane.b32.xlu0 %v2303, 32
  %v2307 = vpop.permute.xlu0 %2306
  %v2309 = vmul.f32 %v2303, %v2307
  %2311 = vrot.lane.b32.xlu0 %v2309, 32
  %v2312 = vpop.permute.xlu0 %2311
  %v2314 = vadd.f32 %v2304, %v2312
  %v2315 = vtanh.pop %v2314
  %2317 = vrot.lane.b32.xlu0 %v2315, 32
  %v2318 = vpop.permute.xlu0 %2317
  %v2320 = vmul.f32 %v2303, %v2318
  %v2321 = vpack.c.bf16 %v2320, %v2320
  %2323 = vrot.lane.b32.xlu0 %v2321, 64
  %v2324 = vpop.permute.xlu0 %2323
  %v2326 = vsel %vm162, %v2324, 0
  %2328 = vmatprep.subr.bf16.mxu0 %v1496
  %2329 = vmatpush1.bf16.msra.mxu0 %v1495
  %2330 = vmatprep.subr.bf16.mxu0 %v1498
  %2331 = vmatpush1.bf16.msra.mxu0 %v1497
  %2332 = vmatprep.subr.bf16.mxu0 0
  %2333 = vmatpush1.bf16.msra.mxu0 0
  %2334 = vmatprep.subr.bf16.mxu0 0
  %2335 = vmatpush1.bf16.msra.mxu0 0
  %2336 = vmatprep.subr.bf16.mxu0 0
  %2337 = vmatpush1.bf16.msra.mxu0 0
  %2338 = vmatprep.subr.bf16.mxu0 0
  %2339 = vmatpush1.bf16.msra.mxu0 0
  %2340 = vmatprep.subr.bf16.mxu0 0
  %2341 = vmatpush1.bf16.msra.mxu0 0
  %2342 = vmatprep.subr.bf16.mxu0 0
  %2343 = vmatpush1.bf16.msra.mxu0 0
  %2344 = vmatprep.subr.bf16.mxu0 0
  %2345 = vmatpush1.bf16.msra.mxu0 0
  %2346 = vmatprep.subr.bf16.mxu0 0
  %2347 = vmatpush1.bf16.msra.mxu0 0
  %2348 = vmatprep.subr.bf16.mxu0 0
  %2349 = vmatpush1.bf16.msra.mxu0 0
  %2350 = vmatprep.subr.bf16.mxu0 0
  %2351 = vmatpush1.bf16.msra.mxu0 0
  %2352 = vmatprep.subr.bf16.mxu0 0
  %2353 = vmatpush1.bf16.msra.mxu0 0
  %2354 = vmatprep.subr.bf16.mxu0 0
  %2355 = vmatpush1.bf16.msra.mxu0 0
  %2356 = vmatprep.subr.bf16.mxu0 0
  %2357 = vmatpush1.bf16.msra.mxu0 0
  %2358 = vmatprep.subr.bf16.mxu0 0
  %2359 = vmatpush1.bf16.msra.mxu0 0
  %2360 = vmatprep.mubr.bf16.mxu0 0
  %2361 = vmatmul.mubr.bf16.gmra.mrb[0].mxu0 %v2326
  %v2362 = vpop.f32.mrb[0].mxu0
  %v2363 = vadd.f32 0.0, %v2362
  %v2364 = vpop.f32.mrb[0].mxu0
  %v2365 = vadd.f32 0.0, %v2364
  %v2366 = vpop.f32.mrb[0].mxu0
  %v2367 = vpop.f32.mrb[0].mxu0
  %2368 = vdwg.mxu0
  %v2369 = vadd.f32 %v2365, %v1481
  %v2370 = vpack.c.bf16 %v2294, %v2294
  %2372 = vrot.lane.b32.xlu0 %v2370, 64
  %v2373 = vpop.permute.xlu0 %2372
  %v2375 = vsel %vm162, %v2373, 0
  %2377 = vmatprep.subr.bf16.mxu0 0
  %2378 = vmatpush1.bf16.msra.mxu0 %v1630
  %2379 = vmatprep.subr.bf16.mxu0 0
  %2380 = vmatpush1.bf16.msra.mxu0 %v1631
  %2381 = vmatprep.subr.bf16.mxu0 0
  %2382 = vmatpush1.bf16.msra.mxu0 0
  %2383 = vmatprep.subr.bf16.mxu0 0
  %2384 = vmatpush1.bf16.msra.mxu0 0
  %2385 = vmatprep.subr.bf16.mxu0 0
  %2386 = vmatpush1.bf16.msra.mxu0 0
  %2387 = vmatprep.subr.bf16.mxu0 0
  %2388 = vmatpush1.bf16.msra.mxu0 0
  %2389 = vmatprep.subr.bf16.mxu0 0
  %2390 = vmatpush1.bf16.msra.mxu0 0
  %2391 = vmatprep.subr.bf16.mxu0 0
  %2392 = vmatpush1.bf16.msra.mxu0 0
  %2393 = vmatprep.subr.bf16.mxu0 0
  %2394 = vmatpush1.bf16.msra.mxu0 0
  %2395 = vmatprep.subr.bf16.mxu0 0
  %2396 = vmatpush1.bf16.msra.mxu0 0
  %2397 = vmatprep.subr.bf16.mxu0 0
  %2398 = vmatpush1.bf16.msra.mxu0 0
  %2399 = vmatprep.subr.bf16.mxu0 0
  %2400 = vmatpush1.bf16.msra.mxu0 0
  %2401 = vmatprep.subr.bf16.mxu0 0
  %2402 = vmatpush1.bf16.msra.mxu0 0
  %2403 = vmatprep.subr.bf16.mxu0 0
  %2404 = vmatpush1.bf16.msra.mxu0 0
  %2405 = vmatprep.subr.bf16.mxu0 0
  %2406 = vmatpush1.bf16.msra.mxu0 0
  %2407 = vmatprep.subr.bf16.mxu0 0
  %2408 = vmatpush1.bf16.msra.mxu0 0
  %2409 = vmatprep.mubr.bf16.mxu0 0
  %2410 = vmatmul.mubr.bf16.gmra.mrb[0].mxu0 %v2375
  %v2411 = vpop.f32.mrb[0].mxu0
  %v2412 = vadd.f32 0.0, %v2411
  %v2413 = vpop.f32.mrb[0].mxu0
  %v2414 = vpop.f32.mrb[0].mxu0
  %v2415 = vpop.f32.mrb[0].mxu0
  %2416 = vdwg.mxu0
  %v2417 = vadd.f32 %v2369, %v2412
  %v2418 = vxor.u32 %v2417, 2147483648
  %v2419 = vmul.f32 %v2418, 1.442695
  %v2420 = vpow.pop %v2419
  %v2421 = vadd.f32 %v2420, 1.0
  %v2422 = vrcp.pop %v2421
  %v2423 = vmul.f32 1.0, %v2422
  %v2424 = vtanh.pop %v2417
  %v2425 = vsel %vm52, %v2424, %v2423
  %v2426 = vmul.f32 %v2425, %v2288
  %2428 = vrot.lane.b32.xlu0 %v2425, 32
  %v2429 = vpop.permute.xlu0 %2428
  %v2431 = vmul.f32 %v2425, %v2429
  %2433 = vrot.lane.b32.xlu0 %v2431, 32
  %v2434 = vpop.permute.xlu0 %2433
  %v2436 = vadd.f32 %v2426, %v2434
  %v2437 = vtanh.pop %v2436
  %2439 = vrot.lane.b32.xlu0 %v2437, 32
  %v2440 = vpop.permute.xlu0 %2439
  %v2442 = vmul.f32 %v2425, %v2440
  %v2443 = vadd.f32 %v1466, %v2363
  %v2444 = vxor.u32 %v2443, 2147483648
  %v2445 = vmul.f32 %v2444, 1.442695
  %v2446 = vpow.pop %v2445
  %v2447 = vadd.f32 %v2446, 1.0
  %v2448 = vrcp.pop %v2447
  %v2449 = vmul.f32 1.0, %v2448
  %v2450 = vtanh.pop %v2443
  %v2451 = vsel %vm52, %v2450, %v2449
  %v2452 = vmul.f32 %v2451, %v2314
  %2454 = vrot.lane.b32.xlu0 %v2451, 32
  %v2455 = vpop.permute.xlu0 %2454
  %v2457 = vmul.f32 %v2451, %v2455
  %2459 = vrot.lane.b32.xlu0 %v2457, 32
  %v2460 = vpop.permute.xlu0 %2459
  %v2462 = vadd.f32 %v2452, %v2460
  %v2463 = vtanh.pop %v2462
  %2465 = vrot.lane.b32.xlu0 %v2463, 32
  %v2466 = vpop.permute.xlu0 %2465
  %v2468 = vmul.f32 %v2451, %v2466
  %v2469 = vpack.c.bf16 %v2468, %v2468
  %2471 = vrot.lane.b32.xlu0 %v2469, 64
  %v2472 = vpop.permute.xlu0 %2471
  %v2474 = vsel %vm162, %v2472, 0
  %2476 = vmatprep.subr.bf16.mxu0 %v1496
  %2477 = vmatpush1.bf16.msra.mxu0 %v1495
  %2478 = vmatprep.subr.bf16.mxu0 %v1498
  %2479 = vmatpush1.bf16.msra.mxu0 %v1497
  %2480 = vmatprep.subr.bf16.mxu0 0
  %2481 = vmatpush1.bf16.msra.mxu0 0
  %2482 = vmatprep.subr.bf16.mxu0 0
  %2483 = vmatpush1.bf16.msra.mxu0 0
  %2484 = vmatprep.subr.bf16.mxu0 0
  %2485 = vmatpush1.bf16.msra.mxu0 0
  %2486 = vmatprep.subr.bf16.mxu0 0
  %2487 = vmatpush1.bf16.msra.mxu0 0
  %2488 = vmatprep.subr.bf16.mxu0 0
  %2489 = vmatpush1.bf16.msra.mxu0 0
  %2490 = vmatprep.subr.bf16.mxu0 0
  %2491 = vmatpush1.bf16.msra.mxu0 0
  %2492 = vmatprep.subr.bf16.mxu0 0
  %2493 = vmatpush1.bf16.msra.mxu0 0
  %2494 = vmatprep.subr.bf16.mxu0 0
  %2495 = vmatpush1.bf16.msra.mxu0 0
  %2496 = vmatprep.subr.bf16.mxu0 0
  %2497 = vmatpush1.bf16.msra.mxu0 0
  %2498 = vmatprep.subr.bf16.mxu0 0
  %2499 = vmatpush1.bf16.msra.mxu0 0
  %2500 = vmatprep.subr.bf16.mxu0 0
  %2501 = vmatpush1.bf16.msra.mxu0 0
  %2502 = vmatprep.subr.bf16.mxu0 0
  %2503 = vmatpush1.bf16.msra.mxu0 0
  %2504 = vmatprep.subr.bf16.mxu0 0
  %2505 = vmatpush1.bf16.msra.mxu0 0
  %2506 = vmatprep.subr.bf16.mxu0 0
  %2507 = vmatpush1.bf16.msra.mxu0 0
  %2508 = vmatprep.mubr.bf16.mxu0 0
  %2509 = vmatmul.mubr.bf16.gmra.mrb[0].mxu0 %v2474
  %v2510 = vpop.f32.mrb[0].mxu0
  %v2511 = vadd.f32 0.0, %v2510
  %v2512 = vpop.f32.mrb[0].mxu0
  %v2513 = vadd.f32 0.0, %v2512
  %v2514 = vpop.f32.mrb[0].mxu0
  %v2515 = vpop.f32.mrb[0].mxu0
  %2516 = vdwg.mxu0
  %v2517 = vadd.f32 %v2513, %v1481
  %v2518 = vpack.c.bf16 %v2442, %v2442
  %2520 = vrot.lane.b32.xlu0 %v2518, 64
  %v2521 = vpop.permute.xlu0 %2520
  %v2523 = vsel %vm162, %v2521, 0
  %2525 = vmatprep.subr.bf16.mxu0 0
  %2526 = vmatpush1.bf16.msra.mxu0 %v1630
  %2527 = vmatprep.subr.bf16.mxu0 0
  %2528 = vmatpush1.bf16.msra.mxu0 %v1631
  %2529 = vmatprep.subr.bf16.mxu0 0
  %2530 = vmatpush1.bf16.msra.mxu0 0
  %2531 = vmatprep.subr.bf16.mxu0 0
  %2532 = vmatpush1.bf16.msra.mxu0 0
  %2533 = vmatprep.subr.bf16.mxu0 0
  %2534 = vmatpush1.bf16.msra.mxu0 0
  %2535 = vmatprep.subr.bf16.mxu0 0
  %2536 = vmatpush1.bf16.msra.mxu0 0
  %2537 = vmatprep.subr.bf16.mxu0 0
  %2538 = vmatpush1.bf16.msra.mxu0 0
  %2539 = vmatprep.subr.bf16.mxu0 0
  %2540 = vmatpush1.bf16.msra.mxu0 0
  %2541 = vmatprep.subr.bf16.mxu0 0
  %2542 = vmatpush1.bf16.msra.mxu0 0
  %2543 = vmatprep.subr.bf16.mxu0 0
  %2544 = vmatpush1.bf16.msra.mxu0 0
  %2545 = vmatprep.subr.bf16.mxu0 0
  %2546 = vmatpush1.bf16.msra.mxu0 0
  %2547 = vmatprep.subr.bf16.mxu0 0
  %2548 = vmatpush1.bf16.msra.mxu0 0
  %2549 = vmatprep.subr.bf16.mxu0 0
  %2550 = vmatpush1.bf16.msra.mxu0 0
  %2551 = vmatprep.subr.bf16.mxu0 0
  %2552 = vmatpush1.bf16.msra.mxu0 0
  %2553 = vmatprep.subr.bf16.mxu0 0
  %2554 = vmatpush1.bf16.msra.mxu0 0
  %2555 = vmatprep.subr.bf16.mxu0 0
  %2556 = vmatpush1.bf16.msra.mxu0 0
  %2557 = vmatprep.mubr.bf16.mxu0 0
  %2558 = vmatmul.mubr.bf16.gmra.mrb[0].mxu0 %v2523
  %v2559 = vpop.f32.mrb[0].mxu0
  %v2560 = vadd.f32 0.0, %v2559
  %v2561 = vpop.f32.mrb[0].mxu0
  %v2562 = vpop.f32.mrb[0].mxu0
  %v2563 = vpop.f32.mrb[0].mxu0
  %2564 = vdwg.mxu0
  %v2565 = vadd.f32 %v2517, %v2560
  %v2566 = vxor.u32 %v2565, 2147483648
  %v2567 = vmul.f32 %v2566, 1.442695
  %v2568 = vpow.pop %v2567
  %v2569 = vadd.f32 %v2568, 1.0
  %v2570 = vrcp.pop %v2569
  %v2571 = vmul.f32 1.0, %v2570
  %v2572 = vtanh.pop %v2565
  %v2573 = vsel %vm52, %v2572, %v2571
  %v2574 = vmul.f32 %v2573, %v2436
  %2576 = vrot.lane.b32.xlu0 %v2573, 32
  %v2577 = vpop.permute.xlu0 %2576
  %v2579 = vmul.f32 %v2573, %v2577
  %2581 = vrot.lane.b32.xlu0 %v2579, 32
  %v2582 = vpop.permute.xlu0 %2581
  %v2584 = vadd.f32 %v2574, %v2582
  %v2585 = vtanh.pop %v2584
  %2587 = vrot.lane.b32.xlu0 %v2585, 32
  %v2588 = vpop.permute.xlu0 %2587
  %v2590 = vmul.f32 %v2573, %v2588
  %v2591 = vadd.f32 %v1467, %v2511
  %v2592 = vxor.u32 %v2591, 2147483648
  %v2593 = vmul.f32 %v2592, 1.442695
  %v2594 = vpow.pop %v2593
  %v2595 = vadd.f32 %v2594, 1.0
  %v2596 = vrcp.pop %v2595
  %v2597 = vmul.f32 1.0, %v2596
  %v2598 = vtanh.pop %v2591
  %v2599 = vsel %vm52, %v2598, %v2597
  %v2600 = vmul.f32 %v2599, %v2462
  %2602 = vrot.lane.b32.xlu0 %v2599, 32
  %v2603 = vpop.permute.xlu0 %2602
  %v2605 = vmul.f32 %v2599, %v2603
  %2607 = vrot.lane.b32.xlu0 %v2605, 32
  %v2608 = vpop.permute.xlu0 %2607
  %v2610 = vadd.f32 %v2600, %v2608
  %v2611 = vtanh.pop %v2610
  %2613 = vrot.lane.b32.xlu0 %v2611, 32
  %v2614 = vpop.permute.xlu0 %2613
  %v2616 = vmul.f32 %v2599, %v2614
  %v2617 = vpack.c.bf16 %v2616, %v2616
  %2619 = vrot.lane.b32.xlu0 %v2617, 64
  %v2620 = vpop.permute.xlu0 %2619
  %v2622 = vsel %vm162, %v2620, 0
  %2624 = vmatprep.subr.bf16.mxu0 %v1496
  %2625 = vmatpush1.bf16.msra.mxu0 %v1495
  %2626 = vmatprep.subr.bf16.mxu0 %v1498
  %2627 = vmatpush1.bf16.msra.mxu0 %v1497
  %2628 = vmatprep.subr.bf16.mxu0 0
  %2629 = vmatpush1.bf16.msra.mxu0 0
  %2630 = vmatprep.subr.bf16.mxu0 0
  %2631 = vmatpush1.bf16.msra.mxu0 0
  %2632 = vmatprep.subr.bf16.mxu0 0
  %2633 = vmatpush1.bf16.msra.mxu0 0
  %2634 = vmatprep.subr.bf16.mxu0 0
  %2635 = vmatpush1.bf16.msra.mxu0 0
  %2636 = vmatprep.subr.bf16.mxu0 0
  %2637 = vmatpush1.bf16.msra.mxu0 0
  %2638 = vmatprep.subr.bf16.mxu0 0
  %2639 = vmatpush1.bf16.msra.mxu0 0
  %2640 = vmatprep.subr.bf16.mxu0 0
  %2641 = vmatpush1.bf16.msra.mxu0 0
  %2642 = vmatprep.subr.bf16.mxu0 0
  %2643 = vmatpush1.bf16.msra.mxu0 0
  %2644 = vmatprep.subr.bf16.mxu0 0
  %2645 = vmatpush1.bf16.msra.mxu0 0
  %2646 = vmatprep.subr.bf16.mxu0 0
  %2647 = vmatpush1.bf16.msra.mxu0 0
  %2648 = vmatprep.subr.bf16.mxu0 0
  %2649 = vmatpush1.bf16.msra.mxu0 0
  %2650 = vmatprep.subr.bf16.mxu0 0
  %2651 = vmatpush1.bf16.msra.mxu0 0
  %2652 = vmatprep.subr.bf16.mxu0 0
  %2653 = vmatpush1.bf16.msra.mxu0 0
  %2654 = vmatprep.subr.bf16.mxu0 0
  %2655 = vmatpush1.bf16.msra.mxu0 0
  %2656 = vmatprep.mubr.bf16.mxu0 0
  %2657 = vmatmul.mubr.bf16.gmra.mrb[0].mxu0 %v2622
  %v2658 = vpop.f32.mrb[0].mxu0
  %v2659 = vpop.f32.mrb[0].mxu0
  %v2660 = vadd.f32 0.0, %v2659
  %v2661 = vpop.f32.mrb[0].mxu0
  %v2662 = vpop.f32.mrb[0].mxu0
  %2663 = vdwg.mxu0
  %v2664 = vadd.f32 %v2660, %v1481
  %v2665 = vpack.c.bf16 %v2590, %v2590
  %2667 = vrot.lane.b32.xlu0 %v2665, 64
  %v2668 = vpop.permute.xlu0 %2667
  %v2670 = vsel %vm162, %v2668, 0
  %2672 = vmatprep.subr.bf16.mxu0 0
  %2673 = vmatpush1.bf16.msra.mxu0 %v1630
  %2674 = vmatprep.subr.bf16.mxu0 0
  %2675 = vmatpush1.bf16.msra.mxu0 %v1631
  %2676 = vmatprep.subr.bf16.mxu0 0
  %2677 = vmatpush1.bf16.msra.mxu0 0
  %2678 = vmatprep.subr.bf16.mxu0 0
  %2679 = vmatpush1.bf16.msra.mxu0 0
  %2680 = vmatprep.subr.bf16.mxu0 0
  %2681 = vmatpush1.bf16.msra.mxu0 0
  %2682 = vmatprep.subr.bf16.mxu0 0
  %2683 = vmatpush1.bf16.msra.mxu0 0
  %2684 = vmatprep.subr.bf16.mxu0 0
  %2685 = vmatpush1.bf16.msra.mxu0 0
  %2686 = vmatprep.subr.bf16.mxu0 0
  %2687 = vmatpush1.bf16.msra.mxu0 0
  %2688 = vmatprep.subr.bf16.mxu0 0
  %2689 = vmatpush1.bf16.msra.mxu0 0
  %2690 = vmatprep.subr.bf16.mxu0 0
  %2691 = vmatpush1.bf16.msra.mxu0 0
  %2692 = vmatprep.subr.bf16.mxu0 0
  %2693 = vmatpush1.bf16.msra.mxu0 0
  %2694 = vmatprep.subr.bf16.mxu0 0
  %2695 = vmatpush1.bf16.msra.mxu0 0
  %2696 = vmatprep.subr.bf16.mxu0 0
  %2697 = vmatpush1.bf16.msra.mxu0 0
  %2698 = vmatprep.subr.bf16.mxu0 0
  %2699 = vmatpush1.bf16.msra.mxu0 0
  %2700 = vmatprep.subr.bf16.mxu0 0
  %2701 = vmatpush1.bf16.msra.mxu0 0
  %2702 = vmatprep.subr.bf16.mxu0 0
  %2703 = vmatpush1.bf16.msra.mxu0 0
  %2704 = vmatprep.mubr.bf16.mxu0 0
  %2705 = vmatmul.mubr.bf16.gmra.mrb[0].mxu0 %v2670
  %v2706 = vpop.f32.mrb[0].mxu0
  %v2707 = vadd.f32 0.0, %v2706
  %v2708 = vpop.f32.mrb[0].mxu0
  %v2709 = vpop.f32.mrb[0].mxu0
  %v2710 = vpop.f32.mrb[0].mxu0
  %2711 = vdwg.mxu0
  %v2712 = vadd.f32 %v2664, %v2707
  %v2713 = vxor.u32 %v2712, 2147483648
  %v2714 = vmul.f32 %v2713, 1.442695
  %v2715 = vpow.pop %v2714
  %v2716 = vadd.f32 %v2715, 1.0
  %v2717 = vrcp.pop %v2716
  %v2718 = vmul.f32 1.0, %v2717
  %v2719 = vtanh.pop %v2712
  %v2720 = vsel %vm52, %v2719, %v2718
  %v2721 = vmul.f32 %v2720, %v2584
  %2723 = vrot.lane.b32.xlu0 %v2720, 32
  %v2724 = vpop.permute.xlu0 %2723
  %v2726 = vmul.f32 %v2720, %v2724
  %2728 = vrot.lane.b32.xlu0 %v2726, 32
  %v2729 = vpop.permute.xlu0 %2728
  %v2731 = vadd.f32 %v2721, %v2729
  %v2732 = vtanh.pop %v2731
  %2734 = vrot.lane.b32.xlu0 %v2732, 32
  %v2735 = vpop.permute.xlu0 %2734
  %v2737 = vmul.f32 %v2720, %v2735
  %2746 = vrot.lane.b32.xlu0 %v1702, 64
  %v2747 = vpop.permute.xlu0 %2746
  %2748 = vrot.lane.b32.xlu0 %v1850, 64
  %v2749 = vpop.permute.xlu0 %2748
  %2750 = vrot.lane.b32.xlu0 %v1998, 64
  %v2751 = vpop.permute.xlu0 %2750
  %2752 = vrot.lane.b32.xlu0 %v2146, 64
  %v2753 = vpop.permute.xlu0 %2752
  %2754 = vrot.lane.b32.xlu0 %v2294, 64
  %v2755 = vpop.permute.xlu0 %2754
  %2756 = vrot.lane.b32.xlu0 %v2442, 64
  %v2757 = vpop.permute.xlu0 %2756
  %2758 = vrot.lane.b32.xlu0 %v2590, 64
  %v2759 = vpop.permute.xlu0 %2758
  %2760 = vrot.lane.b32.xlu0 %v2737, 64
  %v2761 = vpop.permute.xlu0 %2760
  %v2770 = vsel %vm162, %v2747, 0.0
  %2771 = vadd.xlane.f32.xlu0 %v2770
  %v2772 = vpop.xlane.xlu0 %2771
  %v2773 = vsel %vm162, %v2749, 0.0
  %2774 = vadd.xlane.f32.xlu0 %v2773
  %v2775 = vpop.xlane.xlu0 %2774
  %v2776 = vsel %vm162, %v2751, 0.0
  %2777 = vadd.xlane.f32.xlu0 %v2776
  %v2778 = vpop.xlane.xlu0 %2777
  %v2779 = vsel %vm162, %v2753, 0.0
  %2780 = vadd.xlane.f32.xlu0 %v2779
  %v2781 = vpop.xlane.xlu0 %2780
  %v2782 = vsel %vm162, %v2755, 0.0
  %2783 = vadd.xlane.f32.xlu0 %v2782
  %v2784 = vpop.xlane.xlu0 %2783
  %v2785 = vsel %vm162, %v2757, 0.0
  %2786 = vadd.xlane.f32.xlu0 %v2785
  %v2787 = vpop.xlane.xlu0 %2786
  %v2788 = vsel %vm162, %v2759, 0.0
  %2789 = vadd.xlane.f32.xlu0 %v2788
  %v2790 = vpop.xlane.xlu0 %2789
  %v2791 = vsel %vm162, %v2761, 0.0
  %2792 = vadd.xlane.f32.xlu0 %v2791
  %v2793 = vpop.xlane.xlu0 %2792
  %v2794 = vrcp.pop 32.0
  %v2795 = vmul.f32 %v2772, %v2794
  %v2796 = vmul.f32 %v2775, %v2794
  %v2797 = vmul.f32 %v2778, %v2794
  %v2798 = vmul.f32 %v2781, %v2794
  %v2799 = vmul.f32 %v2784, %v2794
  %v2800 = vmul.f32 %v2787, %v2794
  %v2801 = vmul.f32 %v2790, %v2794
  %v2802 = vmul.f32 %v2793, %v2794
  %v2803 = vsub.f32 %v1702, %v2795
  %v2804 = vsub.f32 %v1850, %v2796
  %v2805 = vsub.f32 %v1998, %v2797
  %v2806 = vsub.f32 %v2146, %v2798
  %v2807 = vsub.f32 %v2294, %v2799
  %v2808 = vsub.f32 %v2442, %v2800
  %v2809 = vsub.f32 %v2590, %v2801
  %v2810 = vsub.f32 %v2737, %v2802
  %v2811 = vmul.f32 %v2803, %v2803
  %v2812 = vmul.f32 %v2804, %v2804
  %v2813 = vmul.f32 %v2805, %v2805
  %v2814 = vmul.f32 %v2806, %v2806
  %v2815 = vmul.f32 %v2807, %v2807
  %v2816 = vmul.f32 %v2808, %v2808
  %v2817 = vmul.f32 %v2809, %v2809
  %v2818 = vmul.f32 %v2810, %v2810
  %2827 = vrot.lane.b32.xlu0 %v2811, 64
  %v2828 = vpop.permute.xlu0 %2827
  %2829 = vrot.lane.b32.xlu0 %v2812, 64
  %v2830 = vpop.permute.xlu0 %2829
  %2831 = vrot.lane.b32.xlu0 %v2813, 64
  %v2832 = vpop.permute.xlu0 %2831
  %2833 = vrot.lane.b32.xlu0 %v2814, 64
  %v2834 = vpop.permute.xlu0 %2833
  %2835 = vrot.lane.b32.xlu0 %v2815, 64
  %v2836 = vpop.permute.xlu0 %2835
  %2837 = vrot.lane.b32.xlu0 %v2816, 64
  %v2838 = vpop.permute.xlu0 %2837
  %2839 = vrot.lane.b32.xlu0 %v2817, 64
  %v2840 = vpop.permute.xlu0 %2839
  %2841 = vrot.lane.b32.xlu0 %v2818, 64
  %v2842 = vpop.permute.xlu0 %2841
  %v2851 = vsel %vm162, %v2828, 0.0
  %2852 = vadd.xlane.f32.xlu0 %v2851
  %v2853 = vpop.xlane.xlu0 %2852
  %v2854 = vsel %vm162, %v2830, 0.0
  %2855 = vadd.xlane.f32.xlu0 %v2854
  %v2856 = vpop.xlane.xlu0 %2855
  %v2857 = vsel %vm162, %v2832, 0.0
  %2858 = vadd.xlane.f32.xlu0 %v2857
  %v2859 = vpop.xlane.xlu0 %2858
  %v2860 = vsel %vm162, %v2834, 0.0
  %2861 = vadd.xlane.f32.xlu0 %v2860
  %v2862 = vpop.xlane.xlu0 %2861
  %v2863 = vsel %vm162, %v2836, 0.0
  %2864 = vadd.xlane.f32.xlu0 %v2863
  %v2865 = vpop.xlane.xlu0 %2864
  %v2866 = vsel %vm162, %v2838, 0.0
  %2867 = vadd.xlane.f32.xlu0 %v2866
  %v2868 = vpop.xlane.xlu0 %2867
  %v2869 = vsel %vm162, %v2840, 0.0
  %2870 = vadd.xlane.f32.xlu0 %v2869
  %v2871 = vpop.xlane.xlu0 %2870
  %v2872 = vsel %vm162, %v2842, 0.0
  %2873 = vadd.xlane.f32.xlu0 %v2872
  %v2874 = vpop.xlane.xlu0 %2873
  %v2875 = vmul.f32 %v2853, %v2794
  %v2876 = vmul.f32 %v2856, %v2794
  %v2877 = vmul.f32 %v2859, %v2794
  %v2878 = vmul.f32 %v2862, %v2794
  %v2879 = vmul.f32 %v2865, %v2794
  %v2880 = vmul.f32 %v2868, %v2794
  %v2881 = vmul.f32 %v2871, %v2794
  %v2882 = vmul.f32 %v2874, %v2794
  %v2883 = vadd.f32 %v2875, 1e-05
  %v2884 = vadd.f32 %v2876, 1e-05
  %v2885 = vadd.f32 %v2877, 1e-05
  %v2886 = vadd.f32 %v2878, 1e-05
  %v2887 = vadd.f32 %v2879, 1e-05
  %v2888 = vadd.f32 %v2880, 1e-05
  %v2889 = vadd.f32 %v2881, 1e-05
  %v2890 = vadd.f32 %v2882, 1e-05
  %v2891 = vrsqrt.pop %v2883
  %v2892 = vrsqrt.pop %v2884
  %v2893 = vrsqrt.pop %v2885
  %v2894 = vrsqrt.pop %v2886
  %v2895 = vrsqrt.pop %v2887
  %v2896 = vrsqrt.pop %v2888
  %v2897 = vrsqrt.pop %v2889
  %v2898 = vrsqrt.pop %v2890
  %v2899 = vmul.f32 %v2803, %v2891
  %v2900 = vmul.f32 %v2804, %v2892
  %v2901 = vmul.f32 %v2805, %v2893
  %v2902 = vmul.f32 %v2806, %v2894
  %v2903 = vmul.f32 %v2807, %v2895
  %v2904 = vmul.f32 %v2808, %v2896
  %v2905 = vmul.f32 %v2809, %v2897
  %v2906 = vmul.f32 %v2810, %v2898
  %v2907 = vld [vmem:[%s10] sm:$0x1]
  %v2909 = vlaneseq
  %v2910 = vshrl.u32 %v2909, 7
  %v2911 = vsub.s32 0, %v2910
  %v2912 = vrot.slane %v2907, %v2911
  %2913 = vrot.lane.b32.xlu0 %v2912, 64
  %v2914 = vpop.permute.xlu0 %2913
  %v2916 = vmul.f32 %v2899, %v2914
  %v2917 = vmul.f32 %v2900, %v2914
  %v2918 = vmul.f32 %v2901, %v2914
  %v2919 = vmul.f32 %v2902, %v2914
  %v2920 = vmul.f32 %v2903, %v2914
  %v2921 = vmul.f32 %v2904, %v2914
  %v2922 = vmul.f32 %v2905, %v2914
  %v2923 = vmul.f32 %v2906, %v2914
  %v2924 = vld [vmem:[%s11] sm:$0x1]
  %v2926 = vlaneseq
  %v2927 = vshrl.u32 %v2926, 7
  %v2928 = vsub.s32 0, %v2927
  %v2929 = vrot.slane %v2924, %v2928
  %2930 = vrot.lane.b32.xlu0 %v2929, 64
  %v2931 = vpop.permute.xlu0 %2930
  %v2933 = vadd.f32 %v2916, %v2931
  %v2934 = vadd.f32 %v2917, %v2931
  %v2935 = vadd.f32 %v2918, %v2931
  %v2936 = vadd.f32 %v2919, %v2931
  %v2937 = vadd.f32 %v2920, %v2931
  %v2938 = vadd.f32 %v2921, %v2931
  %v2939 = vadd.f32 %v2922, %v2931
  %v2940 = vadd.f32 %v2923, %v2931
  %v2941 = vld [vmem:[%s12] sm:$0x1]
  %v2942 = vld [vmem:[#allocation2] sm:$0x1]
  %2944 = vset.pattern.permute.xlu0 0
  %2945 = vperm.xlu0 %2944, %v2942
  %v2946 = vpop.permute.xlu0 %2945
  %v2948 = vlaneseq
  %v2949 = vshrl.u32 %v2948, 7
  %v2950 = vsub.s32 0, %v2949
  %v2951 = vrot.slane %v2946, %v2950
  %2960 = vrot.lane.b32.xlu0 %v2933, 64
  %v2961 = vpop.permute.xlu0 %2960
  %2962 = vrot.lane.b32.xlu0 %v2934, 64
  %v2963 = vpop.permute.xlu0 %2962
  %2964 = vrot.lane.b32.xlu0 %v2935, 64
  %v2965 = vpop.permute.xlu0 %2964
  %2966 = vrot.lane.b32.xlu0 %v2936, 64
  %v2967 = vpop.permute.xlu0 %2966
  %2968 = vrot.lane.b32.xlu0 %v2937, 64
  %v2969 = vpop.permute.xlu0 %2968
  %2970 = vrot.lane.b32.xlu0 %v2938, 64
  %v2971 = vpop.permute.xlu0 %2970
  %2972 = vrot.lane.b32.xlu0 %v2939, 64
  %v2973 = vpop.permute.xlu0 %2972
  %2974 = vrot.lane.b32.xlu0 %v2940, 64
  %v2975 = vpop.permute.xlu0 %2974
  %v2977 = vsel %vm162, %v2941, 0
  %v2979 = vsel %vm162, %v2961, 0
  %v2981 = vsel %vm162, %v2963, 0
  %v2983 = vsel %vm162, %v2965, 0
  %v2985 = vsel %vm162, %v2967, 0
  %v2987 = vsel %vm162, %v2969, 0
  %v2989 = vsel %vm162, %v2971, 0
  %v2991 = vsel %vm162, %v2973, 0
  %v2993 = vsel %vm162, %v2975, 0
  %2995 = vmatprep.subr.mxu0 0.0
  %2996 = vmatpush1.xpose.msra.mxu0 %v2979
  %2997 = vmatprep.subr.mxu0 0.0
  %2998 = vmatpush1.xpose.msra.mxu0 %v2981
  %2999 = vmatprep.subr.mxu0 0.0
  %3000 = vmatpush1.xpose.msra.mxu0 %v2983
  %3001 = vmatprep.subr.mxu0 0.0
  %3002 = vmatpush1.xpose.msra.mxu0 %v2985
  %3003 = vmatprep.subr.mxu0 0.0
  %3004 = vmatpush1.xpose.msra.mxu0 %v2987
  %3005 = vmatprep.subr.mxu0 0.0
  %3006 = vmatpush1.xpose.msra.mxu0 %v2989
  %3007 = vmatprep.subr.mxu0 0.0
  %3008 = vmatpush1.xpose.msra.mxu0 %v2991
  %3009 = vmatprep.subr.mxu0 0.0
  %3010 = vmatpush1.xpose.msra.mxu0 %v2993
  %3011 = vmatprep.subr.mxu0 0.0
  %3012 = vmatpush1.xpose.msra.mxu0 0.0
  %3013 = vmatprep.subr.mxu0 0.0
  %3014 = vmatpush1.xpose.msra.mxu0 0.0
  %3015 = vmatprep.subr.mxu0 0.0
  %3016 = vmatpush1.xpose.msra.mxu0 0.0
  %3017 = vmatprep.subr.mxu0 0.0
  %3018 = vmatpush1.xpose.msra.mxu0 0.0
  %3019 = vmatprep.subr.mxu0 0.0
  %3020 = vmatpush1.xpose.msra.mxu0 0.0
  %3021 = vmatprep.subr.mxu0 0.0
  %3022 = vmatpush1.xpose.msra.mxu0 0.0
  %3023 = vmatprep.subr.mxu0 0.0
  %3024 = vmatpush1.xpose.msra.mxu0 0.0
  %3025 = vmatprep.subr.mxu0 0.0
  %3026 = vmatpush1.xpose.msra.mxu0 0.0
  %3027 = vmatprep.subr.mxu0 0.0
  %3028 = vmatpush1.xpose.msra.mxu0 0.0
  %3029 = vmatprep.subr.mxu0 0.0
  %3030 = vmatpush1.xpose.msra.mxu0 0.0
  %3031 = vmatprep.subr.mxu0 0.0
  %3032 = vmatpush1.xpose.msra.mxu0 0.0
  %3033 = vmatprep.subr.mxu0 0.0
  %3034 = vmatpush1.xpose.msra.mxu0 0.0
  %3035 = vmatprep.subr.mxu0 0.0
  %3036 = vmatpush1.xpose.msra.mxu0 0.0
  %3037 = vmatprep.subr.mxu0 0.0
  %3038 = vmatpush1.xpose.msra.mxu0 0.0
  %3039 = vmatprep.subr.mxu0 0.0
  %3040 = vmatpush1.xpose.msra.mxu0 0.0
  %3041 = vmatprep.subr.mxu0 0.0
  %3042 = vmatpush1.xpose.msra.mxu0 0.0
  %3043 = vmatprep.subr.mxu0 0.0
  %3044 = vmatpush1.xpose.msra.mxu0 0.0
  %3045 = vmatprep.subr.mxu0 0.0
  %3046 = vmatpush1.xpose.msra.mxu0 0.0
  %3047 = vmatprep.subr.mxu0 0.0
  %3048 = vmatpush1.xpose.msra.mxu0 0.0
  %3049 = vmatprep.subr.mxu0 0.0
  %3050 = vmatpush1.xpose.msra.mxu0 0.0
  %3051 = vmatprep.subr.mxu0 0.0
  %3052 = vmatpush1.xpose.msra.mxu0 0.0
  %3053 = vmatprep.subr.mxu0 0.0
  %3054 = vmatpush1.xpose.msra.mxu0 0.0
  %3055 = vmatprep.subr.mxu0 0.0
  %3056 = vmatpush1.xpose.msra.mxu0 0.0
  %3057 = vmatprep.subr.mxu0 0.0
  %3058 = vmatpush1.xpose.msra.mxu0 0.0
  %3059 = vmatprep.mubr.f32.mxu0 0.0
  %3060 = vmatmul.mubr.f32.gmra.mrb[0].mxu0 %v2977
  %v3061 = vpop.f32.mrb[0].mxu0
  %v3062 = vadd.f32 %v2951, %v3061
  %v3063 = vpop.f32.mrb[0].mxu0
  %3064 = vdwg.mxu0
  %vm3065 = vcmask 516096
  %3066 = vst.msk [vmem:[%s14] sm:$0x1] %vm3065, %v3062
  // Predicated region
  $region58: #{forward.1} parent=0 // pred_check
    _
  $region59: #{forward.1} parent=0 // pred_check_branch
    %3068 = sbr.rel (0) target = $region61
  $region60: #{forward.1} parent=0 // pred_region
    _
  $region61: #{forward.1} parent=0 // pred_fallthru
    _
  // Predicated region
  $region62: #{forward.1} parent=0 // pred_check
    _
  $region63: #{forward.1} parent=0 // pred_check_branch
    %3070 = sbr.rel (0) target = $region65
  $region64: #{forward.1} parent=0 // pred_region
    _
  $region65: #{forward.1} parent=0 // pred_fallthru
    _

</llo_original>
